<compile_context>
chip_gen: v7x
topology: tpu7x:2x2x1
jax: 0.10.0
libtpu: 0.0.40
codegen_flags: <defaults>
</compile_context>

<pallas_src>
import math
from functools import partial

import numpy as np
import jax
import jax.numpy as jnp
from jax.experimental import pallas as pl
from jax.experimental.pallas import tpu as pltpu

D_MODEL = 128
N_HEADS = 8
HEAD_DIM = D_MODEL // N_HEADS          # 16
D_FF = 1024
N_LAYERS = 4
LN_EPS = 1e-5                          # torch LayerNorm default
ROWS_TARGET = 1024                     # target MXU M-dim (rows) per grid step

STACKED_ORDER = ["wqkv", "bqkv", "wo", "bo", "g1", "b1",
                 "w1", "bf1", "w2", "bf2", "g2", "b2"]


def _layernorm(x, gamma, beta):
    # torch.nn.LayerNorm over last dim, biased variance, eps=1e-5 (f32 math)
    mean = jnp.mean(x, axis=-1, keepdims=True)
    var = jnp.mean(jnp.square(x - mean), axis=-1, keepdims=True)
    return (x - mean) * jax.lax.rsqrt(var + LN_EPS) * gamma + beta


def fused_encoder_kernel(x_ref, pe_ref, em_ref, gm_ref, bseg_ref,
                         wqkv_ref, bqkv_ref, wo_ref, bo_ref,
                         g1_ref, b1_ref, w1_ref, bf1_ref,
                         w2_ref, bf2_ref, g2_ref, b2_ref,
                         o_ref, *, seqs_per_block, seq_len):
    """All 4 post-norm encoder layers for a block of S sequences (resident in VMEM)."""
    S, L = seqs_per_block, seq_len
    rows = S * L
    HL = N_HEADS * L                                    # packed score width (64 for L=8)
    scale = 1.0 / math.sqrt(HEAD_DIM)

    # (S, L, D) activation block; add positional encoding once (layer-0 input).
    x0 = x_ref[...].astype(jnp.float32) + pe_ref[...]   # broadcast (L, D)
    x0 = x0.reshape(rows, D_MODEL)                       # lane-dense slab

    def layer(li, x):
        # ---- multi-head self-attention (packed, lane-dense, M=rows matmuls) ----
        x_b = x.astype(jnp.bfloat16)
        qkv = jnp.dot(x_b, wqkv_ref[li], preferred_element_type=jnp.float32)
        qkv = qkv + bqkv_ref[li]                         # (rows, 384) f32

        q_b = (qkv[:, :D_MODEL] * scale).astype(jnp.bfloat16)              # (rows,128)
        k3_b = qkv[:, D_MODEL:2 * D_MODEL].astype(jnp.bfloat16).reshape(S, L, D_MODEL)
        v3 = qkv[:, 2 * D_MODEL:].reshape(S, L, D_MODEL)                   # f32

        # scores packed as (rows, H*L); lane j = h*L + m  (per-head 8-lane segments)
        scores = jnp.zeros((rows, HL), jnp.float32)
        for m in range(L):                               # static unroll (8)
            kb = jnp.broadcast_to(k3_b[:, m:m + 1, :],
                                  (S, L, D_MODEL)).reshape(rows, D_MODEL)
            # em[m] sums the 16 lanes of head h into packed lane h*L + m
            scores = scores + jnp.dot(q_b * kb, em_ref[m],
                                      preferred_element_type=jnp.float32)

        # segmented softmax over the L keys of each head.
        # Subtracting the per-row global max is a constant shift within every
        # 8-lane segment -> mathematically exact, numerically safe here.
        scores = scores - jnp.max(scores, axis=-1, keepdims=True)
        p = jnp.exp(scores)
        seg = jnp.dot(p, bseg_ref[...], preferred_element_type=jnp.float32)
        p = p / seg                                      # exact division (f32)
        p_b = p.astype(jnp.bfloat16)

        # context: ctx[r, h*16+d] = sum_m p[r, h*L+m] * v[s, m, h*16+d]
        ctx = jnp.zeros((rows, D_MODEL), jnp.float32)
        for m in range(L):                               # static unroll (8)
            # gm[m] broadcasts each head's weight for key m across its 16 lanes
            pm = jnp.dot(p_b, gm_ref[m], preferred_element_type=jnp.float32)
            vb = jnp.broadcast_to(v3[:, m:m + 1, :],
                                  (S, L, D_MODEL)).reshape(rows, D_MODEL)
            ctx = ctx + pm * vb

        # single full-K output projection (no per-head K=16 accumulation)
        attn = jnp.dot(ctx.astype(jnp.bfloat16), wo_ref[li],
                       preferred_element_type=jnp.float32) + bo_ref[li]
        x = _layernorm(x + attn, g1_ref[li], b1_ref[li])          # residual + norm1

        # ---- feed-forward (un-chunked: full (rows,1024) intermediate, K=1024) ----
        x_b = x.astype(jnp.bfloat16)
        h1 = jnp.dot(x_b, w1_ref[li], preferred_element_type=jnp.float32)
        h1 = jnp.maximum(h1 + bf1_ref[li], 0.0)                   # relu, (rows, 1024)
        ff = jnp.dot(h1.astype(jnp.bfloat16), w2_ref[li],
                     preferred_element_type=jnp.float32) + bf2_ref[li]
        x = _layernorm(x + ff, g2_ref[li], b2_ref[li])            # residual + norm2
        return x

    x = jax.lax.fori_loop(0, N_LAYERS, layer, x0)
    o_ref[...] = x.reshape(S, L, D_MODEL).astype(o_ref.dtype)


def _attn_selectors(L):
    """Constant 0/1 selector matrices for packed attention (built host-side)."""
    HL = N_HEADS * L
    c = np.arange(D_MODEL)            # lane index  c = h*16 + d
    j = np.arange(HL)                 # packed idx  j = h*L  + m
    h_c = c // HEAD_DIM
    h_j = j // L
    m_j = j % L
    m_ax = np.arange(L)[:, None, None]
    # EM[m, c, j]  = 1 if head(c) == head(j) and key(j) == m     -> (L, 128, HL)
    em = ((h_c[None, :, None] == h_j[None, None, :]) &
          (m_j[None, None, :] == m_ax)).astype(np.float32)
    # GM[m, j, c]  = 1 if head(j) == head(c) and key(j) == m     -> (L, HL, 128)
    gm = ((h_j[None, :, None] == h_c[None, None, :]) &
          (m_j[None, :, None] == m_ax)).astype(np.float32)
    # BSEG[j, j2]  = 1 if head(j) == head(j2)                    -> (HL, HL)
    bseg = (h_j[:, None] == h_j[None, :]).astype(np.float32)
    return (jnp.asarray(em, dtype=jnp.bfloat16),
            jnp.asarray(gm, dtype=jnp.bfloat16),
            jnp.asarray(bseg, dtype=jnp.float32))


def sequence_encoder(x, stacked, pe):
    """Forward of SequenceEncoder.  x: (batch, L, nchan, 128) -> same shape."""
    batch, L, nchan, D = x.shape
    assert D == D_MODEL
    # permute(0,2,1,3).reshape(batch*nchan, L, 128)
    xs = jnp.transpose(x, (0, 2, 1, 3)).reshape(batch * nchan, L, D)
    Bp = batch * nchan

    # Blocking: aim for ~ROWS_TARGET rows per grid step; keep the step count
    # even when > 1 so both v7x TensorCores get equal work.
    s_max = max(1, ROWS_TARGET // L)
    g = max(1, -(-Bp // s_max))
    if g > 1 and g % 2:
        g += 1
    S = -(-Bp // g)
    Bpad = g * S
    if Bpad != Bp:
        xs = jnp.pad(xs, ((0, Bpad - Bp), (0, 0), (0, 0)))      # zero-padded seqs
    grid = (g,)

    em, gm, bseg = _attn_selectors(L)
    weights = [stacked[name] for name in STACKED_ORDER]

    in_specs = [pl.BlockSpec((S, L, D), lambda i: (i, 0, 0)),   # activation block
                pl.BlockSpec((L, D), lambda i: (0, 0)),         # positional encoding
                pl.BlockSpec(em.shape, lambda i: (0, 0, 0)),    # score selector
                pl.BlockSpec(gm.shape, lambda i: (0, 0, 0)),    # ctx-gather selector
                pl.BlockSpec(bseg.shape, lambda i: (0, 0))]     # segment-sum matrix
    for w in weights:                                           # all-layer weights, resident
        in_specs.append(pl.BlockSpec(w.shape, lambda i, n=w.ndim: (0,) * n))

    out = pl.pallas_call(
        partial(fused_encoder_kernel, seqs_per_block=S, seq_len=L),
        out_shape=jax.ShapeDtypeStruct((Bpad, L, D), x.dtype),
        grid_spec=pltpu.PrefetchScalarGridSpec(
            num_scalar_prefetch=0,
            grid=grid,
            in_specs=in_specs,
            out_specs=pl.BlockSpec((S, L, D), lambda i: (i, 0, 0)),
        ),
        compiler_params=pltpu.CompilerParams(
            dimension_semantics=("parallel",),
            vmem_limit_bytes=48 * 1024 * 1024),
    )(xs, pe, em, gm, bseg, *weights)

    out = out[:Bp]
    # reshape(batch, nchan, L, -1).permute(0,2,1,3)
    return jnp.transpose(out.reshape(batch, nchan, L, D), (0, 2, 1, 3))


def sinusoidal_pe(L, d_model):
    # Standard "Attention is all you need" positional encoding (PositionalEncoding(128)).
    pos = jnp.arange(L, dtype=jnp.float32)[:, None]
    div = jnp.exp(jnp.arange(0, d_model, 2, dtype=jnp.float32)
                  * (-math.log(10000.0) / d_model))
    pe = jnp.zeros((L, d_model), dtype=jnp.float32)
    pe = pe.at[:, 0::2].set(jnp.sin(pos * div))
    pe = pe.at[:, 1::2].set(jnp.cos(pos * div))
    return pe


def init_layer_params(key):
    """Deterministic synthetic weights (torch Linear weights pre-transposed to x @ W)."""
    ks = jax.random.split(key, 10)
    n = lambda k, s, sc: jax.random.normal(k, s, dtype=jnp.float32) * sc
    return {
        "wq": n(ks[0], (D_MODEL, D_MODEL), 0.05),   # in_proj_weight[:128].T
        "wk": n(ks[1], (D_MODEL, D_MODEL), 0.05),   # in_proj_weight[128:256].T
        "wv": n(ks[2], (D_MODEL, D_MODEL), 0.05),   # in_proj_weight[256:].T
        "bq": n(ks[3], (1, D_MODEL), 0.01),
        "bk": n(ks[4], (1, D_MODEL), 0.01),
        "bv": n(ks[5], (1, D_MODEL), 0.01),
        "wo": n(ks[6], (D_MODEL, D_MODEL), 0.05),   # out_proj.weight.T
        "bo": n(ks[7], (1, D_MODEL), 0.01),
        "g1": jnp.ones((1, D_MODEL), jnp.float32),
        "b1": jnp.zeros((1, D_MODEL), jnp.float32),
        "w1": n(ks[8], (D_MODEL, D_FF), 0.05),      # linear1.weight.T
        "bf1": jnp.zeros((1, D_FF), jnp.float32),
        "w2": n(ks[9], (D_FF, D_MODEL), 0.05),      # linear2.weight.T
        "bf2": jnp.zeros((1, D_MODEL), jnp.float32),
        "g2": jnp.ones((1, D_MODEL), jnp.float32),
        "b2": jnp.zeros((1, D_MODEL), jnp.float32),
    }


def stack_params(layer_params):
    """Fuse QKV per layer, stack all layers, cast big matmul weights to bf16."""
    cat_w = lambda p: jnp.concatenate([p["wq"], p["wk"], p["wv"]], axis=1)   # (128, 384)
    cat_b = lambda p: jnp.concatenate([p["bq"], p["bk"], p["bv"]], axis=1)   # (1, 384)
    stk = lambda f: jnp.stack([f(p) for p in layer_params], axis=0)
    g = lambda name: jnp.stack([p[name] for p in layer_params], axis=0)
    return {
        "wqkv": stk(cat_w).astype(jnp.bfloat16),   # (4, 128, 384)  bf16 MXU input
        "bqkv": stk(cat_b),                        # (4, 1, 384)    f32
        "wo":   g("wo").astype(jnp.bfloat16),      # (4, 128, 128)
        "bo":   g("bo"),
        "g1":   g("g1"), "b1": g("b1"),
        "w1":   g("w1").astype(jnp.bfloat16),      # (4, 128, 1024)
        "bf1":  g("bf1"),
        "w2":   g("w2").astype(jnp.bfloat16),      # (4, 1024, 128)
        "bf2":  g("bf2"),
        "g2":   g("g2"), "b2": g("b2"),
    }


if __name__ == "__main__":
    key = jax.random.PRNGKey(0)
    kx, kp = jax.random.split(key)

    batch, L, nchan = 2, 8, 2
    x = jax.random.normal(kx, (batch, L, nchan, D_MODEL), dtype=jnp.float32)

    layer_keys = jax.random.split(kp, N_LAYERS)
    stacked = stack_params([init_layer_params(layer_keys[i]) for i in range(N_LAYERS)])
    pe = sinusoidal_pe(L, D_MODEL)

    fwd = jax.jit(lambda xx: sequence_encoder(xx, stacked, pe))
    out = fwd(x)
    jax.block_until_ready(out)

    assert out.shape == (batch, L, nchan, D_MODEL), out.shape
    assert bool(jnp.all(jnp.isfinite(out)))
    print("KERNEL_OK")
</pallas_src>

<mosaic_0001>
module attributes {stable_mosaic.version = 11 : i64} {
  func.func @fused_encoder_kernel(%arg0: i32, %arg1: memref<4x8x128xf32, #tpu.memory_space<vmem>>, %arg2: memref<8x128xf32, #tpu.memory_space<vmem>>, %arg3: memref<8x128x64xbf16, #tpu.memory_space<vmem>>, %arg4: memref<8x64x128xbf16, #tpu.memory_space<vmem>>, %arg5: memref<64x64xf32, #tpu.memory_space<vmem>>, %arg6: memref<4x128x384xbf16, #tpu.memory_space<vmem>>, %arg7: memref<4x1x384xf32, #tpu.memory_space<vmem>>, %arg8: memref<4x128x128xbf16, #tpu.memory_space<vmem>>, %arg9: memref<4x1x128xf32, #tpu.memory_space<vmem>>, %arg10: memref<4x1x128xf32, #tpu.memory_space<vmem>>, %arg11: memref<4x1x128xf32, #tpu.memory_space<vmem>>, %arg12: memref<4x128x1024xbf16, #tpu.memory_space<vmem>>, %arg13: memref<4x1x1024xf32, #tpu.memory_space<vmem>>, %arg14: memref<4x1024x128xbf16, #tpu.memory_space<vmem>>, %arg15: memref<4x1x128xf32, #tpu.memory_space<vmem>>, %arg16: memref<4x1x128xf32, #tpu.memory_space<vmem>>, %arg17: memref<4x1x128xf32, #tpu.memory_space<vmem>>, %arg18: memref<4x8x128xf32, #tpu.memory_space<vmem>>) attributes {dimension_semantics = [#tpu.dimension_semantics<parallel>], iteration_bounds = array<i64: 1>, scalar_prefetch = 0 : i64, scratch_operands = 0 : i64, tpu.core_type = #tpu.core_type<tc>, window_params = [{transform_indices = @transform_0, window_bounds = array<i64: 4, 8, 128>}, {pipeline_mode = #tpu.pipeline_mode<synchronous>, transform_indices = @transform_1, window_bounds = array<i64: 8, 128>}, {pipeline_mode = #tpu.pipeline_mode<synchronous>, transform_indices = @transform_2, window_bounds = array<i64: 8, 128, 64>}, {pipeline_mode = #tpu.pipeline_mode<synchronous>, transform_indices = @transform_3, window_bounds = array<i64: 8, 64, 128>}, {pipeline_mode = #tpu.pipeline_mode<synchronous>, transform_indices = @transform_4, window_bounds = array<i64: 64, 64>}, {pipeline_mode = #tpu.pipeline_mode<synchronous>, transform_indices = @transform_5, window_bounds = array<i64: 4, 128, 384>}, {pipeline_mode = #tpu.pipeline_mode<synchronous>, transform_indices = @transform_6, window_bounds = array<i64: 4, 1, 384>}, {pipeline_mode = #tpu.pipeline_mode<synchronous>, transform_indices = @transform_7, window_bounds = array<i64: 4, 128, 128>}, {pipeline_mode = #tpu.pipeline_mode<synchronous>, transform_indices = @transform_8, window_bounds = array<i64: 4, 1, 128>}, {pipeline_mode = #tpu.pipeline_mode<synchronous>, transform_indices = @transform_9, window_bounds = array<i64: 4, 1, 128>}, {pipeline_mode = #tpu.pipeline_mode<synchronous>, transform_indices = @transform_10, window_bounds = array<i64: 4, 1, 128>}, {pipeline_mode = #tpu.pipeline_mode<synchronous>, transform_indices = @transform_11, window_bounds = array<i64: 4, 128, 1024>}, {pipeline_mode = #tpu.pipeline_mode<synchronous>, transform_indices = @transform_12, window_bounds = array<i64: 4, 1, 1024>}, {pipeline_mode = #tpu.pipeline_mode<synchronous>, transform_indices = @transform_13, window_bounds = array<i64: 4, 1024, 128>}, {pipeline_mode = #tpu.pipeline_mode<synchronous>, transform_indices = @transform_14, window_bounds = array<i64: 4, 1, 128>}, {pipeline_mode = #tpu.pipeline_mode<synchronous>, transform_indices = @transform_15, window_bounds = array<i64: 4, 1, 128>}, {pipeline_mode = #tpu.pipeline_mode<synchronous>, transform_indices = @transform_16, window_bounds = array<i64: 4, 1, 128>}, {transform_indices = @transform_17, window_bounds = array<i64: 4, 8, 128>}]} {
    %c0 = arith.constant 0 : index
    %c0_0 = arith.constant 0 : index
    %c0_1 = arith.constant 0 : index
    %0 = vector.load %arg1[%c0, %c0_0, %c0_1] : memref<4x8x128xf32, #tpu.memory_space<vmem>>, vector<4x8x128xf32>
    %c0_2 = arith.constant 0 : index
    %c0_3 = arith.constant 0 : index
    %1 = vector.load %arg2[%c0_2, %c0_3] : memref<8x128xf32, #tpu.memory_space<vmem>>, vector<8x128xf32>
    %2 = vector.shape_cast %1 : vector<8x128xf32> to vector<1x8x128xf32>
    %3 = vector.broadcast %2 : vector<1x8x128xf32> to vector<4x8x128xf32>
    %4 = arith.addf %0, %3 : vector<4x8x128xf32>
    %5 = vector.shape_cast %4 : vector<4x8x128xf32> to vector<32x128xf32>
    %c0_i32 = arith.constant 0 : i32
    %c4_i32 = arith.constant 4 : i32
    %6 = arith.addi %c0_i32, %c4_i32 : i32
    %c1_i32 = arith.constant 1 : i32
    %7 = scf.for %arg19 = %c0_i32 to %6 step %c1_i32 iter_args(%arg20 = %5) -> (vector<32x128xf32>)  : i32 {
      %10 = arith.truncf %arg20 : vector<32x128xf32> to vector<32x128xbf16>
      %11 = arith.index_cast %arg19 : i32 to index
      %c0_8 = arith.constant 0 : index
      %c0_9 = arith.constant 0 : index
      %12 = vector.load %arg6[%11, %c0_8, %c0_9] : memref<4x128x384xbf16, #tpu.memory_space<vmem>>, vector<1x128x384xbf16>
      %13 = vector.shape_cast %12 : vector<1x128x384xbf16> to vector<128x384xbf16>
      %cst = arith.constant dense<0.000000e+00> : vector<32x384xf32>
      %14 = tpu.matmul %10, %13, %cst {dimension_numbers = #tpu.dot_dimension_numbers<[1], [0], [0], [1], [0, 0, 1, 1], [], []>} : vector<32x128xbf16>, vector<128x384xbf16>, vector<32x384xf32> -> vector<32x384xf32>
      %15 = arith.index_cast %arg19 : i32 to index
      %c0_10 = arith.constant 0 : index
      %c0_11 = arith.constant 0 : index
      %16 = vector.load %arg7[%15, %c0_10, %c0_11] : memref<4x1x384xf32, #tpu.memory_space<vmem>>, vector<1x1x384xf32>
      %17 = vector.shape_cast %16 : vector<1x1x384xf32> to vector<1x384xf32>
      %18 = vector.broadcast %17 : vector<1x384xf32> to vector<32x384xf32>
      %19 = arith.addf %14, %18 : vector<32x384xf32>
      %20 = vector.extract_strided_slice %19 {offsets = [0, 0], sizes = [32, 128], strides = [1, 1]} : vector<32x384xf32> to vector<32x128xf32>
      %cst_12 = arith.constant 2.500000e-01 : f32
      %21 = vector.broadcast %cst_12 : f32 to vector<32x128xf32>
      %22 = arith.mulf %20, %21 : vector<32x128xf32>
      %23 = arith.truncf %22 : vector<32x128xf32> to vector<32x128xbf16>
      %24 = vector.extract_strided_slice %19 {offsets = [0, 128], sizes = [32, 128], strides = [1, 1]} : vector<32x384xf32> to vector<32x128xf32>
      %25 = arith.truncf %24 : vector<32x128xf32> to vector<32x128xbf16>
      %26 = vector.shape_cast %25 : vector<32x128xbf16> to vector<4x8x128xbf16>
      %27 = vector.extract_strided_slice %19 {offsets = [0, 256], sizes = [32, 128], strides = [1, 1]} : vector<32x384xf32> to vector<32x128xf32>
      %28 = vector.shape_cast %27 : vector<32x128xf32> to vector<4x8x128xf32>
      %cst_13 = arith.constant 0.000000e+00 : f32
      %29 = vector.broadcast %cst_13 : f32 to vector<32x64xf32>
      %30 = vector.extract_strided_slice %26 {offsets = [0, 0, 0], sizes = [4, 1, 128], strides = [1, 1, 1]} : vector<4x8x128xbf16> to vector<4x1x128xbf16>
      %31 = vector.shape_cast %30 : vector<4x1x128xbf16> to vector<4x1x128xbf16>
      %32 = vector.broadcast %31 : vector<4x1x128xbf16> to vector<4x8x128xbf16>
      %33 = vector.shape_cast %32 : vector<4x8x128xbf16> to vector<32x128xbf16>
      %34 = arith.mulf %23, %33 : vector<32x128xbf16>
      %c0_14 = arith.constant 0 : index
      %c0_15 = arith.constant 0 : index
      %c0_16 = arith.constant 0 : index
      %35 = vector.load %arg3[%c0_14, %c0_15, %c0_16] : memref<8x128x64xbf16, #tpu.memory_space<vmem>>, vector<1x128x64xbf16>
      %36 = vector.shape_cast %35 : vector<1x128x64xbf16> to vector<128x64xbf16>
      %cst_17 = arith.constant dense<0.000000e+00> : vector<32x64xf32>
      %37 = tpu.matmul %34, %36, %cst_17 {dimension_numbers = #tpu.dot_dimension_numbers<[1], [0], [0], [1], [0, 0, 1, 1], [], []>} : vector<32x128xbf16>, vector<128x64xbf16>, vector<32x64xf32> -> vector<32x64xf32>
      %38 = arith.addf %29, %37 : vector<32x64xf32>
      %39 = vector.extract_strided_slice %26 {offsets = [0, 1, 0], sizes = [4, 1, 128], strides = [1, 1, 1]} : vector<4x8x128xbf16> to vector<4x1x128xbf16>
      %40 = vector.shape_cast %39 : vector<4x1x128xbf16> to vector<4x1x128xbf16>
      %41 = vector.broadcast %40 : vector<4x1x128xbf16> to vector<4x8x128xbf16>
      %42 = vector.shape_cast %41 : vector<4x8x128xbf16> to vector<32x128xbf16>
      %43 = arith.mulf %23, %42 : vector<32x128xbf16>
      %c1 = arith.constant 1 : index
      %c0_18 = arith.constant 0 : index
      %c0_19 = arith.constant 0 : index
      %44 = vector.load %arg3[%c1, %c0_18, %c0_19] : memref<8x128x64xbf16, #tpu.memory_space<vmem>>, vector<1x128x64xbf16>
      %45 = vector.shape_cast %44 : vector<1x128x64xbf16> to vector<128x64xbf16>
      %cst_20 = arith.constant dense<0.000000e+00> : vector<32x64xf32>
      %46 = tpu.matmul %43, %45, %cst_20 {dimension_numbers = #tpu.dot_dimension_numbers<[1], [0], [0], [1], [0, 0, 1, 1], [], []>} : vector<32x128xbf16>, vector<128x64xbf16>, vector<32x64xf32> -> vector<32x64xf32>
      %47 = arith.addf %38, %46 : vector<32x64xf32>
      %48 = vector.extract_strided_slice %26 {offsets = [0, 2, 0], sizes = [4, 1, 128], strides = [1, 1, 1]} : vector<4x8x128xbf16> to vector<4x1x128xbf16>
      %49 = vector.shape_cast %48 : vector<4x1x128xbf16> to vector<4x1x128xbf16>
      %50 = vector.broadcast %49 : vector<4x1x128xbf16> to vector<4x8x128xbf16>
      %51 = vector.shape_cast %50 : vector<4x8x128xbf16> to vector<32x128xbf16>
      %52 = arith.mulf %23, %51 : vector<32x128xbf16>
      %c2 = arith.constant 2 : index
      %c0_21 = arith.constant 0 : index
      %c0_22 = arith.constant 0 : index
      %53 = vector.load %arg3[%c2, %c0_21, %c0_22] : memref<8x128x64xbf16, #tpu.memory_space<vmem>>, vector<1x128x64xbf16>
      %54 = vector.shape_cast %53 : vector<1x128x64xbf16> to vector<128x64xbf16>
      %cst_23 = arith.constant dense<0.000000e+00> : vector<32x64xf32>
      %55 = tpu.matmul %52, %54, %cst_23 {dimension_numbers = #tpu.dot_dimension_numbers<[1], [0], [0], [1], [0, 0, 1, 1], [], []>} : vector<32x128xbf16>, vector<128x64xbf16>, vector<32x64xf32> -> vector<32x64xf32>
      %56 = arith.addf %47, %55 : vector<32x64xf32>
      %57 = vector.extract_strided_slice %26 {offsets = [0, 3, 0], sizes = [4, 1, 128], strides = [1, 1, 1]} : vector<4x8x128xbf16> to vector<4x1x128xbf16>
      %58 = vector.shape_cast %57 : vector<4x1x128xbf16> to vector<4x1x128xbf16>
      %59 = vector.broadcast %58 : vector<4x1x128xbf16> to vector<4x8x128xbf16>
      %60 = vector.shape_cast %59 : vector<4x8x128xbf16> to vector<32x128xbf16>
      %61 = arith.mulf %23, %60 : vector<32x128xbf16>
      %c3 = arith.constant 3 : index
      %c0_24 = arith.constant 0 : index
      %c0_25 = arith.constant 0 : index
      %62 = vector.load %arg3[%c3, %c0_24, %c0_25] : memref<8x128x64xbf16, #tpu.memory_space<vmem>>, vector<1x128x64xbf16>
      %63 = vector.shape_cast %62 : vector<1x128x64xbf16> to vector<128x64xbf16>
      %cst_26 = arith.constant dense<0.000000e+00> : vector<32x64xf32>
      %64 = tpu.matmul %61, %63, %cst_26 {dimension_numbers = #tpu.dot_dimension_numbers<[1], [0], [0], [1], [0, 0, 1, 1], [], []>} : vector<32x128xbf16>, vector<128x64xbf16>, vector<32x64xf32> -> vector<32x64xf32>
      %65 = arith.addf %56, %64 : vector<32x64xf32>
      %66 = vector.extract_strided_slice %26 {offsets = [0, 4, 0], sizes = [4, 1, 128], strides = [1, 1, 1]} : vector<4x8x128xbf16> to vector<4x1x128xbf16>
      %67 = vector.shape_cast %66 : vector<4x1x128xbf16> to vector<4x1x128xbf16>
      %68 = vector.broadcast %67 : vector<4x1x128xbf16> to vector<4x8x128xbf16>
      %69 = vector.shape_cast %68 : vector<4x8x128xbf16> to vector<32x128xbf16>
      %70 = arith.mulf %23, %69 : vector<32x128xbf16>
      %c4 = arith.constant 4 : index
      %c0_27 = arith.constant 0 : index
      %c0_28 = arith.constant 0 : index
      %71 = vector.load %arg3[%c4, %c0_27, %c0_28] : memref<8x128x64xbf16, #tpu.memory_space<vmem>>, vector<1x128x64xbf16>
      %72 = vector.shape_cast %71 : vector<1x128x64xbf16> to vector<128x64xbf16>
      %cst_29 = arith.constant dense<0.000000e+00> : vector<32x64xf32>
      %73 = tpu.matmul %70, %72, %cst_29 {dimension_numbers = #tpu.dot_dimension_numbers<[1], [0], [0], [1], [0, 0, 1, 1], [], []>} : vector<32x128xbf16>, vector<128x64xbf16>, vector<32x64xf32> -> vector<32x64xf32>
      %74 = arith.addf %65, %73 : vector<32x64xf32>
      %75 = vector.extract_strided_slice %26 {offsets = [0, 5, 0], sizes = [4, 1, 128], strides = [1, 1, 1]} : vector<4x8x128xbf16> to vector<4x1x128xbf16>
      %76 = vector.shape_cast %75 : vector<4x1x128xbf16> to vector<4x1x128xbf16>
      %77 = vector.broadcast %76 : vector<4x1x128xbf16> to vector<4x8x128xbf16>
      %78 = vector.shape_cast %77 : vector<4x8x128xbf16> to vector<32x128xbf16>
      %79 = arith.mulf %23, %78 : vector<32x128xbf16>
      %c5 = arith.constant 5 : index
      %c0_30 = arith.constant 0 : index
      %c0_31 = arith.constant 0 : index
      %80 = vector.load %arg3[%c5, %c0_30, %c0_31] : memref<8x128x64xbf16, #tpu.memory_space<vmem>>, vector<1x128x64xbf16>
      %81 = vector.shape_cast %80 : vector<1x128x64xbf16> to vector<128x64xbf16>
      %cst_32 = arith.constant dense<0.000000e+00> : vector<32x64xf32>
      %82 = tpu.matmul %79, %81, %cst_32 {dimension_numbers = #tpu.dot_dimension_numbers<[1], [0], [0], [1], [0, 0, 1, 1], [], []>} : vector<32x128xbf16>, vector<128x64xbf16>, vector<32x64xf32> -> vector<32x64xf32>
      %83 = arith.addf %74, %82 : vector<32x64xf32>
      %84 = vector.extract_strided_slice %26 {offsets = [0, 6, 0], sizes = [4, 1, 128], strides = [1, 1, 1]} : vector<4x8x128xbf16> to vector<4x1x128xbf16>
      %85 = vector.shape_cast %84 : vector<4x1x128xbf16> to vector<4x1x128xbf16>
      %86 = vector.broadcast %85 : vector<4x1x128xbf16> to vector<4x8x128xbf16>
      %87 = vector.shape_cast %86 : vector<4x8x128xbf16> to vector<32x128xbf16>
      %88 = arith.mulf %23, %87 : vector<32x128xbf16>
      %c6 = arith.constant 6 : index
      %c0_33 = arith.constant 0 : index
      %c0_34 = arith.constant 0 : index
      %89 = vector.load %arg3[%c6, %c0_33, %c0_34] : memref<8x128x64xbf16, #tpu.memory_space<vmem>>, vector<1x128x64xbf16>
      %90 = vector.shape_cast %89 : vector<1x128x64xbf16> to vector<128x64xbf16>
      %cst_35 = arith.constant dense<0.000000e+00> : vector<32x64xf32>
      %91 = tpu.matmul %88, %90, %cst_35 {dimension_numbers = #tpu.dot_dimension_numbers<[1], [0], [0], [1], [0, 0, 1, 1], [], []>} : vector<32x128xbf16>, vector<128x64xbf16>, vector<32x64xf32> -> vector<32x64xf32>
      %92 = arith.addf %83, %91 : vector<32x64xf32>
      %93 = vector.extract_strided_slice %26 {offsets = [0, 7, 0], sizes = [4, 1, 128], strides = [1, 1, 1]} : vector<4x8x128xbf16> to vector<4x1x128xbf16>
      %94 = vector.shape_cast %93 : vector<4x1x128xbf16> to vector<4x1x128xbf16>
      %95 = vector.broadcast %94 : vector<4x1x128xbf16> to vector<4x8x128xbf16>
      %96 = vector.shape_cast %95 : vector<4x8x128xbf16> to vector<32x128xbf16>
      %97 = arith.mulf %23, %96 : vector<32x128xbf16>
      %c7 = arith.constant 7 : index
      %c0_36 = arith.constant 0 : index
      %c0_37 = arith.constant 0 : index
      %98 = vector.load %arg3[%c7, %c0_36, %c0_37] : memref<8x128x64xbf16, #tpu.memory_space<vmem>>, vector<1x128x64xbf16>
      %99 = vector.shape_cast %98 : vector<1x128x64xbf16> to vector<128x64xbf16>
      %cst_38 = arith.constant dense<0.000000e+00> : vector<32x64xf32>
      %100 = tpu.matmul %97, %99, %cst_38 {dimension_numbers = #tpu.dot_dimension_numbers<[1], [0], [0], [1], [0, 0, 1, 1], [], []>} : vector<32x128xbf16>, vector<128x64xbf16>, vector<32x64xf32> -> vector<32x64xf32>
      %101 = arith.addf %92, %100 : vector<32x64xf32>
      %cst_39 = arith.constant dense<0xFF800000> : vector<32xf32>
      %102 = vector.multi_reduction <maximumf>, %101, %cst_39 [1] : vector<32x64xf32> to vector<32xf32>
      %103 = vector.shape_cast %102 : vector<32xf32> to vector<32x1xf32>
      %104 = vector.broadcast %103 : vector<32x1xf32> to vector<32x64xf32>
      %105 = arith.subf %101, %104 : vector<32x64xf32>
      %106 = math.exp %105 : vector<32x64xf32>
      %c0_40 = arith.constant 0 : index
      %c0_41 = arith.constant 0 : index
      %107 = vector.load %arg5[%c0_40, %c0_41] : memref<64x64xf32, #tpu.memory_space<vmem>>, vector<64x64xf32>
      %cst_42 = arith.constant dense<0.000000e+00> : vector<32x64xf32>
      %108 = tpu.matmul %106, %107, %cst_42 {dimension_numbers = #tpu.dot_dimension_numbers<[1], [0], [0], [1], [0, 0, 1, 1], [], []>} : vector<32x64xf32>, vector<64x64xf32>, vector<32x64xf32> -> vector<32x64xf32>
      %109 = arith.divf %106, %108 : vector<32x64xf32>
      %110 = arith.truncf %109 : vector<32x64xf32> to vector<32x64xbf16>
      %cst_43 = arith.constant 0.000000e+00 : f32
      %111 = vector.broadcast %cst_43 : f32 to vector<32x128xf32>
      %c0_44 = arith.constant 0 : index
      %c0_45 = arith.constant 0 : index
      %c0_46 = arith.constant 0 : index
      %112 = vector.load %arg4[%c0_44, %c0_45, %c0_46] : memref<8x64x128xbf16, #tpu.memory_space<vmem>>, vector<1x64x128xbf16>
      %113 = vector.shape_cast %112 : vector<1x64x128xbf16> to vector<64x128xbf16>
      %cst_47 = arith.constant dense<0.000000e+00> : vector<32x128xf32>
      %114 = tpu.matmul %110, %113, %cst_47 {dimension_numbers = #tpu.dot_dimension_numbers<[1], [0], [0], [1], [0, 0, 1, 1], [], []>} : vector<32x64xbf16>, vector<64x128xbf16>, vector<32x128xf32> -> vector<32x128xf32>
      %115 = vector.extract_strided_slice %28 {offsets = [0, 0, 0], sizes = [4, 1, 128], strides = [1, 1, 1]} : vector<4x8x128xf32> to vector<4x1x128xf32>
      %116 = vector.shape_cast %115 : vector<4x1x128xf32> to vector<4x1x128xf32>
      %117 = vector.broadcast %116 : vector<4x1x128xf32> to vector<4x8x128xf32>
      %118 = vector.shape_cast %117 : vector<4x8x128xf32> to vector<32x128xf32>
      %119 = arith.mulf %114, %118 : vector<32x128xf32>
      %120 = arith.addf %111, %119 : vector<32x128xf32>
      %c1_48 = arith.constant 1 : index
      %c0_49 = arith.constant 0 : index
      %c0_50 = arith.constant 0 : index
      %121 = vector.load %arg4[%c1_48, %c0_49, %c0_50] : memref<8x64x128xbf16, #tpu.memory_space<vmem>>, vector<1x64x128xbf16>
      %122 = vector.shape_cast %121 : vector<1x64x128xbf16> to vector<64x128xbf16>
      %cst_51 = arith.constant dense<0.000000e+00> : vector<32x128xf32>
      %123 = tpu.matmul %110, %122, %cst_51 {dimension_numbers = #tpu.dot_dimension_numbers<[1], [0], [0], [1], [0, 0, 1, 1], [], []>} : vector<32x64xbf16>, vector<64x128xbf16>, vector<32x128xf32> -> vector<32x128xf32>
      %124 = vector.extract_strided_slice %28 {offsets = [0, 1, 0], sizes = [4, 1, 128], strides = [1, 1, 1]} : vector<4x8x128xf32> to vector<4x1x128xf32>
      %125 = vector.shape_cast %124 : vector<4x1x128xf32> to vector<4x1x128xf32>
      %126 = vector.broadcast %125 : vector<4x1x128xf32> to vector<4x8x128xf32>
      %127 = vector.shape_cast %126 : vector<4x8x128xf32> to vector<32x128xf32>
      %128 = arith.mulf %123, %127 : vector<32x128xf32>
      %129 = arith.addf %120, %128 : vector<32x128xf32>
      %c2_52 = arith.constant 2 : index
      %c0_53 = arith.constant 0 : index
      %c0_54 = arith.constant 0 : index
      %130 = vector.load %arg4[%c2_52, %c0_53, %c0_54] : memref<8x64x128xbf16, #tpu.memory_space<vmem>>, vector<1x64x128xbf16>
      %131 = vector.shape_cast %130 : vector<1x64x128xbf16> to vector<64x128xbf16>
      %cst_55 = arith.constant dense<0.000000e+00> : vector<32x128xf32>
      %132 = tpu.matmul %110, %131, %cst_55 {dimension_numbers = #tpu.dot_dimension_numbers<[1], [0], [0], [1], [0, 0, 1, 1], [], []>} : vector<32x64xbf16>, vector<64x128xbf16>, vector<32x128xf32> -> vector<32x128xf32>
      %133 = vector.extract_strided_slice %28 {offsets = [0, 2, 0], sizes = [4, 1, 128], strides = [1, 1, 1]} : vector<4x8x128xf32> to vector<4x1x128xf32>
      %134 = vector.shape_cast %133 : vector<4x1x128xf32> to vector<4x1x128xf32>
      %135 = vector.broadcast %134 : vector<4x1x128xf32> to vector<4x8x128xf32>
      %136 = vector.shape_cast %135 : vector<4x8x128xf32> to vector<32x128xf32>
      %137 = arith.mulf %132, %136 : vector<32x128xf32>
      %138 = arith.addf %129, %137 : vector<32x128xf32>
      %c3_56 = arith.constant 3 : index
      %c0_57 = arith.constant 0 : index
      %c0_58 = arith.constant 0 : index
      %139 = vector.load %arg4[%c3_56, %c0_57, %c0_58] : memref<8x64x128xbf16, #tpu.memory_space<vmem>>, vector<1x64x128xbf16>
      %140 = vector.shape_cast %139 : vector<1x64x128xbf16> to vector<64x128xbf16>
      %cst_59 = arith.constant dense<0.000000e+00> : vector<32x128xf32>
      %141 = tpu.matmul %110, %140, %cst_59 {dimension_numbers = #tpu.dot_dimension_numbers<[1], [0], [0], [1], [0, 0, 1, 1], [], []>} : vector<32x64xbf16>, vector<64x128xbf16>, vector<32x128xf32> -> vector<32x128xf32>
      %142 = vector.extract_strided_slice %28 {offsets = [0, 3, 0], sizes = [4, 1, 128], strides = [1, 1, 1]} : vector<4x8x128xf32> to vector<4x1x128xf32>
      %143 = vector.shape_cast %142 : vector<4x1x128xf32> to vector<4x1x128xf32>
      %144 = vector.broadcast %143 : vector<4x1x128xf32> to vector<4x8x128xf32>
      %145 = vector.shape_cast %144 : vector<4x8x128xf32> to vector<32x128xf32>
      %146 = arith.mulf %141, %145 : vector<32x128xf32>
      %147 = arith.addf %138, %146 : vector<32x128xf32>
      %c4_60 = arith.constant 4 : index
      %c0_61 = arith.constant 0 : index
      %c0_62 = arith.constant 0 : index
      %148 = vector.load %arg4[%c4_60, %c0_61, %c0_62] : memref<8x64x128xbf16, #tpu.memory_space<vmem>>, vector<1x64x128xbf16>
      %149 = vector.shape_cast %148 : vector<1x64x128xbf16> to vector<64x128xbf16>
      %cst_63 = arith.constant dense<0.000000e+00> : vector<32x128xf32>
      %150 = tpu.matmul %110, %149, %cst_63 {dimension_numbers = #tpu.dot_dimension_numbers<[1], [0], [0], [1], [0, 0, 1, 1], [], []>} : vector<32x64xbf16>, vector<64x128xbf16>, vector<32x128xf32> -> vector<32x128xf32>
      %151 = vector.extract_strided_slice %28 {offsets = [0, 4, 0], sizes = [4, 1, 128], strides = [1, 1, 1]} : vector<4x8x128xf32> to vector<4x1x128xf32>
      %152 = vector.shape_cast %151 : vector<4x1x128xf32> to vector<4x1x128xf32>
      %153 = vector.broadcast %152 : vector<4x1x128xf32> to vector<4x8x128xf32>
      %154 = vector.shape_cast %153 : vector<4x8x128xf32> to vector<32x128xf32>
      %155 = arith.mulf %150, %154 : vector<32x128xf32>
      %156 = arith.addf %147, %155 : vector<32x128xf32>
      %c5_64 = arith.constant 5 : index
      %c0_65 = arith.constant 0 : index
      %c0_66 = arith.constant 0 : index
      %157 = vector.load %arg4[%c5_64, %c0_65, %c0_66] : memref<8x64x128xbf16, #tpu.memory_space<vmem>>, vector<1x64x128xbf16>
      %158 = vector.shape_cast %157 : vector<1x64x128xbf16> to vector<64x128xbf16>
      %cst_67 = arith.constant dense<0.000000e+00> : vector<32x128xf32>
      %159 = tpu.matmul %110, %158, %cst_67 {dimension_numbers = #tpu.dot_dimension_numbers<[1], [0], [0], [1], [0, 0, 1, 1], [], []>} : vector<32x64xbf16>, vector<64x128xbf16>, vector<32x128xf32> -> vector<32x128xf32>
      %160 = vector.extract_strided_slice %28 {offsets = [0, 5, 0], sizes = [4, 1, 128], strides = [1, 1, 1]} : vector<4x8x128xf32> to vector<4x1x128xf32>
      %161 = vector.shape_cast %160 : vector<4x1x128xf32> to vector<4x1x128xf32>
      %162 = vector.broadcast %161 : vector<4x1x128xf32> to vector<4x8x128xf32>
      %163 = vector.shape_cast %162 : vector<4x8x128xf32> to vector<32x128xf32>
      %164 = arith.mulf %159, %163 : vector<32x128xf32>
      %165 = arith.addf %156, %164 : vector<32x128xf32>
      %c6_68 = arith.constant 6 : index
      %c0_69 = arith.constant 0 : index
      %c0_70 = arith.constant 0 : index
      %166 = vector.load %arg4[%c6_68, %c0_69, %c0_70] : memref<8x64x128xbf16, #tpu.memory_space<vmem>>, vector<1x64x128xbf16>
      %167 = vector.shape_cast %166 : vector<1x64x128xbf16> to vector<64x128xbf16>
      %cst_71 = arith.constant dense<0.000000e+00> : vector<32x128xf32>
      %168 = tpu.matmul %110, %167, %cst_71 {dimension_numbers = #tpu.dot_dimension_numbers<[1], [0], [0], [1], [0, 0, 1, 1], [], []>} : vector<32x64xbf16>, vector<64x128xbf16>, vector<32x128xf32> -> vector<32x128xf32>
      %169 = vector.extract_strided_slice %28 {offsets = [0, 6, 0], sizes = [4, 1, 128], strides = [1, 1, 1]} : vector<4x8x128xf32> to vector<4x1x128xf32>
      %170 = vector.shape_cast %169 : vector<4x1x128xf32> to vector<4x1x128xf32>
      %171 = vector.broadcast %170 : vector<4x1x128xf32> to vector<4x8x128xf32>
      %172 = vector.shape_cast %171 : vector<4x8x128xf32> to vector<32x128xf32>
      %173 = arith.mulf %168, %172 : vector<32x128xf32>
      %174 = arith.addf %165, %173 : vector<32x128xf32>
      %c7_72 = arith.constant 7 : index
      %c0_73 = arith.constant 0 : index
      %c0_74 = arith.constant 0 : index
      %175 = vector.load %arg4[%c7_72, %c0_73, %c0_74] : memref<8x64x128xbf16, #tpu.memory_space<vmem>>, vector<1x64x128xbf16>
      %176 = vector.shape_cast %175 : vector<1x64x128xbf16> to vector<64x128xbf16>
      %cst_75 = arith.constant dense<0.000000e+00> : vector<32x128xf32>
      %177 = tpu.matmul %110, %176, %cst_75 {dimension_numbers = #tpu.dot_dimension_numbers<[1], [0], [0], [1], [0, 0, 1, 1], [], []>} : vector<32x64xbf16>, vector<64x128xbf16>, vector<32x128xf32> -> vector<32x128xf32>
      %178 = vector.extract_strided_slice %28 {offsets = [0, 7, 0], sizes = [4, 1, 128], strides = [1, 1, 1]} : vector<4x8x128xf32> to vector<4x1x128xf32>
      %179 = vector.shape_cast %178 : vector<4x1x128xf32> to vector<4x1x128xf32>
      %180 = vector.broadcast %179 : vector<4x1x128xf32> to vector<4x8x128xf32>
      %181 = vector.shape_cast %180 : vector<4x8x128xf32> to vector<32x128xf32>
      %182 = arith.mulf %177, %181 : vector<32x128xf32>
      %183 = arith.addf %174, %182 : vector<32x128xf32>
      %184 = arith.truncf %183 : vector<32x128xf32> to vector<32x128xbf16>
      %185 = arith.index_cast %arg19 : i32 to index
      %c0_76 = arith.constant 0 : index
      %c0_77 = arith.constant 0 : index
      %186 = vector.load %arg8[%185, %c0_76, %c0_77] : memref<4x128x128xbf16, #tpu.memory_space<vmem>>, vector<1x128x128xbf16>
      %187 = vector.shape_cast %186 : vector<1x128x128xbf16> to vector<128x128xbf16>
      %cst_78 = arith.constant dense<0.000000e+00> : vector<32x128xf32>
      %188 = tpu.matmul %184, %187, %cst_78 {dimension_numbers = #tpu.dot_dimension_numbers<[1], [0], [0], [1], [0, 0, 1, 1], [], []>} : vector<32x128xbf16>, vector<128x128xbf16>, vector<32x128xf32> -> vector<32x128xf32>
      %189 = arith.index_cast %arg19 : i32 to index
      %c0_79 = arith.constant 0 : index
      %c0_80 = arith.constant 0 : index
      %190 = vector.load %arg9[%189, %c0_79, %c0_80] : memref<4x1x128xf32, #tpu.memory_space<vmem>>, vector<1x1x128xf32>
      %191 = vector.shape_cast %190 : vector<1x1x128xf32> to vector<1x128xf32>
      %192 = vector.broadcast %191 : vector<1x128xf32> to vector<32x128xf32>
      %193 = arith.addf %188, %192 : vector<32x128xf32>
      %194 = arith.addf %arg20, %193 : vector<32x128xf32>
      %195 = arith.index_cast %arg19 : i32 to index
      %c0_81 = arith.constant 0 : index
      %c0_82 = arith.constant 0 : index
      %196 = vector.load %arg10[%195, %c0_81, %c0_82] : memref<4x1x128xf32, #tpu.memory_space<vmem>>, vector<1x1x128xf32>
      %197 = vector.shape_cast %196 : vector<1x1x128xf32> to vector<1x128xf32>
      %198 = arith.index_cast %arg19 : i32 to index
      %c0_83 = arith.constant 0 : index
      %c0_84 = arith.constant 0 : index
      %199 = vector.load %arg11[%198, %c0_83, %c0_84] : memref<4x1x128xf32, #tpu.memory_space<vmem>>, vector<1x1x128xf32>
      %200 = vector.shape_cast %199 : vector<1x1x128xf32> to vector<1x128xf32>
      %cst_85 = arith.constant dense<0.000000e+00> : vector<32xf32>
      %201 = vector.multi_reduction <add>, %194, %cst_85 [1] : vector<32x128xf32> to vector<32xf32>
      %202 = vector.shape_cast %201 : vector<32xf32> to vector<32x1xf32>
      %cst_86 = arith.constant 1.280000e+02 : f32
      %203 = vector.broadcast %cst_86 : f32 to vector<32x1xf32>
      %204 = arith.divf %202, %203 : vector<32x1xf32>
      %205 = vector.broadcast %204 : vector<32x1xf32> to vector<32x128xf32>
      %206 = arith.subf %194, %205 : vector<32x128xf32>
      %207 = arith.mulf %206, %206 : vector<32x128xf32>
      %cst_87 = arith.constant dense<0.000000e+00> : vector<32xf32>
      %208 = vector.multi_reduction <add>, %207, %cst_87 [1] : vector<32x128xf32> to vector<32xf32>
      %209 = vector.shape_cast %208 : vector<32xf32> to vector<32x1xf32>
      %cst_88 = arith.constant 1.280000e+02 : f32
      %210 = vector.broadcast %cst_88 : f32 to vector<32x1xf32>
      %211 = arith.divf %209, %210 : vector<32x1xf32>
      %212 = vector.broadcast %204 : vector<32x1xf32> to vector<32x128xf32>
      %213 = arith.subf %194, %212 : vector<32x128xf32>
      %cst_89 = arith.constant 9.99999974E-6 : f32
      %214 = vector.broadcast %cst_89 : f32 to vector<32x1xf32>
      %215 = arith.addf %211, %214 : vector<32x1xf32>
      %216 = math.rsqrt %215 : vector<32x1xf32>
      %217 = vector.broadcast %216 : vector<32x1xf32> to vector<32x128xf32>
      %218 = arith.mulf %213, %217 : vector<32x128xf32>
      %219 = vector.broadcast %197 : vector<1x128xf32> to vector<32x128xf32>
      %220 = arith.mulf %218, %219 : vector<32x128xf32>
      %221 = vector.broadcast %200 : vector<1x128xf32> to vector<32x128xf32>
      %222 = arith.addf %220, %221 : vector<32x128xf32>
      %223 = arith.truncf %222 : vector<32x128xf32> to vector<32x128xbf16>
      %224 = arith.index_cast %arg19 : i32 to index
      %c0_90 = arith.constant 0 : index
      %c0_91 = arith.constant 0 : index
      %225 = vector.load %arg12[%224, %c0_90, %c0_91] : memref<4x128x1024xbf16, #tpu.memory_space<vmem>>, vector<1x128x1024xbf16>
      %226 = vector.shape_cast %225 : vector<1x128x1024xbf16> to vector<128x1024xbf16>
      %cst_92 = arith.constant dense<0.000000e+00> : vector<32x1024xf32>
      %227 = tpu.matmul %223, %226, %cst_92 {dimension_numbers = #tpu.dot_dimension_numbers<[1], [0], [0], [1], [0, 0, 1, 1], [], []>} : vector<32x128xbf16>, vector<128x1024xbf16>, vector<32x1024xf32> -> vector<32x1024xf32>
      %228 = arith.index_cast %arg19 : i32 to index
      %c0_93 = arith.constant 0 : index
      %c0_94 = arith.constant 0 : index
      %229 = vector.load %arg13[%228, %c0_93, %c0_94] : memref<4x1x1024xf32, #tpu.memory_space<vmem>>, vector<1x1x1024xf32>
      %230 = vector.shape_cast %229 : vector<1x1x1024xf32> to vector<1x1024xf32>
      %231 = vector.broadcast %230 : vector<1x1024xf32> to vector<32x1024xf32>
      %232 = arith.addf %227, %231 : vector<32x1024xf32>
      %cst_95 = arith.constant 0.000000e+00 : f32
      %233 = vector.broadcast %cst_95 : f32 to vector<32x1024xf32>
      %234 = arith.maximumf %232, %233 : vector<32x1024xf32>
      %235 = arith.truncf %234 : vector<32x1024xf32> to vector<32x1024xbf16>
      %236 = arith.index_cast %arg19 : i32 to index
      %c0_96 = arith.constant 0 : index
      %c0_97 = arith.constant 0 : index
      %237 = vector.load %arg14[%236, %c0_96, %c0_97] : memref<4x1024x128xbf16, #tpu.memory_space<vmem>>, vector<1x1024x128xbf16>
      %238 = vector.shape_cast %237 : vector<1x1024x128xbf16> to vector<1024x128xbf16>
      %cst_98 = arith.constant dense<0.000000e+00> : vector<32x128xf32>
      %239 = tpu.matmul %235, %238, %cst_98 {dimension_numbers = #tpu.dot_dimension_numbers<[1], [0], [0], [1], [0, 0, 1, 1], [], []>} : vector<32x1024xbf16>, vector<1024x128xbf16>, vector<32x128xf32> -> vector<32x128xf32>
      %240 = arith.index_cast %arg19 : i32 to index
      %c0_99 = arith.constant 0 : index
      %c0_100 = arith.constant 0 : index
      %241 = vector.load %arg15[%240, %c0_99, %c0_100] : memref<4x1x128xf32, #tpu.memory_space<vmem>>, vector<1x1x128xf32>
      %242 = vector.shape_cast %241 : vector<1x1x128xf32> to vector<1x128xf32>
      %243 = vector.broadcast %242 : vector<1x128xf32> to vector<32x128xf32>
      %244 = arith.addf %239, %243 : vector<32x128xf32>
      %245 = arith.addf %222, %244 : vector<32x128xf32>
      %246 = arith.index_cast %arg19 : i32 to index
      %c0_101 = arith.constant 0 : index
      %c0_102 = arith.constant 0 : index
      %247 = vector.load %arg16[%246, %c0_101, %c0_102] : memref<4x1x128xf32, #tpu.memory_space<vmem>>, vector<1x1x128xf32>
      %248 = vector.shape_cast %247 : vector<1x1x128xf32> to vector<1x128xf32>
      %249 = arith.index_cast %arg19 : i32 to index
      %c0_103 = arith.constant 0 : index
      %c0_104 = arith.constant 0 : index
      %250 = vector.load %arg17[%249, %c0_103, %c0_104] : memref<4x1x128xf32, #tpu.memory_space<vmem>>, vector<1x1x128xf32>
      %251 = vector.shape_cast %250 : vector<1x1x128xf32> to vector<1x128xf32>
      %cst_105 = arith.constant dense<0.000000e+00> : vector<32xf32>
      %252 = vector.multi_reduction <add>, %245, %cst_105 [1] : vector<32x128xf32> to vector<32xf32>
      %253 = vector.shape_cast %252 : vector<32xf32> to vector<32x1xf32>
      %cst_106 = arith.constant 1.280000e+02 : f32
      %254 = vector.broadcast %cst_106 : f32 to vector<32x1xf32>
      %255 = arith.divf %253, %254 : vector<32x1xf32>
      %256 = vector.broadcast %255 : vector<32x1xf32> to vector<32x128xf32>
      %257 = arith.subf %245, %256 : vector<32x128xf32>
      %258 = arith.mulf %257, %257 : vector<32x128xf32>
      %cst_107 = arith.constant dense<0.000000e+00> : vector<32xf32>
      %259 = vector.multi_reduction <add>, %258, %cst_107 [1] : vector<32x128xf32> to vector<32xf32>
      %260 = vector.shape_cast %259 : vector<32xf32> to vector<32x1xf32>
      %cst_108 = arith.constant 1.280000e+02 : f32
      %261 = vector.broadcast %cst_108 : f32 to vector<32x1xf32>
      %262 = arith.divf %260, %261 : vector<32x1xf32>
      %263 = vector.broadcast %255 : vector<32x1xf32> to vector<32x128xf32>
      %264 = arith.subf %245, %263 : vector<32x128xf32>
      %cst_109 = arith.constant 9.99999974E-6 : f32
      %265 = vector.broadcast %cst_109 : f32 to vector<32x1xf32>
      %266 = arith.addf %262, %265 : vector<32x1xf32>
      %267 = math.rsqrt %266 : vector<32x1xf32>
      %268 = vector.broadcast %267 : vector<32x1xf32> to vector<32x128xf32>
      %269 = arith.mulf %264, %268 : vector<32x128xf32>
      %270 = vector.broadcast %248 : vector<1x128xf32> to vector<32x128xf32>
      %271 = arith.mulf %269, %270 : vector<32x128xf32>
      %272 = vector.broadcast %251 : vector<1x128xf32> to vector<32x128xf32>
      %273 = arith.addf %271, %272 : vector<32x128xf32>
      scf.yield %273 : vector<32x128xf32>
    }
    %c4_i32_4 = arith.constant 4 : i32
    %8 = vector.shape_cast %7 : vector<32x128xf32> to vector<4x8x128xf32>
    %c0_5 = arith.constant 0 : index
    %c0_6 = arith.constant 0 : index
    %c0_7 = arith.constant 0 : index
    %9 = vector.load %arg18[%c0_5, %c0_6, %c0_7] : memref<4x8x128xf32, #tpu.memory_space<vmem>>, vector<4x8x128xf32>
    tpu.vector_store %arg18[%c0_5, %c0_6, %c0_7], %8 {strides = array<i32>} : memref<4x8x128xf32, #tpu.memory_space<vmem>>, vector<4x8x128xf32>,
    return
  }
  func.func @transform_0(%arg0: i32) -> (i32, i32, i32) {
    %c0_i32 = arith.constant 0 : i32
    %c0_i32_0 = arith.constant 0 : i32
    %c0_i32_1 = arith.constant 0 : i32
    return %arg0, %c0_i32, %c0_i32_0 : i32, i32, i32
  }
  func.func @transform_1(%arg0: i32) -> (i32, i32) {
    %c0_i32 = arith.constant 0 : i32
    %c0_i32_0 = arith.constant 0 : i32
    %c0_i32_1 = arith.constant 0 : i32
    return %c0_i32, %c0_i32_0 : i32, i32
  }
  func.func @transform_2(%arg0: i32) -> (i32, i32, i32) {
    %c0_i32 = arith.constant 0 : i32
    %c0_i32_0 = arith.constant 0 : i32
    %c0_i32_1 = arith.constant 0 : i32
    %c0_i32_2 = arith.constant 0 : i32
    return %c0_i32, %c0_i32_0, %c0_i32_1 : i32, i32, i32
  }
  func.func @transform_3(%arg0: i32) -> (i32, i32, i32) {
    %c0_i32 = arith.constant 0 : i32
    %c0_i32_0 = arith.constant 0 : i32
    %c0_i32_1 = arith.constant 0 : i32
    %c0_i32_2 = arith.constant 0 : i32
    return %c0_i32, %c0_i32_0, %c0_i32_1 : i32, i32, i32
  }
  func.func @transform_4(%arg0: i32) -> (i32, i32) {
    %c0_i32 = arith.constant 0 : i32
    %c0_i32_0 = arith.constant 0 : i32
    %c0_i32_1 = arith.constant 0 : i32
    return %c0_i32, %c0_i32_0 : i32, i32
  }
  func.func @transform_5(%arg0: i32) -> (i32, i32, i32) {
    %c0_i32 = arith.constant 0 : i32
    %c0_i32_0 = arith.constant 0 : i32
    %c0_i32_1 = arith.constant 0 : i32
    %c0_i32_2 = arith.constant 0 : i32
    return %c0_i32, %c0_i32_0, %c0_i32_1 : i32, i32, i32
  }
  func.func @transform_6(%arg0: i32) -> (i32, i32, i32) {
    %c0_i32 = arith.constant 0 : i32
    %c0_i32_0 = arith.constant 0 : i32
    %c0_i32_1 = arith.constant 0 : i32
    %c0_i32_2 = arith.constant 0 : i32
    return %c0_i32, %c0_i32_0, %c0_i32_1 : i32, i32, i32
  }
  func.func @transform_7(%arg0: i32) -> (i32, i32, i32) {
    %c0_i32 = arith.constant 0 : i32
    %c0_i32_0 = arith.constant 0 : i32
    %c0_i32_1 = arith.constant 0 : i32
    %c0_i32_2 = arith.constant 0 : i32
    return %c0_i32, %c0_i32_0, %c0_i32_1 : i32, i32, i32
  }
  func.func @transform_8(%arg0: i32) -> (i32, i32, i32) {
    %c0_i32 = arith.constant 0 : i32
    %c0_i32_0 = arith.constant 0 : i32
    %c0_i32_1 = arith.constant 0 : i32
    %c0_i32_2 = arith.constant 0 : i32
    return %c0_i32, %c0_i32_0, %c0_i32_1 : i32, i32, i32
  }
  func.func @transform_9(%arg0: i32) -> (i32, i32, i32) {
    %c0_i32 = arith.constant 0 : i32
    %c0_i32_0 = arith.constant 0 : i32
    %c0_i32_1 = arith.constant 0 : i32
    %c0_i32_2 = arith.constant 0 : i32
    return %c0_i32, %c0_i32_0, %c0_i32_1 : i32, i32, i32
  }
  func.func @transform_10(%arg0: i32) -> (i32, i32, i32) {
    %c0_i32 = arith.constant 0 : i32
    %c0_i32_0 = arith.constant 0 : i32
    %c0_i32_1 = arith.constant 0 : i32
    %c0_i32_2 = arith.constant 0 : i32
    return %c0_i32, %c0_i32_0, %c0_i32_1 : i32, i32, i32
  }
  func.func @transform_11(%arg0: i32) -> (i32, i32, i32) {
    %c0_i32 = arith.constant 0 : i32
    %c0_i32_0 = arith.constant 0 : i32
    %c0_i32_1 = arith.constant 0 : i32
    %c0_i32_2 = arith.constant 0 : i32
    return %c0_i32, %c0_i32_0, %c0_i32_1 : i32, i32, i32
  }
  func.func @transform_12(%arg0: i32) -> (i32, i32, i32) {
    %c0_i32 = arith.constant 0 : i32
    %c0_i32_0 = arith.constant 0 : i32
    %c0_i32_1 = arith.constant 0 : i32
    %c0_i32_2 = arith.constant 0 : i32
    return %c0_i32, %c0_i32_0, %c0_i32_1 : i32, i32, i32
  }
  func.func @transform_13(%arg0: i32) -> (i32, i32, i32) {
    %c0_i32 = arith.constant 0 : i32
    %c0_i32_0 = arith.constant 0 : i32
    %c0_i32_1 = arith.constant 0 : i32
    %c0_i32_2 = arith.constant 0 : i32
    return %c0_i32, %c0_i32_0, %c0_i32_1 : i32, i32, i32
  }
  func.func @transform_14(%arg0: i32) -> (i32, i32, i32) {
    %c0_i32 = arith.constant 0 : i32
    %c0_i32_0 = arith.constant 0 : i32
    %c0_i32_1 = arith.constant 0 : i32
    %c0_i32_2 = arith.constant 0 : i32
    return %c0_i32, %c0_i32_0, %c0_i32_1 : i32, i32, i32
  }
  func.func @transform_15(%arg0: i32) -> (i32, i32, i32) {
    %c0_i32 = arith.constant 0 : i32
    %c0_i32_0 = arith.constant 0 : i32
    %c0_i32_1 = arith.constant 0 : i32
    %c0_i32_2 = arith.constant 0 : i32
    return %c0_i32, %c0_i32_0, %c0_i32_1 : i32, i32, i32
  }
  func.func @transform_16(%arg0: i32) -> (i32, i32, i32) {
    %c0_i32 = arith.constant 0 : i32
    %c0_i32_0 = arith.constant 0 : i32
    %c0_i32_1 = arith.constant 0 : i32
    %c0_i32_2 = arith.constant 0 : i32
    return %c0_i32, %c0_i32_0, %c0_i32_1 : i32, i32, i32
  }
  func.func @transform_17(%arg0: i32) -> (i32, i32, i32) {
    %c0_i32 = arith.constant 0 : i32
    %c0_i32_0 = arith.constant 0 : i32
    %c0_i32_1 = arith.constant 0 : i32
    return %arg0, %c0_i32, %c0_i32_0 : i32, i32, i32
  }
}

</mosaic_0001>

<llo_original>
// kernel: _lambda_.1
$region0: #{_lambda_.1}
  #allocation0 [shape = 'u32[]', space=smem, size = 0x4, offset = 0x4, fixed_abs, tag = 'smem constant byte address 0x4 - core index']
  #allocation1 [shape = 'u32[144,128]{1,0:T(1,128)}', space=vmem, size = 0x12000, scoped, tag = 'internal scratch']
  %s0 = inlined_call_operand.vmem [shape: f32[4,8,128], index: 0, kind: input, shape index: {}]
  %s1 = inlined_call_operand.vmem [shape: f32[8,128], index: 1, kind: input, shape index: {}]
  %s2 = inlined_call_operand.vmem [shape: bf16[8,128,64], index: 2, kind: input, shape index: {}]
  %s3 = inlined_call_operand.vmem [shape: bf16[8,64,128], index: 3, kind: input, shape index: {}]
  %s4 = inlined_call_operand.vmem [shape: f32[64,64], index: 4, kind: input, shape index: {}]
  %s5 = inlined_call_operand.vmem [shape: bf16[4,128,384], index: 5, kind: input, shape index: {}]
  %s6 = inlined_call_operand.vmem [shape: f32[4,1,384], index: 6, kind: input, shape index: {}]
  %s7 = inlined_call_operand.vmem [shape: bf16[4,128,128], index: 7, kind: input, shape index: {}]
  %s8 = inlined_call_operand.vmem [shape: f32[4,1,128], index: 8, kind: input, shape index: {}]
  %s9 = inlined_call_operand.vmem [shape: f32[4,1,128], index: 9, kind: input, shape index: {}, may-alias: {9,15}]
  %s10 = inlined_call_operand.vmem [shape: f32[4,1,128], index: 10, kind: input, shape index: {}, may-alias: {10,14,16}]
  %s11 = inlined_call_operand.vmem [shape: bf16[4,128,1024], index: 11, kind: input, shape index: {}]
  %s12 = inlined_call_operand.vmem [shape: f32[4,1,1024], index: 12, kind: input, shape index: {}]
  %s13 = inlined_call_operand.vmem [shape: bf16[4,1024,128], index: 13, kind: input, shape index: {}]
  %s14 = inlined_call_operand.vmem [shape: f32[4,1,128], index: 14, kind: input, shape index: {}, may-alias: {10,14,16}]
  %s15 = inlined_call_operand.vmem [shape: f32[4,1,128], index: 15, kind: input, shape index: {}, may-alias: {9,15}]
  %s16 = inlined_call_operand.vmem [shape: f32[4,1,128], index: 16, kind: input, shape index: {}, may-alias: {10,14,16}]
  %s17 = inlined_call_operand.vmem [shape: f32[4,8,128], index: 17, kind: output, shape index: {}]
  %s18 = sld [smem:[#allocation0]]
  $region85: #{_lambda_.1} parent=0
    _
  %s20 = ssub.s32 1, %s18
  %s21 = scalar_select 0, %s20, %s18
  // Predicated region
  $region2: #{_lambda_.1} parent=0 // pred_check
    _
  $region3: #{_lambda_.1} parent=0 // pred_check_branch
    %23 = sbr.rel (0) target = $region5
  $region4: #{_lambda_.1} parent=0 // pred_region
    _
  $region5: #{_lambda_.1} parent=0 // pred_fallthru
    _
  // Predicated region
  $region6: #{_lambda_.1} parent=0 // pred_check
    _
  $region7: #{_lambda_.1} parent=0 // pred_check_branch
    %25 = sbr.rel (0) target = $region9
  $region8: #{_lambda_.1} parent=0 // pred_region
    _
  $region9: #{_lambda_.1} parent=0 // pred_fallthru
    _
  // Predicated region
  $region10: #{_lambda_.1} parent=0 // pred_check
    _
  $region11: #{_lambda_.1} parent=0 // pred_check_branch
    %27 = sbr.rel (0) target = $region13
  $region12: #{_lambda_.1} parent=0 // pred_region
    _
  $region13: #{_lambda_.1} parent=0 // pred_fallthru
    _
  // Predicated region
  $region14: #{_lambda_.1} parent=0 // pred_check
    _
  $region15: #{_lambda_.1} parent=0 // pred_check_branch
    %29 = sbr.rel (0) target = $region17
  $region16: #{_lambda_.1} parent=0 // pred_region
    _
  $region17: #{_lambda_.1} parent=0 // pred_fallthru
    _
  // Predicated region
  $region18: #{_lambda_.1} parent=0 // pred_check
    _
  $region19: #{_lambda_.1} parent=0 // pred_check_branch
    %31 = sbr.rel (0) target = $region21
  $region20: #{_lambda_.1} parent=0 // pred_region
    _
  $region21: #{_lambda_.1} parent=0 // pred_fallthru
    _
  // Predicated region
  $region22: #{_lambda_.1} parent=0 // pred_check
    _
  $region23: #{_lambda_.1} parent=0 // pred_check_branch
    %33 = sbr.rel (0) target = $region25
  $region24: #{_lambda_.1} parent=0 // pred_region
    _
  $region25: #{_lambda_.1} parent=0 // pred_fallthru
    _
  // Predicated region
  $region26: #{_lambda_.1} parent=0 // pred_check
    _
  $region27: #{_lambda_.1} parent=0 // pred_check_branch
    %35 = sbr.rel (0) target = $region29
  $region28: #{_lambda_.1} parent=0 // pred_region
    _
  $region29: #{_lambda_.1} parent=0 // pred_fallthru
    _
  // Predicated region
  $region30: #{_lambda_.1} parent=0 // pred_check
    _
  $region31: #{_lambda_.1} parent=0 // pred_check_branch
    %37 = sbr.rel (0) target = $region33
  $region32: #{_lambda_.1} parent=0 // pred_region
    _
  $region33: #{_lambda_.1} parent=0 // pred_fallthru
    _
  // Predicated region
  $region34: #{_lambda_.1} parent=0 // pred_check
    _
  $region35: #{_lambda_.1} parent=0 // pred_check_branch
    %39 = sbr.rel (0) target = $region37
  $region36: #{_lambda_.1} parent=0 // pred_region
    _
  $region37: #{_lambda_.1} parent=0 // pred_fallthru
    _
  // Predicated region
  $region38: #{_lambda_.1} parent=0 // pred_check
    _
  $region39: #{_lambda_.1} parent=0 // pred_check_branch
    %41 = sbr.rel (0) target = $region41
  $region40: #{_lambda_.1} parent=0 // pred_region
    _
  $region41: #{_lambda_.1} parent=0 // pred_fallthru
    _
  // Predicated region
  $region42: #{_lambda_.1} parent=0 // pred_check
    _
  $region43: #{_lambda_.1} parent=0 // pred_check_branch
    %43 = sbr.rel (0) target = $region45
  $region44: #{_lambda_.1} parent=0 // pred_region
    _
  $region45: #{_lambda_.1} parent=0 // pred_fallthru
    _
  // Predicated region
  $region46: #{_lambda_.1} parent=0 // pred_check
    _
  $region47: #{_lambda_.1} parent=0 // pred_check_branch
    %45 = sbr.rel (0) target = $region49
  $region48: #{_lambda_.1} parent=0 // pred_region
    _
  $region49: #{_lambda_.1} parent=0 // pred_fallthru
    _
  // Predicated region
  $region50: #{_lambda_.1} parent=0 // pred_check
    _
  $region51: #{_lambda_.1} parent=0 // pred_check_branch
    %47 = sbr.rel (0) target = $region53
  $region52: #{_lambda_.1} parent=0 // pred_region
    _
  $region53: #{_lambda_.1} parent=0 // pred_fallthru
    _
  // Predicated region
  $region54: #{_lambda_.1} parent=0 // pred_check
    _
  $region55: #{_lambda_.1} parent=0 // pred_check_branch
    %49 = sbr.rel (0) target = $region57
  $region56: #{_lambda_.1} parent=0 // pred_region
    _
  $region57: #{_lambda_.1} parent=0 // pred_fallthru
    _
  // Predicated region
  $region58: #{_lambda_.1} parent=0 // pred_check
    _
  $region59: #{_lambda_.1} parent=0 // pred_check_branch
    %51 = sbr.rel (0) target = $region61
  $region60: #{_lambda_.1} parent=0 // pred_region
    _
  $region61: #{_lambda_.1} parent=0 // pred_fallthru
    _
  // Predicated region
  $region62: #{_lambda_.1} parent=0 // pred_check
    _
  $region63: #{_lambda_.1} parent=0 // pred_check_branch
    %53 = sbr.rel (0) target = $region65
  $region64: #{_lambda_.1} parent=0 // pred_region
    _
  $region65: #{_lambda_.1} parent=0 // pred_fallthru
    _
  // Predicated region
  $region66: #{_lambda_.1} parent=0 // pred_check
    _
  $region67: #{_lambda_.1} parent=0 // pred_check_branch
    %55 = sbr.rel (0) target = $region69
  $region68: #{_lambda_.1} parent=0 // pred_region
    _
  $region69: #{_lambda_.1} parent=0 // pred_fallthru
    _
  %v57 = vld [vmem:[%s0] sm:$0xff]
  %v58 = vld [vmem:[%s0 + $0x8] sm:$0xff]
  %v59 = vld [vmem:[%s0 + $0x10] sm:$0xff]
  %v60 = vld [vmem:[%s0 + $0x18] sm:$0xff]
  %v61 = vld [vmem:[%s1] sm:$0xff]
  %v62 = vadd.f32 %v57, %v61
  %v63 = vadd.f32 %v58, %v61
  %v64 = vadd.f32 %v59, %v61
  %v65 = vadd.f32 %v60, %v61
  loop: start=0, step=1, limit=4
  $region70: #{_lambda_.1} parent=0 // loop_pre_header
    _
  $region71: #{_lambda_.1} parent=0 // loop_header
    %s67 = sphi 0, %s71
    %p68 = scmp.ge.s32.totalorder %s67, 4
    %v72 = vphi %v62, %v4250
    %v73 = vphi %v63, %v4251
    %v74 = vphi %v64, %v4252
    %v75 = vphi %v65, %v4253
  $region72: #{_lambda_.1} parent=0 // loop_header_branch
    %70 = sbr.rel (%p68) target = $region76
  $region73: #{_lambda_.1} parent=0 // loop_body
    %v76 = vpack.c.bf16 %v73, %v72
    %v77 = vpack.c.bf16 %v75, %v74
    %s78 = smul.u32 %s67, 48
    %s79 = smul.addr %s78, 4
    %s80 = scalar_lea.vmem %s5, %s79
    %v81 = vld [vmem:[%s80] sm:$0xff]
    %v82 = vld [vmem:[%s80 + $0x8] sm:$0xf]
    %v83 = vld [vmem:[%s80 + $0xc] sm:$0xff]
    %v84 = vld [vmem:[%s80 + $0x14] sm:$0xf]
    %v85 = vld [vmem:[%s80 + $0x18] sm:$0xff]
    %v86 = vld [vmem:[%s80 + $0x20] sm:$0xf]
    %v87 = vld [vmem:[%s80 + $0x24] sm:$0xff]
    %v88 = vld [vmem:[%s80 + $0x2c] sm:$0xf]
    %v89 = vld [vmem:[%s80 + $0x30] sm:$0xff]
    %v90 = vld [vmem:[%s80 + $0x38] sm:$0xf]
    %v91 = vld [vmem:[%s80 + $0x3c] sm:$0xff]
    %v92 = vld [vmem:[%s80 + $0x44] sm:$0xf]
    %v93 = vld [vmem:[%s80 + $0x48] sm:$0xff]
    %v94 = vld [vmem:[%s80 + $0x50] sm:$0xf]
    %v95 = vld [vmem:[%s80 + $0x54] sm:$0xff]
    %v96 = vld [vmem:[%s80 + $0x5c] sm:$0xf]
    %v97 = vld [vmem:[%s80 + $0x60] sm:$0xff]
    %v98 = vld [vmem:[%s80 + $0x68] sm:$0xf]
    %v99 = vld [vmem:[%s80 + $0x6c] sm:$0xff]
    %v100 = vld [vmem:[%s80 + $0x74] sm:$0xf]
    %v101 = vld [vmem:[%s80 + $0x78] sm:$0xff]
    %v102 = vld [vmem:[%s80 + $0x80] sm:$0xf]
    %v103 = vld [vmem:[%s80 + $0x84] sm:$0xff]
    %v104 = vld [vmem:[%s80 + $0x8c] sm:$0xf]
    %v105 = vld [vmem:[%s80 + $0x90] sm:$0xff]
    %v106 = vld [vmem:[%s80 + $0x98] sm:$0xf]
    %v107 = vld [vmem:[%s80 + $0x9c] sm:$0xff]
    %v108 = vld [vmem:[%s80 + $0xa4] sm:$0xf]
    %v109 = vld [vmem:[%s80 + $0xa8] sm:$0xff]
    %v110 = vld [vmem:[%s80 + $0xb0] sm:$0xf]
    %v111 = vld [vmem:[%s80 + $0xb4] sm:$0xff]
    %v112 = vld [vmem:[%s80 + $0xbc] sm:$0xf]
    %s113 = smul.u32 %s67, 3
    %s114 = scalar_lea.vmem %s6, %s113
    %v115 = vld [vmem:[%s114] sm:$0x7]
    %v117 = vlaneseq
    %v118 = vshrl.u32 %v117, 7
    %v119 = vsub.s32 0, %v118
    %v120 = vrot.slane %v115, %v119
    %v121 = vlaneseq
    %v122 = vshrl.u32 %v121, 7
    %v123 = vsub.s32 1, %v122
    %v124 = vrot.slane %v115, %v123
    %v125 = vlaneseq
    %v126 = vshrl.u32 %v125, 7
    %v127 = vsub.s32 2, %v126
    %v128 = vrot.slane %v115, %v127
    %v164 = vunpack.c.l.b16 %v81
    %v165 = vunpack.c.h.b16 %v81
    %v166 = vunpack.c.l.b16 %v82
    %v167 = vunpack.c.l.b16 %v83
    %v168 = vunpack.c.h.b16 %v83
    %v169 = vunpack.c.l.b16 %v84
    %v170 = vunpack.c.l.b16 %v85
    %v171 = vunpack.c.h.b16 %v85
    %v172 = vunpack.c.l.b16 %v86
    %v173 = vunpack.c.l.b16 %v87
    %v174 = vunpack.c.h.b16 %v87
    %v175 = vunpack.c.l.b16 %v88
    %v176 = vunpack.c.l.b16 %v89
    %v177 = vunpack.c.h.b16 %v89
    %v178 = vunpack.c.l.b16 %v90
    %v179 = vunpack.c.l.b16 %v91
    %v180 = vunpack.c.h.b16 %v91
    %v181 = vunpack.c.l.b16 %v92
    %v182 = vunpack.c.l.b16 %v93
    %v183 = vunpack.c.h.b16 %v93
    %v184 = vunpack.c.l.b16 %v94
    %v185 = vunpack.c.l.b16 %v95
    %v186 = vunpack.c.h.b16 %v95
    %v187 = vunpack.c.l.b16 %v96
    %v188 = vunpack.c.l.b16 %v97
    %v189 = vunpack.c.h.b16 %v97
    %v190 = vunpack.c.l.b16 %v98
    %v191 = vunpack.c.l.b16 %v99
    %v192 = vunpack.c.h.b16 %v99
    %v193 = vunpack.c.l.b16 %v100
    %v194 = vunpack.c.l.b16 %v101
    %v195 = vunpack.c.h.b16 %v101
    %v196 = vunpack.c.l.b16 %v102
    %v197 = vunpack.c.l.b16 %v103
    %v198 = vunpack.c.h.b16 %v103
    %v199 = vunpack.c.l.b16 %v104
    %v200 = vunpack.c.l.b16 %v105
    %v201 = vunpack.c.h.b16 %v105
    %v202 = vunpack.c.l.b16 %v106
    %v203 = vunpack.c.l.b16 %v107
    %v204 = vunpack.c.h.b16 %v107
    %v205 = vunpack.c.l.b16 %v108
    %v206 = vunpack.c.l.b16 %v109
    %v207 = vunpack.c.h.b16 %v109
    %v208 = vunpack.c.l.b16 %v110
    %v209 = vunpack.c.l.b16 %v111
    %v210 = vunpack.c.h.b16 %v111
    %v211 = vunpack.c.l.b16 %v112
    %v212 = vpack.c.b16 %v167, %v164
    %v213 = vpack.c.b16 %v168, %v165
    %v214 = vpack.c.b16 %v169, %v166
    %v215 = vpack.c.b16 %v173, %v170
    %v216 = vpack.c.b16 %v174, %v171
    %v217 = vpack.c.b16 %v175, %v172
    %v218 = vpack.c.b16 %v179, %v176
    %v219 = vpack.c.b16 %v180, %v177
    %v220 = vpack.c.b16 %v181, %v178
    %v221 = vpack.c.b16 %v185, %v182
    %v222 = vpack.c.b16 %v186, %v183
    %v223 = vpack.c.b16 %v187, %v184
    %v224 = vpack.c.b16 %v191, %v188
    %v225 = vpack.c.b16 %v192, %v189
    %v226 = vpack.c.b16 %v193, %v190
    %v227 = vpack.c.b16 %v197, %v194
    %v228 = vpack.c.b16 %v198, %v195
    %v229 = vpack.c.b16 %v199, %v196
    %v230 = vpack.c.b16 %v203, %v200
    %v231 = vpack.c.b16 %v204, %v201
    %v232 = vpack.c.b16 %v205, %v202
    %v233 = vpack.c.b16 %v209, %v206
    %v234 = vpack.c.b16 %v210, %v207
    %v235 = vpack.c.b16 %v211, %v208
    %260 = vmatprep.subr.bf16.mxu0 %v213
    %261 = vmatpush1.bf16.msra.mxu0 %v212
    %262 = vmatprep.subr.bf16.mxu0 %v216
    %263 = vmatpush1.bf16.msra.mxu0 %v215
    %264 = vmatprep.subr.bf16.mxu0 %v219
    %265 = vmatpush1.bf16.msra.mxu0 %v218
    %266 = vmatprep.subr.bf16.mxu0 %v222
    %267 = vmatpush1.bf16.msra.mxu0 %v221
    %268 = vmatprep.subr.bf16.mxu0 %v225
    %269 = vmatpush1.bf16.msra.mxu0 %v224
    %270 = vmatprep.subr.bf16.mxu0 %v228
    %271 = vmatpush1.bf16.msra.mxu0 %v227
    %272 = vmatprep.subr.bf16.mxu0 %v231
    %273 = vmatpush1.bf16.msra.mxu0 %v230
    %274 = vmatprep.subr.bf16.mxu0 %v234
    %275 = vmatpush1.bf16.msra.mxu0 %v233
    %276 = vmatprep.subr.bf16.mxu0 0
    %277 = vmatpush1.bf16.msra.mxu0 0
    %278 = vmatprep.subr.bf16.mxu0 0
    %279 = vmatpush1.bf16.msra.mxu0 0
    %280 = vmatprep.subr.bf16.mxu0 0
    %281 = vmatpush1.bf16.msra.mxu0 0
    %282 = vmatprep.subr.bf16.mxu0 0
    %283 = vmatpush1.bf16.msra.mxu0 0
    %284 = vmatprep.subr.bf16.mxu0 0
    %285 = vmatpush1.bf16.msra.mxu0 0
    %286 = vmatprep.subr.bf16.mxu0 0
    %287 = vmatpush1.bf16.msra.mxu0 0
    %288 = vmatprep.subr.bf16.mxu0 0
    %289 = vmatpush1.bf16.msra.mxu0 0
    %290 = vmatprep.subr.bf16.mxu0 0
    %291 = vmatpush1.bf16.msra.mxu0 0
    %292 = vmatprep.mubr.bf16.mxu0 0
    %293 = vmatmul.mubr.bf16.gmra.mrb[0].mxu0 %v76
    %v294 = vpop.f32.mrb[0].mxu0
    %v295 = vadd.f32 %v120, %v294
    %v296 = vpop.f32.mrb[0].mxu0
    %v297 = vadd.f32 %v124, %v296
    %v298 = vpop.f32.mrb[0].mxu0
    %v299 = vadd.f32 %v120, %v298
    %v300 = vpop.f32.mrb[0].mxu0
    %v301 = vadd.f32 %v124, %v300
    %302 = vmatprep.mubr.bf16.mxu0 0
    %303 = vmatmul.mubr.bf16.gmra.mrb[0].mxu0 %v77
    %v304 = vpop.f32.mrb[0].mxu0
    %v305 = vadd.f32 %v120, %v304
    %v306 = vpop.f32.mrb[0].mxu0
    %v307 = vadd.f32 %v124, %v306
    %v308 = vpop.f32.mrb[0].mxu0
    %v309 = vadd.f32 %v120, %v308
    %v310 = vpop.f32.mrb[0].mxu0
    %v311 = vadd.f32 %v124, %v310
    %312 = vdwg.mxu0
    %313 = vmatprep.subr.bf16.mxu0 0
    %314 = vmatpush1.bf16.msra.mxu0 %v214
    %315 = vmatprep.subr.bf16.mxu0 0
    %316 = vmatpush1.bf16.msra.mxu0 %v217
    %317 = vmatprep.subr.bf16.mxu0 0
    %318 = vmatpush1.bf16.msra.mxu0 %v220
    %319 = vmatprep.subr.bf16.mxu0 0
    %320 = vmatpush1.bf16.msra.mxu0 %v223
    %321 = vmatprep.subr.bf16.mxu0 0
    %322 = vmatpush1.bf16.msra.mxu0 %v226
    %323 = vmatprep.subr.bf16.mxu0 0
    %324 = vmatpush1.bf16.msra.mxu0 %v229
    %325 = vmatprep.subr.bf16.mxu0 0
    %326 = vmatpush1.bf16.msra.mxu0 %v232
    %327 = vmatprep.subr.bf16.mxu0 0
    %328 = vmatpush1.bf16.msra.mxu0 %v235
    %329 = vmatprep.subr.bf16.mxu0 0
    %330 = vmatpush1.bf16.msra.mxu0 0
    %331 = vmatprep.subr.bf16.mxu0 0
    %332 = vmatpush1.bf16.msra.mxu0 0
    %333 = vmatprep.subr.bf16.mxu0 0
    %334 = vmatpush1.bf16.msra.mxu0 0
    %335 = vmatprep.subr.bf16.mxu0 0
    %336 = vmatpush1.bf16.msra.mxu0 0
    %337 = vmatprep.subr.bf16.mxu0 0
    %338 = vmatpush1.bf16.msra.mxu0 0
    %339 = vmatprep.subr.bf16.mxu0 0
    %340 = vmatpush1.bf16.msra.mxu0 0
    %341 = vmatprep.subr.bf16.mxu0 0
    %342 = vmatpush1.bf16.msra.mxu0 0
    %343 = vmatprep.subr.bf16.mxu0 0
    %344 = vmatpush1.bf16.msra.mxu0 0
    %345 = vmatprep.mubr.bf16.mxu0 0
    %346 = vmatmul.mubr.bf16.gmra.mrb[0].mxu0 %v76
    %v347 = vpop.f32.mrb[0].mxu0
    %v348 = vadd.f32 %v128, %v347
    %v349 = vpop.f32.mrb[0].mxu0
    %v350 = vpop.f32.mrb[0].mxu0
    %v351 = vadd.f32 %v128, %v350
    %v352 = vpop.f32.mrb[0].mxu0
    %353 = vmatprep.mubr.bf16.mxu0 0
    %354 = vmatmul.mubr.bf16.gmra.mrb[0].mxu0 %v77
    %v355 = vpop.f32.mrb[0].mxu0
    %v356 = vadd.f32 %v128, %v355
    %v357 = vpop.f32.mrb[0].mxu0
    %v358 = vpop.f32.mrb[0].mxu0
    %v359 = vadd.f32 %v128, %v358
    %v360 = vpop.f32.mrb[0].mxu0
    %361 = vdwg.mxu0
    %v362 = vmul.f32 %v295, 0.25
    %v363 = vmul.f32 %v299, 0.25
    %v364 = vmul.f32 %v305, 0.25
    %v365 = vmul.f32 %v309, 0.25
    %v366 = vpack.c.bf16 %v363, %v362
    %v367 = vpack.c.bf16 %v365, %v364
    %v368 = vpack.c.bf16 %v301, %v297
    %v369 = vpack.c.bf16 %v311, %v307
    %v372 = vunpack.c.l.b16 %v368
    %v373 = vunpack.c.h.b16 %v368
    %v374 = vunpack.c.l.b16 %v369
    %v375 = vunpack.c.h.b16 %v369
    %v376 = vpack.c.b16 %v372, %v372
    %v377 = vpack.c.b16 %v373, %v373
    %v378 = vpack.c.b16 %v374, %v374
    %v379 = vpack.c.b16 %v375, %v375
    %v381 = vpack.i.b16 %v376, %v376
    %v383 = vlaneseq
    %v384 = vshrl.u32 %v383, 7
    %v385 = vsub.s32 0, %v384
    %v386 = vrot.slane %v381, %v385
    %v388 = vpack.i.b16 %v377, %v377
    %v390 = vlaneseq
    %v391 = vshrl.u32 %v390, 7
    %v392 = vsub.s32 0, %v391
    %v393 = vrot.slane %v388, %v392
    %v395 = vpack.i.b16 %v378, %v378
    %v397 = vlaneseq
    %v398 = vshrl.u32 %v397, 7
    %v399 = vsub.s32 0, %v398
    %v400 = vrot.slane %v395, %v399
    %v402 = vpack.i.b16 %v379, %v379
    %v404 = vlaneseq
    %v405 = vshrl.u32 %v404, 7
    %v406 = vsub.s32 0, %v405
    %v407 = vrot.slane %v402, %v406
    %v412 = vunpack.c.l.b16 %v386
    %v413 = vunpack.c.l.b16 %v393
    %v414 = vunpack.c.l.b16 %v400
    %v415 = vunpack.c.l.b16 %v407
    %v416 = vpack.c.b16 %v413, %v412
    %v417 = vpack.c.b16 %v415, %v414
    %v420 = vmul.bf16 %v366, %v416
    %v421 = vmul.bf16 %v367, %v417
    %v422 = vld [vmem:[%s2] sm:$0xf]
    %v423 = vld [vmem:[%s2 + $0x4] sm:$0xf]
    %v424 = vld [vmem:[%s2 + $0x8] sm:$0xf]
    %v425 = vld [vmem:[%s2 + $0xc] sm:$0xf]
    %v426 = vld [vmem:[%s2 + $0x10] sm:$0xf]
    %v427 = vld [vmem:[%s2 + $0x14] sm:$0xf]
    %v428 = vld [vmem:[%s2 + $0x18] sm:$0xf]
    %v429 = vld [vmem:[%s2 + $0x1c] sm:$0xf]
    %v430 = vld [vmem:[%s2 + $0x20] sm:$0xf]
    %v431 = vld [vmem:[%s2 + $0x24] sm:$0xf]
    %v432 = vld [vmem:[%s2 + $0x28] sm:$0xf]
    %v433 = vld [vmem:[%s2 + $0x2c] sm:$0xf]
    %v434 = vld [vmem:[%s2 + $0x30] sm:$0xf]
    %v435 = vld [vmem:[%s2 + $0x34] sm:$0xf]
    %v436 = vld [vmem:[%s2 + $0x38] sm:$0xf]
    %v437 = vld [vmem:[%s2 + $0x3c] sm:$0xf]
    %v438 = vshrl.u32 %v376, 16
    %v439 = vpack.i.b16 %v438, %v438
    %v441 = vlaneseq
    %v442 = vshrl.u32 %v441, 7
    %v443 = vsub.s32 0, %v442
    %v444 = vrot.slane %v439, %v443
    %v445 = vshrl.u32 %v377, 16
    %v446 = vpack.i.b16 %v445, %v445
    %v448 = vlaneseq
    %v449 = vshrl.u32 %v448, 7
    %v450 = vsub.s32 0, %v449
    %v451 = vrot.slane %v446, %v450
    %v452 = vshrl.u32 %v378, 16
    %v453 = vpack.i.b16 %v452, %v452
    %v455 = vlaneseq
    %v456 = vshrl.u32 %v455, 7
    %v457 = vsub.s32 0, %v456
    %v458 = vrot.slane %v453, %v457
    %v459 = vshrl.u32 %v379, 16
    %v460 = vpack.i.b16 %v459, %v459
    %v462 = vlaneseq
    %v463 = vshrl.u32 %v462, 7
    %v464 = vsub.s32 0, %v463
    %v465 = vrot.slane %v460, %v464
    %v470 = vunpack.c.l.b16 %v444
    %v471 = vunpack.c.l.b16 %v451
    %v472 = vunpack.c.l.b16 %v458
    %v473 = vunpack.c.l.b16 %v465
    %v474 = vpack.c.b16 %v471, %v470
    %v475 = vpack.c.b16 %v473, %v472
    %v478 = vmul.bf16 %v366, %v474
    %v479 = vmul.bf16 %v367, %v475
    %s480 = scalar_lea.vmem %s2, 64
    %v481 = vld [vmem:[%s480] sm:$0xf]
    %v482 = vld [vmem:[%s480 + $0x4] sm:$0xf]
    %v483 = vld [vmem:[%s480 + $0x8] sm:$0xf]
    %v484 = vld [vmem:[%s480 + $0xc] sm:$0xf]
    %v485 = vld [vmem:[%s480 + $0x10] sm:$0xf]
    %v486 = vld [vmem:[%s480 + $0x14] sm:$0xf]
    %v487 = vld [vmem:[%s480 + $0x18] sm:$0xf]
    %v488 = vld [vmem:[%s480 + $0x1c] sm:$0xf]
    %v489 = vld [vmem:[%s480 + $0x20] sm:$0xf]
    %v490 = vld [vmem:[%s480 + $0x24] sm:$0xf]
    %v491 = vld [vmem:[%s480 + $0x28] sm:$0xf]
    %v492 = vld [vmem:[%s480 + $0x2c] sm:$0xf]
    %v493 = vld [vmem:[%s480 + $0x30] sm:$0xf]
    %v494 = vld [vmem:[%s480 + $0x34] sm:$0xf]
    %v495 = vld [vmem:[%s480 + $0x38] sm:$0xf]
    %v496 = vld [vmem:[%s480 + $0x3c] sm:$0xf]
    %v513 = vunpack.c.l.b16 %v481
    %v514 = vunpack.c.l.b16 %v482
    %v515 = vunpack.c.l.b16 %v483
    %v516 = vunpack.c.l.b16 %v484
    %v517 = vunpack.c.l.b16 %v485
    %v518 = vunpack.c.l.b16 %v486
    %v519 = vunpack.c.l.b16 %v487
    %v520 = vunpack.c.l.b16 %v488
    %v521 = vunpack.c.l.b16 %v489
    %v522 = vunpack.c.l.b16 %v490
    %v523 = vunpack.c.l.b16 %v491
    %v524 = vunpack.c.l.b16 %v492
    %v525 = vunpack.c.l.b16 %v493
    %v526 = vunpack.c.l.b16 %v494
    %v527 = vunpack.c.l.b16 %v495
    %v528 = vunpack.c.l.b16 %v496
    %v529 = vpack.c.b16 %v514, %v513
    %v530 = vpack.c.b16 %v516, %v515
    %v531 = vpack.c.b16 %v518, %v517
    %v532 = vpack.c.b16 %v520, %v519
    %v533 = vpack.c.b16 %v522, %v521
    %v534 = vpack.c.b16 %v524, %v523
    %v535 = vpack.c.b16 %v526, %v525
    %v536 = vpack.c.b16 %v528, %v527
    %545 = vmatprep.subr.bf16.mxu0 0
    %546 = vmatpush1.bf16.msra.mxu0 %v529
    %547 = vmatprep.subr.bf16.mxu0 0
    %548 = vmatpush1.bf16.msra.mxu0 %v530
    %549 = vmatprep.subr.bf16.mxu0 0
    %550 = vmatpush1.bf16.msra.mxu0 %v531
    %551 = vmatprep.subr.bf16.mxu0 0
    %552 = vmatpush1.bf16.msra.mxu0 %v532
    %553 = vmatprep.subr.bf16.mxu0 0
    %554 = vmatpush1.bf16.msra.mxu0 %v533
    %555 = vmatprep.subr.bf16.mxu0 0
    %556 = vmatpush1.bf16.msra.mxu0 %v534
    %557 = vmatprep.subr.bf16.mxu0 0
    %558 = vmatpush1.bf16.msra.mxu0 %v535
    %559 = vmatprep.subr.bf16.mxu0 0
    %560 = vmatpush1.bf16.msra.mxu0 %v536
    %561 = vmatprep.subr.bf16.mxu0 0
    %562 = vmatpush1.bf16.msra.mxu0 0
    %563 = vmatprep.subr.bf16.mxu0 0
    %564 = vmatpush1.bf16.msra.mxu0 0
    %565 = vmatprep.subr.bf16.mxu0 0
    %566 = vmatpush1.bf16.msra.mxu0 0
    %567 = vmatprep.subr.bf16.mxu0 0
    %568 = vmatpush1.bf16.msra.mxu0 0
    %569 = vmatprep.subr.bf16.mxu0 0
    %570 = vmatpush1.bf16.msra.mxu0 0
    %571 = vmatprep.subr.bf16.mxu0 0
    %572 = vmatpush1.bf16.msra.mxu0 0
    %573 = vmatprep.subr.bf16.mxu0 0
    %574 = vmatpush1.bf16.msra.mxu0 0
    %575 = vmatprep.subr.bf16.mxu0 0
    %576 = vmatpush1.bf16.msra.mxu0 0
    %577 = vmatprep.mubr.bf16.mxu0 0
    %578 = vmatmul.mubr.bf16.gmra.mrb[0].mxu0 %v478
    %v579 = vpop.f32.mrb[0].mxu0
    %v580 = vadd.f32 0.0, %v579
    %v581 = vpop.f32.mrb[0].mxu0
    %v582 = vpop.f32.mrb[0].mxu0
    %v583 = vadd.f32 0.0, %v582
    %v584 = vpop.f32.mrb[0].mxu0
    %585 = vmatprep.mubr.bf16.mxu0 0
    %586 = vmatmul.mubr.bf16.gmra.mrb[0].mxu0 %v479
    %v587 = vpop.f32.mrb[0].mxu0
    %v588 = vadd.f32 0.0, %v587
    %v589 = vpop.f32.mrb[0].mxu0
    %v590 = vpop.f32.mrb[0].mxu0
    %v591 = vadd.f32 0.0, %v590
    %v592 = vpop.f32.mrb[0].mxu0
    %593 = vdwg.mxu0
    %v610 = vunpack.c.l.b16 %v422
    %v611 = vunpack.c.l.b16 %v423
    %v612 = vunpack.c.l.b16 %v424
    %v613 = vunpack.c.l.b16 %v425
    %v614 = vunpack.c.l.b16 %v426
    %v615 = vunpack.c.l.b16 %v427
    %v616 = vunpack.c.l.b16 %v428
    %v617 = vunpack.c.l.b16 %v429
    %v618 = vunpack.c.l.b16 %v430
    %v619 = vunpack.c.l.b16 %v431
    %v620 = vunpack.c.l.b16 %v432
    %v621 = vunpack.c.l.b16 %v433
    %v622 = vunpack.c.l.b16 %v434
    %v623 = vunpack.c.l.b16 %v435
    %v624 = vunpack.c.l.b16 %v436
    %v625 = vunpack.c.l.b16 %v437
    %v626 = vpack.c.b16 %v611, %v610
    %v627 = vpack.c.b16 %v613, %v612
    %v628 = vpack.c.b16 %v615, %v614
    %v629 = vpack.c.b16 %v617, %v616
    %v630 = vpack.c.b16 %v619, %v618
    %v631 = vpack.c.b16 %v621, %v620
    %v632 = vpack.c.b16 %v623, %v622
    %v633 = vpack.c.b16 %v625, %v624
    %642 = vmatprep.subr.bf16.mxu0 0
    %643 = vmatpush1.bf16.msra.mxu0 %v626
    %644 = vmatprep.subr.bf16.mxu0 0
    %645 = vmatpush1.bf16.msra.mxu0 %v627
    %646 = vmatprep.subr.bf16.mxu0 0
    %647 = vmatpush1.bf16.msra.mxu0 %v628
    %648 = vmatprep.subr.bf16.mxu0 0
    %649 = vmatpush1.bf16.msra.mxu0 %v629
    %650 = vmatprep.subr.bf16.mxu0 0
    %651 = vmatpush1.bf16.msra.mxu0 %v630
    %652 = vmatprep.subr.bf16.mxu0 0
    %653 = vmatpush1.bf16.msra.mxu0 %v631
    %654 = vmatprep.subr.bf16.mxu0 0
    %655 = vmatpush1.bf16.msra.mxu0 %v632
    %656 = vmatprep.subr.bf16.mxu0 0
    %657 = vmatpush1.bf16.msra.mxu0 %v633
    %658 = vmatprep.subr.bf16.mxu0 0
    %659 = vmatpush1.bf16.msra.mxu0 0
    %660 = vmatprep.subr.bf16.mxu0 0
    %661 = vmatpush1.bf16.msra.mxu0 0
    %662 = vmatprep.subr.bf16.mxu0 0
    %663 = vmatpush1.bf16.msra.mxu0 0
    %664 = vmatprep.subr.bf16.mxu0 0
    %665 = vmatpush1.bf16.msra.mxu0 0
    %666 = vmatprep.subr.bf16.mxu0 0
    %667 = vmatpush1.bf16.msra.mxu0 0
    %668 = vmatprep.subr.bf16.mxu0 0
    %669 = vmatpush1.bf16.msra.mxu0 0
    %670 = vmatprep.subr.bf16.mxu0 0
    %671 = vmatpush1.bf16.msra.mxu0 0
    %672 = vmatprep.subr.bf16.mxu0 0
    %673 = vmatpush1.bf16.msra.mxu0 0
    %674 = vmatprep.mubr.bf16.mxu0 0
    %675 = vmatmul.mubr.bf16.gmra.mrb[0].mxu0 %v420
    %v676 = vpop.f32.mrb[0].mxu0
    %v677 = vadd.f32 %v580, %v676
    %v678 = vpop.f32.mrb[0].mxu0
    %v679 = vpop.f32.mrb[0].mxu0
    %v680 = vadd.f32 %v583, %v679
    %v681 = vpop.f32.mrb[0].mxu0
    %682 = vmatprep.mubr.bf16.mxu0 0
    %683 = vmatmul.mubr.bf16.gmra.mrb[0].mxu0 %v421
    %v684 = vpop.f32.mrb[0].mxu0
    %v685 = vadd.f32 %v588, %v684
    %v686 = vpop.f32.mrb[0].mxu0
    %v687 = vpop.f32.mrb[0].mxu0
    %v688 = vadd.f32 %v591, %v687
    %v689 = vpop.f32.mrb[0].mxu0
    %690 = vdwg.mxu0
    %v691 = vlaneseq
    %v692 = vshrl.u32 %v691, 7
    %v693 = vsub.s32 1, %v692
    %v694 = vrot.slane %v381, %v693
    %v695 = vlaneseq
    %v696 = vshrl.u32 %v695, 7
    %v697 = vsub.s32 1, %v696
    %v698 = vrot.slane %v388, %v697
    %v699 = vlaneseq
    %v700 = vshrl.u32 %v699, 7
    %v701 = vsub.s32 1, %v700
    %v702 = vrot.slane %v395, %v701
    %v703 = vlaneseq
    %v704 = vshrl.u32 %v703, 7
    %v705 = vsub.s32 1, %v704
    %v706 = vrot.slane %v402, %v705
    %v711 = vunpack.c.l.b16 %v694
    %v712 = vunpack.c.l.b16 %v698
    %v713 = vunpack.c.l.b16 %v702
    %v714 = vunpack.c.l.b16 %v706
    %v715 = vpack.c.b16 %v712, %v711
    %v716 = vpack.c.b16 %v714, %v713
    %v719 = vmul.bf16 %v366, %v715
    %v720 = vmul.bf16 %v367, %v716
    %s721 = scalar_lea.vmem %s2, 128
    %v722 = vld [vmem:[%s721] sm:$0xf]
    %v723 = vld [vmem:[%s721 + $0x4] sm:$0xf]
    %v724 = vld [vmem:[%s721 + $0x8] sm:$0xf]
    %v725 = vld [vmem:[%s721 + $0xc] sm:$0xf]
    %v726 = vld [vmem:[%s721 + $0x10] sm:$0xf]
    %v727 = vld [vmem:[%s721 + $0x14] sm:$0xf]
    %v728 = vld [vmem:[%s721 + $0x18] sm:$0xf]
    %v729 = vld [vmem:[%s721 + $0x1c] sm:$0xf]
    %v730 = vld [vmem:[%s721 + $0x20] sm:$0xf]
    %v731 = vld [vmem:[%s721 + $0x24] sm:$0xf]
    %v732 = vld [vmem:[%s721 + $0x28] sm:$0xf]
    %v733 = vld [vmem:[%s721 + $0x2c] sm:$0xf]
    %v734 = vld [vmem:[%s721 + $0x30] sm:$0xf]
    %v735 = vld [vmem:[%s721 + $0x34] sm:$0xf]
    %v736 = vld [vmem:[%s721 + $0x38] sm:$0xf]
    %v737 = vld [vmem:[%s721 + $0x3c] sm:$0xf]
    %v754 = vunpack.c.l.b16 %v722
    %v755 = vunpack.c.l.b16 %v723
    %v756 = vunpack.c.l.b16 %v724
    %v757 = vunpack.c.l.b16 %v725
    %v758 = vunpack.c.l.b16 %v726
    %v759 = vunpack.c.l.b16 %v727
    %v760 = vunpack.c.l.b16 %v728
    %v761 = vunpack.c.l.b16 %v729
    %v762 = vunpack.c.l.b16 %v730
    %v763 = vunpack.c.l.b16 %v731
    %v764 = vunpack.c.l.b16 %v732
    %v765 = vunpack.c.l.b16 %v733
    %v766 = vunpack.c.l.b16 %v734
    %v767 = vunpack.c.l.b16 %v735
    %v768 = vunpack.c.l.b16 %v736
    %v769 = vunpack.c.l.b16 %v737
    %v770 = vpack.c.b16 %v755, %v754
    %v771 = vpack.c.b16 %v757, %v756
    %v772 = vpack.c.b16 %v759, %v758
    %v773 = vpack.c.b16 %v761, %v760
    %v774 = vpack.c.b16 %v763, %v762
    %v775 = vpack.c.b16 %v765, %v764
    %v776 = vpack.c.b16 %v767, %v766
    %v777 = vpack.c.b16 %v769, %v768
    %786 = vmatprep.subr.bf16.mxu0 0
    %787 = vmatpush1.bf16.msra.mxu0 %v770
    %788 = vmatprep.subr.bf16.mxu0 0
    %789 = vmatpush1.bf16.msra.mxu0 %v771
    %790 = vmatprep.subr.bf16.mxu0 0
    %791 = vmatpush1.bf16.msra.mxu0 %v772
    %792 = vmatprep.subr.bf16.mxu0 0
    %793 = vmatpush1.bf16.msra.mxu0 %v773
    %794 = vmatprep.subr.bf16.mxu0 0
    %795 = vmatpush1.bf16.msra.mxu0 %v774
    %796 = vmatprep.subr.bf16.mxu0 0
    %797 = vmatpush1.bf16.msra.mxu0 %v775
    %798 = vmatprep.subr.bf16.mxu0 0
    %799 = vmatpush1.bf16.msra.mxu0 %v776
    %800 = vmatprep.subr.bf16.mxu0 0
    %801 = vmatpush1.bf16.msra.mxu0 %v777
    %802 = vmatprep.subr.bf16.mxu0 0
    %803 = vmatpush1.bf16.msra.mxu0 0
    %804 = vmatprep.subr.bf16.mxu0 0
    %805 = vmatpush1.bf16.msra.mxu0 0
    %806 = vmatprep.subr.bf16.mxu0 0
    %807 = vmatpush1.bf16.msra.mxu0 0
    %808 = vmatprep.subr.bf16.mxu0 0
    %809 = vmatpush1.bf16.msra.mxu0 0
    %810 = vmatprep.subr.bf16.mxu0 0
    %811 = vmatpush1.bf16.msra.mxu0 0
    %812 = vmatprep.subr.bf16.mxu0 0
    %813 = vmatpush1.bf16.msra.mxu0 0
    %814 = vmatprep.subr.bf16.mxu0 0
    %815 = vmatpush1.bf16.msra.mxu0 0
    %816 = vmatprep.subr.bf16.mxu0 0
    %817 = vmatpush1.bf16.msra.mxu0 0
    %818 = vmatprep.mubr.bf16.mxu0 0
    %819 = vmatmul.mubr.bf16.gmra.mrb[0].mxu0 %v719
    %v820 = vpop.f32.mrb[0].mxu0
    %v821 = vadd.f32 0.0, %v820
    %v822 = vpop.f32.mrb[0].mxu0
    %v823 = vpop.f32.mrb[0].mxu0
    %v824 = vadd.f32 0.0, %v823
    %v825 = vpop.f32.mrb[0].mxu0
    %826 = vmatprep.mubr.bf16.mxu0 0
    %827 = vmatmul.mubr.bf16.gmra.mrb[0].mxu0 %v720
    %v828 = vpop.f32.mrb[0].mxu0
    %v829 = vadd.f32 0.0, %v828
    %v830 = vpop.f32.mrb[0].mxu0
    %v831 = vpop.f32.mrb[0].mxu0
    %v832 = vadd.f32 0.0, %v831
    %v833 = vpop.f32.mrb[0].mxu0
    %834 = vdwg.mxu0
    %v835 = vadd.f32 %v677, %v821
    %v836 = vadd.f32 %v680, %v824
    %v837 = vadd.f32 %v685, %v829
    %v838 = vadd.f32 %v688, %v832
    %v839 = vlaneseq
    %v840 = vshrl.u32 %v839, 7
    %v841 = vsub.s32 1, %v840
    %v842 = vrot.slane %v439, %v841
    %v843 = vlaneseq
    %v844 = vshrl.u32 %v843, 7
    %v845 = vsub.s32 1, %v844
    %v846 = vrot.slane %v446, %v845
    %v847 = vlaneseq
    %v848 = vshrl.u32 %v847, 7
    %v849 = vsub.s32 1, %v848
    %v850 = vrot.slane %v453, %v849
    %v851 = vlaneseq
    %v852 = vshrl.u32 %v851, 7
    %v853 = vsub.s32 1, %v852
    %v854 = vrot.slane %v460, %v853
    %v859 = vunpack.c.l.b16 %v842
    %v860 = vunpack.c.l.b16 %v846
    %v861 = vunpack.c.l.b16 %v850
    %v862 = vunpack.c.l.b16 %v854
    %v863 = vpack.c.b16 %v860, %v859
    %v864 = vpack.c.b16 %v862, %v861
    %v867 = vmul.bf16 %v366, %v863
    %v868 = vmul.bf16 %v367, %v864
    %s869 = scalar_lea.vmem %s2, 192
    %v870 = vld [vmem:[%s869] sm:$0xf]
    %v871 = vld [vmem:[%s869 + $0x4] sm:$0xf]
    %v872 = vld [vmem:[%s869 + $0x8] sm:$0xf]
    %v873 = vld [vmem:[%s869 + $0xc] sm:$0xf]
    %v874 = vld [vmem:[%s869 + $0x10] sm:$0xf]
    %v875 = vld [vmem:[%s869 + $0x14] sm:$0xf]
    %v876 = vld [vmem:[%s869 + $0x18] sm:$0xf]
    %v877 = vld [vmem:[%s869 + $0x1c] sm:$0xf]
    %v878 = vld [vmem:[%s869 + $0x20] sm:$0xf]
    %v879 = vld [vmem:[%s869 + $0x24] sm:$0xf]
    %v880 = vld [vmem:[%s869 + $0x28] sm:$0xf]
    %v881 = vld [vmem:[%s869 + $0x2c] sm:$0xf]
    %v882 = vld [vmem:[%s869 + $0x30] sm:$0xf]
    %v883 = vld [vmem:[%s869 + $0x34] sm:$0xf]
    %v884 = vld [vmem:[%s869 + $0x38] sm:$0xf]
    %v885 = vld [vmem:[%s869 + $0x3c] sm:$0xf]
    %v902 = vunpack.c.l.b16 %v870
    %v903 = vunpack.c.l.b16 %v871
    %v904 = vunpack.c.l.b16 %v872
    %v905 = vunpack.c.l.b16 %v873
    %v906 = vunpack.c.l.b16 %v874
    %v907 = vunpack.c.l.b16 %v875
    %v908 = vunpack.c.l.b16 %v876
    %v909 = vunpack.c.l.b16 %v877
    %v910 = vunpack.c.l.b16 %v878
    %v911 = vunpack.c.l.b16 %v879
    %v912 = vunpack.c.l.b16 %v880
    %v913 = vunpack.c.l.b16 %v881
    %v914 = vunpack.c.l.b16 %v882
    %v915 = vunpack.c.l.b16 %v883
    %v916 = vunpack.c.l.b16 %v884
    %v917 = vunpack.c.l.b16 %v885
    %v918 = vpack.c.b16 %v903, %v902
    %v919 = vpack.c.b16 %v905, %v904
    %v920 = vpack.c.b16 %v907, %v906
    %v921 = vpack.c.b16 %v909, %v908
    %v922 = vpack.c.b16 %v911, %v910
    %v923 = vpack.c.b16 %v913, %v912
    %v924 = vpack.c.b16 %v915, %v914
    %v925 = vpack.c.b16 %v917, %v916
    %934 = vmatprep.subr.bf16.mxu0 0
    %935 = vmatpush1.bf16.msra.mxu0 %v918
    %936 = vmatprep.subr.bf16.mxu0 0
    %937 = vmatpush1.bf16.msra.mxu0 %v919
    %938 = vmatprep.subr.bf16.mxu0 0
    %939 = vmatpush1.bf16.msra.mxu0 %v920
    %940 = vmatprep.subr.bf16.mxu0 0
    %941 = vmatpush1.bf16.msra.mxu0 %v921
    %942 = vmatprep.subr.bf16.mxu0 0
    %943 = vmatpush1.bf16.msra.mxu0 %v922
    %944 = vmatprep.subr.bf16.mxu0 0
    %945 = vmatpush1.bf16.msra.mxu0 %v923
    %946 = vmatprep.subr.bf16.mxu0 0
    %947 = vmatpush1.bf16.msra.mxu0 %v924
    %948 = vmatprep.subr.bf16.mxu0 0
    %949 = vmatpush1.bf16.msra.mxu0 %v925
    %950 = vmatprep.subr.bf16.mxu0 0
    %951 = vmatpush1.bf16.msra.mxu0 0
    %952 = vmatprep.subr.bf16.mxu0 0
    %953 = vmatpush1.bf16.msra.mxu0 0
    %954 = vmatprep.subr.bf16.mxu0 0
    %955 = vmatpush1.bf16.msra.mxu0 0
    %956 = vmatprep.subr.bf16.mxu0 0
    %957 = vmatpush1.bf16.msra.mxu0 0
    %958 = vmatprep.subr.bf16.mxu0 0
    %959 = vmatpush1.bf16.msra.mxu0 0
    %960 = vmatprep.subr.bf16.mxu0 0
    %961 = vmatpush1.bf16.msra.mxu0 0
    %962 = vmatprep.subr.bf16.mxu0 0
    %963 = vmatpush1.bf16.msra.mxu0 0
    %964 = vmatprep.subr.bf16.mxu0 0
    %965 = vmatpush1.bf16.msra.mxu0 0
    %966 = vmatprep.mubr.bf16.mxu0 0
    %967 = vmatmul.mubr.bf16.gmra.mrb[0].mxu0 %v867
    %v968 = vpop.f32.mrb[0].mxu0
    %v969 = vadd.f32 0.0, %v968
    %v970 = vpop.f32.mrb[0].mxu0
    %v971 = vpop.f32.mrb[0].mxu0
    %v972 = vadd.f32 0.0, %v971
    %v973 = vpop.f32.mrb[0].mxu0
    %974 = vmatprep.mubr.bf16.mxu0 0
    %975 = vmatmul.mubr.bf16.gmra.mrb[0].mxu0 %v868
    %v976 = vpop.f32.mrb[0].mxu0
    %v977 = vadd.f32 0.0, %v976
    %v978 = vpop.f32.mrb[0].mxu0
    %v979 = vpop.f32.mrb[0].mxu0
    %v980 = vadd.f32 0.0, %v979
    %v981 = vpop.f32.mrb[0].mxu0
    %982 = vdwg.mxu0
    %v983 = vadd.f32 %v835, %v969
    %v984 = vadd.f32 %v836, %v972
    %v985 = vadd.f32 %v837, %v977
    %v986 = vadd.f32 %v838, %v980
    %v987 = vlaneseq
    %v988 = vshrl.u32 %v987, 7
    %v989 = vsub.s32 2, %v988
    %v990 = vrot.slane %v381, %v989
    %v991 = vlaneseq
    %v992 = vshrl.u32 %v991, 7
    %v993 = vsub.s32 2, %v992
    %v994 = vrot.slane %v388, %v993
    %v995 = vlaneseq
    %v996 = vshrl.u32 %v995, 7
    %v997 = vsub.s32 2, %v996
    %v998 = vrot.slane %v395, %v997
    %v999 = vlaneseq
    %v1000 = vshrl.u32 %v999, 7
    %v1001 = vsub.s32 2, %v1000
    %v1002 = vrot.slane %v402, %v1001
    %v1007 = vunpack.c.l.b16 %v990
    %v1008 = vunpack.c.l.b16 %v994
    %v1009 = vunpack.c.l.b16 %v998
    %v1010 = vunpack.c.l.b16 %v1002
    %v1011 = vpack.c.b16 %v1008, %v1007
    %v1012 = vpack.c.b16 %v1010, %v1009
    %v1015 = vmul.bf16 %v366, %v1011
    %v1016 = vmul.bf16 %v367, %v1012
    %s1017 = scalar_lea.vmem %s2, 256
    %v1018 = vld [vmem:[%s1017] sm:$0xf]
    %v1019 = vld [vmem:[%s1017 + $0x4] sm:$0xf]
    %v1020 = vld [vmem:[%s1017 + $0x8] sm:$0xf]
    %v1021 = vld [vmem:[%s1017 + $0xc] sm:$0xf]
    %v1022 = vld [vmem:[%s1017 + $0x10] sm:$0xf]
    %v1023 = vld [vmem:[%s1017 + $0x14] sm:$0xf]
    %v1024 = vld [vmem:[%s1017 + $0x18] sm:$0xf]
    %v1025 = vld [vmem:[%s1017 + $0x1c] sm:$0xf]
    %v1026 = vld [vmem:[%s1017 + $0x20] sm:$0xf]
    %v1027 = vld [vmem:[%s1017 + $0x24] sm:$0xf]
    %v1028 = vld [vmem:[%s1017 + $0x28] sm:$0xf]
    %v1029 = vld [vmem:[%s1017 + $0x2c] sm:$0xf]
    %v1030 = vld [vmem:[%s1017 + $0x30] sm:$0xf]
    %v1031 = vld [vmem:[%s1017 + $0x34] sm:$0xf]
    %v1032 = vld [vmem:[%s1017 + $0x38] sm:$0xf]
    %v1033 = vld [vmem:[%s1017 + $0x3c] sm:$0xf]
    %v1050 = vunpack.c.l.b16 %v1018
    %v1051 = vunpack.c.l.b16 %v1019
    %v1052 = vunpack.c.l.b16 %v1020
    %v1053 = vunpack.c.l.b16 %v1021
    %v1054 = vunpack.c.l.b16 %v1022
    %v1055 = vunpack.c.l.b16 %v1023
    %v1056 = vunpack.c.l.b16 %v1024
    %v1057 = vunpack.c.l.b16 %v1025
    %v1058 = vunpack.c.l.b16 %v1026
    %v1059 = vunpack.c.l.b16 %v1027
    %v1060 = vunpack.c.l.b16 %v1028
    %v1061 = vunpack.c.l.b16 %v1029
    %v1062 = vunpack.c.l.b16 %v1030
    %v1063 = vunpack.c.l.b16 %v1031
    %v1064 = vunpack.c.l.b16 %v1032
    %v1065 = vunpack.c.l.b16 %v1033
    %v1066 = vpack.c.b16 %v1051, %v1050
    %v1067 = vpack.c.b16 %v1053, %v1052
    %v1068 = vpack.c.b16 %v1055, %v1054
    %v1069 = vpack.c.b16 %v1057, %v1056
    %v1070 = vpack.c.b16 %v1059, %v1058
    %v1071 = vpack.c.b16 %v1061, %v1060
    %v1072 = vpack.c.b16 %v1063, %v1062
    %v1073 = vpack.c.b16 %v1065, %v1064
    %1082 = vmatprep.subr.bf16.mxu0 0
    %1083 = vmatpush1.bf16.msra.mxu0 %v1066
    %1084 = vmatprep.subr.bf16.mxu0 0
    %1085 = vmatpush1.bf16.msra.mxu0 %v1067
    %1086 = vmatprep.subr.bf16.mxu0 0
    %1087 = vmatpush1.bf16.msra.mxu0 %v1068
    %1088 = vmatprep.subr.bf16.mxu0 0
    %1089 = vmatpush1.bf16.msra.mxu0 %v1069
    %1090 = vmatprep.subr.bf16.mxu0 0
    %1091 = vmatpush1.bf16.msra.mxu0 %v1070
    %1092 = vmatprep.subr.bf16.mxu0 0
    %1093 = vmatpush1.bf16.msra.mxu0 %v1071
    %1094 = vmatprep.subr.bf16.mxu0 0
    %1095 = vmatpush1.bf16.msra.mxu0 %v1072
    %1096 = vmatprep.subr.bf16.mxu0 0
    %1097 = vmatpush1.bf16.msra.mxu0 %v1073
    %1098 = vmatprep.subr.bf16.mxu0 0
    %1099 = vmatpush1.bf16.msra.mxu0 0
    %1100 = vmatprep.subr.bf16.mxu0 0
    %1101 = vmatpush1.bf16.msra.mxu0 0
    %1102 = vmatprep.subr.bf16.mxu0 0
    %1103 = vmatpush1.bf16.msra.mxu0 0
    %1104 = vmatprep.subr.bf16.mxu0 0
    %1105 = vmatpush1.bf16.msra.mxu0 0
    %1106 = vmatprep.subr.bf16.mxu0 0
    %1107 = vmatpush1.bf16.msra.mxu0 0
    %1108 = vmatprep.subr.bf16.mxu0 0
    %1109 = vmatpush1.bf16.msra.mxu0 0
    %1110 = vmatprep.subr.bf16.mxu0 0
    %1111 = vmatpush1.bf16.msra.mxu0 0
    %1112 = vmatprep.subr.bf16.mxu0 0
    %1113 = vmatpush1.bf16.msra.mxu0 0
    %1114 = vmatprep.mubr.bf16.mxu0 0
    %1115 = vmatmul.mubr.bf16.gmra.mrb[0].mxu0 %v1015
    %v1116 = vpop.f32.mrb[0].mxu0
    %v1117 = vadd.f32 0.0, %v1116
    %v1118 = vpop.f32.mrb[0].mxu0
    %v1119 = vpop.f32.mrb[0].mxu0
    %v1120 = vadd.f32 0.0, %v1119
    %v1121 = vpop.f32.mrb[0].mxu0
    %1122 = vmatprep.mubr.bf16.mxu0 0
    %1123 = vmatmul.mubr.bf16.gmra.mrb[0].mxu0 %v1016
    %v1124 = vpop.f32.mrb[0].mxu0
    %v1125 = vadd.f32 0.0, %v1124
    %v1126 = vpop.f32.mrb[0].mxu0
    %v1127 = vpop.f32.mrb[0].mxu0
    %v1128 = vadd.f32 0.0, %v1127
    %v1129 = vpop.f32.mrb[0].mxu0
    %1130 = vdwg.mxu0
    %v1131 = vadd.f32 %v983, %v1117
    %v1132 = vadd.f32 %v984, %v1120
    %v1133 = vadd.f32 %v985, %v1125
    %v1134 = vadd.f32 %v986, %v1128
    %v1135 = vlaneseq
    %v1136 = vshrl.u32 %v1135, 7
    %v1137 = vsub.s32 2, %v1136
    %v1138 = vrot.slane %v439, %v1137
    %v1139 = vlaneseq
    %v1140 = vshrl.u32 %v1139, 7
    %v1141 = vsub.s32 2, %v1140
    %v1142 = vrot.slane %v446, %v1141
    %v1143 = vlaneseq
    %v1144 = vshrl.u32 %v1143, 7
    %v1145 = vsub.s32 2, %v1144
    %v1146 = vrot.slane %v453, %v1145
    %v1147 = vlaneseq
    %v1148 = vshrl.u32 %v1147, 7
    %v1149 = vsub.s32 2, %v1148
    %v1150 = vrot.slane %v460, %v1149
    %v1155 = vunpack.c.l.b16 %v1138
    %v1156 = vunpack.c.l.b16 %v1142
    %v1157 = vunpack.c.l.b16 %v1146
    %v1158 = vunpack.c.l.b16 %v1150
    %v1159 = vpack.c.b16 %v1156, %v1155
    %v1160 = vpack.c.b16 %v1158, %v1157
    %v1163 = vmul.bf16 %v366, %v1159
    %v1164 = vmul.bf16 %v367, %v1160
    %s1165 = scalar_lea.vmem %s2, 320
    %v1166 = vld [vmem:[%s1165] sm:$0xf]
    %v1167 = vld [vmem:[%s1165 + $0x4] sm:$0xf]
    %v1168 = vld [vmem:[%s1165 + $0x8] sm:$0xf]
    %v1169 = vld [vmem:[%s1165 + $0xc] sm:$0xf]
    %v1170 = vld [vmem:[%s1165 + $0x10] sm:$0xf]
    %v1171 = vld [vmem:[%s1165 + $0x14] sm:$0xf]
    %v1172 = vld [vmem:[%s1165 + $0x18] sm:$0xf]
    %v1173 = vld [vmem:[%s1165 + $0x1c] sm:$0xf]
    %v1174 = vld [vmem:[%s1165 + $0x20] sm:$0xf]
    %v1175 = vld [vmem:[%s1165 + $0x24] sm:$0xf]
    %v1176 = vld [vmem:[%s1165 + $0x28] sm:$0xf]
    %v1177 = vld [vmem:[%s1165 + $0x2c] sm:$0xf]
    %v1178 = vld [vmem:[%s1165 + $0x30] sm:$0xf]
    %v1179 = vld [vmem:[%s1165 + $0x34] sm:$0xf]
    %v1180 = vld [vmem:[%s1165 + $0x38] sm:$0xf]
    %v1181 = vld [vmem:[%s1165 + $0x3c] sm:$0xf]
    %v1198 = vunpack.c.l.b16 %v1166
    %v1199 = vunpack.c.l.b16 %v1167
    %v1200 = vunpack.c.l.b16 %v1168
    %v1201 = vunpack.c.l.b16 %v1169
    %v1202 = vunpack.c.l.b16 %v1170
    %v1203 = vunpack.c.l.b16 %v1171
    %v1204 = vunpack.c.l.b16 %v1172
    %v1205 = vunpack.c.l.b16 %v1173
    %v1206 = vunpack.c.l.b16 %v1174
    %v1207 = vunpack.c.l.b16 %v1175
    %v1208 = vunpack.c.l.b16 %v1176
    %v1209 = vunpack.c.l.b16 %v1177
    %v1210 = vunpack.c.l.b16 %v1178
    %v1211 = vunpack.c.l.b16 %v1179
    %v1212 = vunpack.c.l.b16 %v1180
    %v1213 = vunpack.c.l.b16 %v1181
    %v1214 = vpack.c.b16 %v1199, %v1198
    %v1215 = vpack.c.b16 %v1201, %v1200
    %v1216 = vpack.c.b16 %v1203, %v1202
    %v1217 = vpack.c.b16 %v1205, %v1204
    %v1218 = vpack.c.b16 %v1207, %v1206
    %v1219 = vpack.c.b16 %v1209, %v1208
    %v1220 = vpack.c.b16 %v1211, %v1210
    %v1221 = vpack.c.b16 %v1213, %v1212
    %1230 = vmatprep.subr.bf16.mxu0 0
    %1231 = vmatpush1.bf16.msra.mxu0 %v1214
    %1232 = vmatprep.subr.bf16.mxu0 0
    %1233 = vmatpush1.bf16.msra.mxu0 %v1215
    %1234 = vmatprep.subr.bf16.mxu0 0
    %1235 = vmatpush1.bf16.msra.mxu0 %v1216
    %1236 = vmatprep.subr.bf16.mxu0 0
    %1237 = vmatpush1.bf16.msra.mxu0 %v1217
    %1238 = vmatprep.subr.bf16.mxu0 0
    %1239 = vmatpush1.bf16.msra.mxu0 %v1218
    %1240 = vmatprep.subr.bf16.mxu0 0
    %1241 = vmatpush1.bf16.msra.mxu0 %v1219
    %1242 = vmatprep.subr.bf16.mxu0 0
    %1243 = vmatpush1.bf16.msra.mxu0 %v1220
    %1244 = vmatprep.subr.bf16.mxu0 0
    %1245 = vmatpush1.bf16.msra.mxu0 %v1221
    %1246 = vmatprep.subr.bf16.mxu0 0
    %1247 = vmatpush1.bf16.msra.mxu0 0
    %1248 = vmatprep.subr.bf16.mxu0 0
    %1249 = vmatpush1.bf16.msra.mxu0 0
    %1250 = vmatprep.subr.bf16.mxu0 0
    %1251 = vmatpush1.bf16.msra.mxu0 0
    %1252 = vmatprep.subr.bf16.mxu0 0
    %1253 = vmatpush1.bf16.msra.mxu0 0
    %1254 = vmatprep.subr.bf16.mxu0 0
    %1255 = vmatpush1.bf16.msra.mxu0 0
    %1256 = vmatprep.subr.bf16.mxu0 0
    %1257 = vmatpush1.bf16.msra.mxu0 0
    %1258 = vmatprep.subr.bf16.mxu0 0
    %1259 = vmatpush1.bf16.msra.mxu0 0
    %1260 = vmatprep.subr.bf16.mxu0 0
    %1261 = vmatpush1.bf16.msra.mxu0 0
    %1262 = vmatprep.mubr.bf16.mxu0 0
    %1263 = vmatmul.mubr.bf16.gmra.mrb[0].mxu0 %v1163
    %v1264 = vpop.f32.mrb[0].mxu0
    %v1265 = vadd.f32 0.0, %v1264
    %v1266 = vpop.f32.mrb[0].mxu0
    %v1267 = vpop.f32.mrb[0].mxu0
    %v1268 = vadd.f32 0.0, %v1267
    %v1269 = vpop.f32.mrb[0].mxu0
    %1270 = vmatprep.mubr.bf16.mxu0 0
    %1271 = vmatmul.mubr.bf16.gmra.mrb[0].mxu0 %v1164
    %v1272 = vpop.f32.mrb[0].mxu0
    %v1273 = vadd.f32 0.0, %v1272
    %v1274 = vpop.f32.mrb[0].mxu0
    %v1275 = vpop.f32.mrb[0].mxu0
    %v1276 = vadd.f32 0.0, %v1275
    %v1277 = vpop.f32.mrb[0].mxu0
    %1278 = vdwg.mxu0
    %v1279 = vadd.f32 %v1131, %v1265
    %v1280 = vadd.f32 %v1132, %v1268
    %v1281 = vadd.f32 %v1133, %v1273
    %v1282 = vadd.f32 %v1134, %v1276
    %v1283 = vlaneseq
    %v1284 = vshrl.u32 %v1283, 7
    %v1285 = vsub.s32 3, %v1284
    %v1286 = vrot.slane %v381, %v1285
    %v1287 = vlaneseq
    %v1288 = vshrl.u32 %v1287, 7
    %v1289 = vsub.s32 3, %v1288
    %v1290 = vrot.slane %v388, %v1289
    %v1291 = vlaneseq
    %v1292 = vshrl.u32 %v1291, 7
    %v1293 = vsub.s32 3, %v1292
    %v1294 = vrot.slane %v395, %v1293
    %v1295 = vlaneseq
    %v1296 = vshrl.u32 %v1295, 7
    %v1297 = vsub.s32 3, %v1296
    %v1298 = vrot.slane %v402, %v1297
    %v1303 = vunpack.c.l.b16 %v1286
    %v1304 = vunpack.c.l.b16 %v1290
    %v1305 = vunpack.c.l.b16 %v1294
    %v1306 = vunpack.c.l.b16 %v1298
    %v1307 = vpack.c.b16 %v1304, %v1303
    %v1308 = vpack.c.b16 %v1306, %v1305
    %v1311 = vmul.bf16 %v366, %v1307
    %v1312 = vmul.bf16 %v367, %v1308
    %s1313 = scalar_lea.vmem %s2, 384
    %v1314 = vld [vmem:[%s1313] sm:$0xf]
    %v1315 = vld [vmem:[%s1313 + $0x4] sm:$0xf]
    %v1316 = vld [vmem:[%s1313 + $0x8] sm:$0xf]
    %v1317 = vld [vmem:[%s1313 + $0xc] sm:$0xf]
    %v1318 = vld [vmem:[%s1313 + $0x10] sm:$0xf]
    %v1319 = vld [vmem:[%s1313 + $0x14] sm:$0xf]
    %v1320 = vld [vmem:[%s1313 + $0x18] sm:$0xf]
    %v1321 = vld [vmem:[%s1313 + $0x1c] sm:$0xf]
    %v1322 = vld [vmem:[%s1313 + $0x20] sm:$0xf]
    %v1323 = vld [vmem:[%s1313 + $0x24] sm:$0xf]
    %v1324 = vld [vmem:[%s1313 + $0x28] sm:$0xf]
    %v1325 = vld [vmem:[%s1313 + $0x2c] sm:$0xf]
    %v1326 = vld [vmem:[%s1313 + $0x30] sm:$0xf]
    %v1327 = vld [vmem:[%s1313 + $0x34] sm:$0xf]
    %v1328 = vld [vmem:[%s1313 + $0x38] sm:$0xf]
    %v1329 = vld [vmem:[%s1313 + $0x3c] sm:$0xf]
    %v1346 = vunpack.c.l.b16 %v1314
    %v1347 = vunpack.c.l.b16 %v1315
    %v1348 = vunpack.c.l.b16 %v1316
    %v1349 = vunpack.c.l.b16 %v1317
    %v1350 = vunpack.c.l.b16 %v1318
    %v1351 = vunpack.c.l.b16 %v1319
    %v1352 = vunpack.c.l.b16 %v1320
    %v1353 = vunpack.c.l.b16 %v1321
    %v1354 = vunpack.c.l.b16 %v1322
    %v1355 = vunpack.c.l.b16 %v1323
    %v1356 = vunpack.c.l.b16 %v1324
    %v1357 = vunpack.c.l.b16 %v1325
    %v1358 = vunpack.c.l.b16 %v1326
    %v1359 = vunpack.c.l.b16 %v1327
    %v1360 = vunpack.c.l.b16 %v1328
    %v1361 = vunpack.c.l.b16 %v1329
    %v1362 = vpack.c.b16 %v1347, %v1346
    %v1363 = vpack.c.b16 %v1349, %v1348
    %v1364 = vpack.c.b16 %v1351, %v1350
    %v1365 = vpack.c.b16 %v1353, %v1352
    %v1366 = vpack.c.b16 %v1355, %v1354
    %v1367 = vpack.c.b16 %v1357, %v1356
    %v1368 = vpack.c.b16 %v1359, %v1358
    %v1369 = vpack.c.b16 %v1361, %v1360
    %1378 = vmatprep.subr.bf16.mxu0 0
    %1379 = vmatpush1.bf16.msra.mxu0 %v1362
    %1380 = vmatprep.subr.bf16.mxu0 0
    %1381 = vmatpush1.bf16.msra.mxu0 %v1363
    %1382 = vmatprep.subr.bf16.mxu0 0
    %1383 = vmatpush1.bf16.msra.mxu0 %v1364
    %1384 = vmatprep.subr.bf16.mxu0 0
    %1385 = vmatpush1.bf16.msra.mxu0 %v1365
    %1386 = vmatprep.subr.bf16.mxu0 0
    %1387 = vmatpush1.bf16.msra.mxu0 %v1366
    %1388 = vmatprep.subr.bf16.mxu0 0
    %1389 = vmatpush1.bf16.msra.mxu0 %v1367
    %1390 = vmatprep.subr.bf16.mxu0 0
    %1391 = vmatpush1.bf16.msra.mxu0 %v1368
    %1392 = vmatprep.subr.bf16.mxu0 0
    %1393 = vmatpush1.bf16.msra.mxu0 %v1369
    %1394 = vmatprep.subr.bf16.mxu0 0
    %1395 = vmatpush1.bf16.msra.mxu0 0
    %1396 = vmatprep.subr.bf16.mxu0 0
    %1397 = vmatpush1.bf16.msra.mxu0 0
    %1398 = vmatprep.subr.bf16.mxu0 0
    %1399 = vmatpush1.bf16.msra.mxu0 0
    %1400 = vmatprep.subr.bf16.mxu0 0
    %1401 = vmatpush1.bf16.msra.mxu0 0
    %1402 = vmatprep.subr.bf16.mxu0 0
    %1403 = vmatpush1.bf16.msra.mxu0 0
    %1404 = vmatprep.subr.bf16.mxu0 0
    %1405 = vmatpush1.bf16.msra.mxu0 0
    %1406 = vmatprep.subr.bf16.mxu0 0
    %1407 = vmatpush1.bf16.msra.mxu0 0
    %1408 = vmatprep.subr.bf16.mxu0 0
    %1409 = vmatpush1.bf16.msra.mxu0 0
    %1410 = vmatprep.mubr.bf16.mxu0 0
    %1411 = vmatmul.mubr.bf16.gmra.mrb[0].mxu0 %v1311
    %v1412 = vpop.f32.mrb[0].mxu0
    %v1413 = vadd.f32 0.0, %v1412
    %v1414 = vpop.f32.mrb[0].mxu0
    %v1415 = vpop.f32.mrb[0].mxu0
    %v1416 = vadd.f32 0.0, %v1415
    %v1417 = vpop.f32.mrb[0].mxu0
    %1418 = vmatprep.mubr.bf16.mxu0 0
    %1419 = vmatmul.mubr.bf16.gmra.mrb[0].mxu0 %v1312
    %v1420 = vpop.f32.mrb[0].mxu0
    %v1421 = vadd.f32 0.0, %v1420
    %v1422 = vpop.f32.mrb[0].mxu0
    %v1423 = vpop.f32.mrb[0].mxu0
    %v1424 = vadd.f32 0.0, %v1423
    %v1425 = vpop.f32.mrb[0].mxu0
    %1426 = vdwg.mxu0
    %v1427 = vadd.f32 %v1279, %v1413
    %v1428 = vadd.f32 %v1280, %v1416
    %v1429 = vadd.f32 %v1281, %v1421
    %v1430 = vadd.f32 %v1282, %v1424
    %v1431 = vlaneseq
    %v1432 = vshrl.u32 %v1431, 7
    %v1433 = vsub.s32 3, %v1432
    %v1434 = vrot.slane %v439, %v1433
    %v1435 = vlaneseq
    %v1436 = vshrl.u32 %v1435, 7
    %v1437 = vsub.s32 3, %v1436
    %v1438 = vrot.slane %v446, %v1437
    %v1439 = vlaneseq
    %v1440 = vshrl.u32 %v1439, 7
    %v1441 = vsub.s32 3, %v1440
    %v1442 = vrot.slane %v453, %v1441
    %v1443 = vlaneseq
    %v1444 = vshrl.u32 %v1443, 7
    %v1445 = vsub.s32 3, %v1444
    %v1446 = vrot.slane %v460, %v1445
    %v1451 = vunpack.c.l.b16 %v1434
    %v1452 = vunpack.c.l.b16 %v1438
    %v1453 = vunpack.c.l.b16 %v1442
    %v1454 = vunpack.c.l.b16 %v1446
    %v1455 = vpack.c.b16 %v1452, %v1451
    %v1456 = vpack.c.b16 %v1454, %v1453
    %v1459 = vmul.bf16 %v366, %v1455
    %v1460 = vmul.bf16 %v367, %v1456
    %s1461 = scalar_lea.vmem %s2, 448
    %v1462 = vld [vmem:[%s1461] sm:$0xf]
    %v1463 = vld [vmem:[%s1461 + $0x4] sm:$0xf]
    %v1464 = vld [vmem:[%s1461 + $0x8] sm:$0xf]
    %v1465 = vld [vmem:[%s1461 + $0xc] sm:$0xf]
    %v1466 = vld [vmem:[%s1461 + $0x10] sm:$0xf]
    %v1467 = vld [vmem:[%s1461 + $0x14] sm:$0xf]
    %v1468 = vld [vmem:[%s1461 + $0x18] sm:$0xf]
    %v1469 = vld [vmem:[%s1461 + $0x1c] sm:$0xf]
    %v1470 = vld [vmem:[%s1461 + $0x20] sm:$0xf]
    %v1471 = vld [vmem:[%s1461 + $0x24] sm:$0xf]
    %v1472 = vld [vmem:[%s1461 + $0x28] sm:$0xf]
    %v1473 = vld [vmem:[%s1461 + $0x2c] sm:$0xf]
    %v1474 = vld [vmem:[%s1461 + $0x30] sm:$0xf]
    %v1475 = vld [vmem:[%s1461 + $0x34] sm:$0xf]
    %v1476 = vld [vmem:[%s1461 + $0x38] sm:$0xf]
    %v1477 = vld [vmem:[%s1461 + $0x3c] sm:$0xf]
    %v1494 = vunpack.c.l.b16 %v1462
    %v1495 = vunpack.c.l.b16 %v1463
    %v1496 = vunpack.c.l.b16 %v1464
    %v1497 = vunpack.c.l.b16 %v1465
    %v1498 = vunpack.c.l.b16 %v1466
    %v1499 = vunpack.c.l.b16 %v1467
    %v1500 = vunpack.c.l.b16 %v1468
    %v1501 = vunpack.c.l.b16 %v1469
    %v1502 = vunpack.c.l.b16 %v1470
    %v1503 = vunpack.c.l.b16 %v1471
    %v1504 = vunpack.c.l.b16 %v1472
    %v1505 = vunpack.c.l.b16 %v1473
    %v1506 = vunpack.c.l.b16 %v1474
    %v1507 = vunpack.c.l.b16 %v1475
    %v1508 = vunpack.c.l.b16 %v1476
    %v1509 = vunpack.c.l.b16 %v1477
    %v1510 = vpack.c.b16 %v1495, %v1494
    %v1511 = vpack.c.b16 %v1497, %v1496
    %v1512 = vpack.c.b16 %v1499, %v1498
    %v1513 = vpack.c.b16 %v1501, %v1500
    %v1514 = vpack.c.b16 %v1503, %v1502
    %v1515 = vpack.c.b16 %v1505, %v1504
    %v1516 = vpack.c.b16 %v1507, %v1506
    %v1517 = vpack.c.b16 %v1509, %v1508
    %1526 = vmatprep.subr.bf16.mxu0 0
    %1527 = vmatpush1.bf16.msra.mxu0 %v1510
    %1528 = vmatprep.subr.bf16.mxu0 0
    %1529 = vmatpush1.bf16.msra.mxu0 %v1511
    %1530 = vmatprep.subr.bf16.mxu0 0
    %1531 = vmatpush1.bf16.msra.mxu0 %v1512
    %1532 = vmatprep.subr.bf16.mxu0 0
    %1533 = vmatpush1.bf16.msra.mxu0 %v1513
    %1534 = vmatprep.subr.bf16.mxu0 0
    %1535 = vmatpush1.bf16.msra.mxu0 %v1514
    %1536 = vmatprep.subr.bf16.mxu0 0
    %1537 = vmatpush1.bf16.msra.mxu0 %v1515
    %1538 = vmatprep.subr.bf16.mxu0 0
    %1539 = vmatpush1.bf16.msra.mxu0 %v1516
    %1540 = vmatprep.subr.bf16.mxu0 0
    %1541 = vmatpush1.bf16.msra.mxu0 %v1517
    %1542 = vmatprep.subr.bf16.mxu0 0
    %1543 = vmatpush1.bf16.msra.mxu0 0
    %1544 = vmatprep.subr.bf16.mxu0 0
    %1545 = vmatpush1.bf16.msra.mxu0 0
    %1546 = vmatprep.subr.bf16.mxu0 0
    %1547 = vmatpush1.bf16.msra.mxu0 0
    %1548 = vmatprep.subr.bf16.mxu0 0
    %1549 = vmatpush1.bf16.msra.mxu0 0
    %1550 = vmatprep.subr.bf16.mxu0 0
    %1551 = vmatpush1.bf16.msra.mxu0 0
    %1552 = vmatprep.subr.bf16.mxu0 0
    %1553 = vmatpush1.bf16.msra.mxu0 0
    %1554 = vmatprep.subr.bf16.mxu0 0
    %1555 = vmatpush1.bf16.msra.mxu0 0
    %1556 = vmatprep.subr.bf16.mxu0 0
    %1557 = vmatpush1.bf16.msra.mxu0 0
    %1558 = vmatprep.mubr.bf16.mxu0 0
    %1559 = vmatmul.mubr.bf16.gmra.mrb[0].mxu0 %v1459
    %v1560 = vpop.f32.mrb[0].mxu0
    %v1561 = vadd.f32 0.0, %v1560
    %v1562 = vpop.f32.mrb[0].mxu0
    %v1563 = vpop.f32.mrb[0].mxu0
    %v1564 = vadd.f32 0.0, %v1563
    %v1565 = vpop.f32.mrb[0].mxu0
    %1566 = vmatprep.mubr.bf16.mxu0 0
    %1567 = vmatmul.mubr.bf16.gmra.mrb[0].mxu0 %v1460
    %v1568 = vpop.f32.mrb[0].mxu0
    %v1569 = vadd.f32 0.0, %v1568
    %v1570 = vpop.f32.mrb[0].mxu0
    %v1571 = vpop.f32.mrb[0].mxu0
    %v1572 = vadd.f32 0.0, %v1571
    %v1573 = vpop.f32.mrb[0].mxu0
    %1574 = vdwg.mxu0
    %v1575 = vadd.f32 %v1427, %v1561
    %v1576 = vadd.f32 %v1428, %v1564
    %v1577 = vadd.f32 %v1429, %v1569
    %v1578 = vadd.f32 %v1430, %v1572
    %vm1579 = vcmask 523264
    %v1580 = vsel %vm1579, %v1575, -inf
    %1581 = vmax.xlane.f32.xlu0 %v1580
    %v1582 = vpop.xlane.xlu0 %1581
    %v1583 = vsel %vm1579, %v1576, -inf
    %1584 = vmax.xlane.f32.xlu0 %v1583
    %v1585 = vpop.xlane.xlu0 %1584
    %v1586 = vsel %vm1579, %v1577, -inf
    %1587 = vmax.xlane.f32.xlu0 %v1586
    %v1588 = vpop.xlane.xlu0 %1587
    %v1589 = vsel %vm1579, %v1578, -inf
    %1590 = vmax.xlane.f32.xlu0 %v1589
    %v1591 = vpop.xlane.xlu0 %1590
    %v1592 = vsub.f32 %v1575, %v1582
    %v1593 = vsub.f32 %v1576, %v1585
    %v1594 = vsub.f32 %v1577, %v1588
    %v1595 = vsub.f32 %v1578, %v1591
    %v1596 = vmul.f32 %v1592, 1.442695
    %v1597 = vpow.pop %v1596
    %v1598 = vmul.f32 %v1593, 1.442695
    %v1599 = vpow.pop %v1598
    %v1600 = vmul.f32 %v1594, 1.442695
    %v1601 = vpow.pop %v1600
    %v1602 = vmul.f32 %v1595, 1.442695
    %v1603 = vpow.pop %v1602
    %v1604 = vld [vmem:[%s4] sm:$0xff]
    %v1605 = vld [vmem:[%s4 + $0x8] sm:$0xff]
    %v1606 = vld [vmem:[%s4 + $0x10] sm:$0xff]
    %v1607 = vld [vmem:[%s4 + $0x18] sm:$0xff]
    %v1608 = vld [vmem:[%s4 + $0x20] sm:$0xff]
    %v1609 = vld [vmem:[%s4 + $0x28] sm:$0xff]
    %v1610 = vld [vmem:[%s4 + $0x30] sm:$0xff]
    %v1611 = vld [vmem:[%s4 + $0x38] sm:$0xff]
    %v1613 = vsel %vm1579, %v1597, 0
    %v1616 = vsel %vm1579, %v1599, 0
    %v1619 = vsel %vm1579, %v1601, 0
    %v1622 = vsel %vm1579, %v1603, 0
    %1624 = vmatprep.subr.mxu0 0.0
    %1625 = vmatpush1.msra.mxu0 %v1604
    %1626 = vmatprep.subr.mxu0 0.0
    %1627 = vmatpush1.msra.mxu0 %v1605
    %1628 = vmatprep.subr.mxu0 0.0
    %1629 = vmatpush1.msra.mxu0 %v1606
    %1630 = vmatprep.subr.mxu0 0.0
    %1631 = vmatpush1.msra.mxu0 %v1607
    %1632 = vmatprep.subr.mxu0 0.0
    %1633 = vmatpush1.msra.mxu0 %v1608
    %1634 = vmatprep.subr.mxu0 0.0
    %1635 = vmatpush1.msra.mxu0 %v1609
    %1636 = vmatprep.subr.mxu0 0.0
    %1637 = vmatpush1.msra.mxu0 %v1610
    %1638 = vmatprep.subr.mxu0 0.0
    %1639 = vmatpush1.msra.mxu0 %v1611
    %1640 = vmatprep.subr.mxu0 0.0
    %1641 = vmatpush1.msra.mxu0 0.0
    %1642 = vmatprep.subr.mxu0 0.0
    %1643 = vmatpush1.msra.mxu0 0.0
    %1644 = vmatprep.subr.mxu0 0.0
    %1645 = vmatpush1.msra.mxu0 0.0
    %1646 = vmatprep.subr.mxu0 0.0
    %1647 = vmatpush1.msra.mxu0 0.0
    %1648 = vmatprep.subr.mxu0 0.0
    %1649 = vmatpush1.msra.mxu0 0.0
    %1650 = vmatprep.subr.mxu0 0.0
    %1651 = vmatpush1.msra.mxu0 0.0
    %1652 = vmatprep.subr.mxu0 0.0
    %1653 = vmatpush1.msra.mxu0 0.0
    %1654 = vmatprep.subr.mxu0 0.0
    %1655 = vmatpush1.msra.mxu0 0.0
    %1656 = vmatprep.subr.mxu0 0.0
    %1657 = vmatpush1.msra.mxu0 0.0
    %1658 = vmatprep.subr.mxu0 0.0
    %1659 = vmatpush1.msra.mxu0 0.0
    %1660 = vmatprep.subr.mxu0 0.0
    %1661 = vmatpush1.msra.mxu0 0.0
    %1662 = vmatprep.subr.mxu0 0.0
    %1663 = vmatpush1.msra.mxu0 0.0
    %1664 = vmatprep.subr.mxu0 0.0
    %1665 = vmatpush1.msra.mxu0 0.0
    %1666 = vmatprep.subr.mxu0 0.0
    %1667 = vmatpush1.msra.mxu0 0.0
    %1668 = vmatprep.subr.mxu0 0.0
    %1669 = vmatpush1.msra.mxu0 0.0
    %1670 = vmatprep.subr.mxu0 0.0
    %1671 = vmatpush1.msra.mxu0 0.0
    %1672 = vmatprep.subr.mxu0 0.0
    %1673 = vmatpush1.msra.mxu0 0.0
    %1674 = vmatprep.subr.mxu0 0.0
    %1675 = vmatpush1.msra.mxu0 0.0
    %1676 = vmatprep.subr.mxu0 0.0
    %1677 = vmatpush1.msra.mxu0 0.0
    %1678 = vmatprep.subr.mxu0 0.0
    %1679 = vmatpush1.msra.mxu0 0.0
    %1680 = vmatprep.subr.mxu0 0.0
    %1681 = vmatpush1.msra.mxu0 0.0
    %1682 = vmatprep.subr.mxu0 0.0
    %1683 = vmatpush1.msra.mxu0 0.0
    %1684 = vmatprep.subr.mxu0 0.0
    %1685 = vmatpush1.msra.mxu0 0.0
    %1686 = vmatprep.subr.mxu0 0.0
    %1687 = vmatpush1.msra.mxu0 0.0
    %1688 = vmatprep.mubr.f32.mxu0 0.0
    %1689 = vmatmul.mubr.f32.gmra.mrb[0].mxu0 %v1613
    %v1690 = vpop.f32.mrb[0].mxu0
    %v1691 = vadd.f32 0.0, %v1690
    %v1692 = vpop.f32.mrb[0].mxu0
    %1693 = vmatprep.mubr.f32.mxu0 0.0
    %1694 = vmatmul.mubr.f32.gmra.mrb[0].mxu0 %v1616
    %v1695 = vpop.f32.mrb[0].mxu0
    %v1696 = vadd.f32 0.0, %v1695
    %v1697 = vpop.f32.mrb[0].mxu0
    %1698 = vmatprep.mubr.f32.mxu0 0.0
    %1699 = vmatmul.mubr.f32.gmra.mrb[0].mxu0 %v1619
    %v1700 = vpop.f32.mrb[0].mxu0
    %v1701 = vadd.f32 0.0, %v1700
    %v1702 = vpop.f32.mrb[0].mxu0
    %1703 = vmatprep.mubr.f32.mxu0 0.0
    %1704 = vmatmul.mubr.f32.gmra.mrb[0].mxu0 %v1622
    %v1705 = vpop.f32.mrb[0].mxu0
    %v1706 = vadd.f32 0.0, %v1705
    %v1707 = vpop.f32.mrb[0].mxu0
    %1708 = vdwg.mxu0
    %v1709 = vrcp.pop %v1691
    %v1710 = vmul.f32 %v1597, %v1709
    %v1711 = vrcp.pop %v1696
    %v1712 = vmul.f32 %v1599, %v1711
    %v1713 = vrcp.pop %v1701
    %v1714 = vmul.f32 %v1601, %v1713
    %v1715 = vrcp.pop %v1706
    %v1716 = vmul.f32 %v1603, %v1715
    %v1717 = vpack.c.bf16 %v1712, %v1710
    %v1718 = vpack.c.bf16 %v1716, %v1714
    %v1719 = vld [vmem:[%s3] sm:$0xf]
    %v1720 = vld [vmem:[%s3 + $0x4] sm:$0xf]
    %v1721 = vld [vmem:[%s3 + $0x8] sm:$0xf]
    %v1722 = vld [vmem:[%s3 + $0xc] sm:$0xf]
    %v1723 = vld [vmem:[%s3 + $0x10] sm:$0xf]
    %v1724 = vld [vmem:[%s3 + $0x14] sm:$0xf]
    %v1725 = vld [vmem:[%s3 + $0x18] sm:$0xf]
    %v1726 = vld [vmem:[%s3 + $0x1c] sm:$0xf]
    %v1735 = vunpack.c.l.b16 %v1719
    %v1736 = vunpack.c.l.b16 %v1720
    %v1737 = vunpack.c.l.b16 %v1721
    %v1738 = vunpack.c.l.b16 %v1722
    %v1739 = vunpack.c.l.b16 %v1723
    %v1740 = vunpack.c.l.b16 %v1724
    %v1741 = vunpack.c.l.b16 %v1725
    %v1742 = vunpack.c.l.b16 %v1726
    %v1743 = vpack.c.b16 %v1736, %v1735
    %v1744 = vpack.c.b16 %v1738, %v1737
    %v1745 = vpack.c.b16 %v1740, %v1739
    %v1746 = vpack.c.b16 %v1742, %v1741
    %v1752 = vsel %vm1579, %v1717, 0
    %v1755 = vsel %vm1579, %v1718, 0
    %1757 = vmatprep.subr.bf16.mxu0 0
    %1758 = vmatpush1.bf16.msra.mxu0 %v1743
    %1759 = vmatprep.subr.bf16.mxu0 0
    %1760 = vmatpush1.bf16.msra.mxu0 %v1744
    %1761 = vmatprep.subr.bf16.mxu0 0
    %1762 = vmatpush1.bf16.msra.mxu0 %v1745
    %1763 = vmatprep.subr.bf16.mxu0 0
    %1764 = vmatpush1.bf16.msra.mxu0 %v1746
    %1765 = vmatprep.subr.bf16.mxu0 0
    %1766 = vmatpush1.bf16.msra.mxu0 0
    %1767 = vmatprep.subr.bf16.mxu0 0
    %1768 = vmatpush1.bf16.msra.mxu0 0
    %1769 = vmatprep.subr.bf16.mxu0 0
    %1770 = vmatpush1.bf16.msra.mxu0 0
    %1771 = vmatprep.subr.bf16.mxu0 0
    %1772 = vmatpush1.bf16.msra.mxu0 0
    %1773 = vmatprep.subr.bf16.mxu0 0
    %1774 = vmatpush1.bf16.msra.mxu0 0
    %1775 = vmatprep.subr.bf16.mxu0 0
    %1776 = vmatpush1.bf16.msra.mxu0 0
    %1777 = vmatprep.subr.bf16.mxu0 0
    %1778 = vmatpush1.bf16.msra.mxu0 0
    %1779 = vmatprep.subr.bf16.mxu0 0
    %1780 = vmatpush1.bf16.msra.mxu0 0
    %1781 = vmatprep.subr.bf16.mxu0 0
    %1782 = vmatpush1.bf16.msra.mxu0 0
    %1783 = vmatprep.subr.bf16.mxu0 0
    %1784 = vmatpush1.bf16.msra.mxu0 0
    %1785 = vmatprep.subr.bf16.mxu0 0
    %1786 = vmatpush1.bf16.msra.mxu0 0
    %1787 = vmatprep.subr.bf16.mxu0 0
    %1788 = vmatpush1.bf16.msra.mxu0 0
    %1789 = vmatprep.mubr.bf16.mxu0 0
    %1790 = vmatmul.mubr.bf16.gmra.mrb[0].mxu0 %v1752
    %v1791 = vpop.f32.mrb[0].mxu0
    %v1792 = vadd.f32 0.0, %v1791
    %v1793 = vpop.f32.mrb[0].mxu0
    %v1794 = vpop.f32.mrb[0].mxu0
    %v1795 = vadd.f32 0.0, %v1794
    %v1796 = vpop.f32.mrb[0].mxu0
    %1797 = vmatprep.mubr.bf16.mxu0 0
    %1798 = vmatmul.mubr.bf16.gmra.mrb[0].mxu0 %v1755
    %v1799 = vpop.f32.mrb[0].mxu0
    %v1800 = vadd.f32 0.0, %v1799
    %v1801 = vpop.f32.mrb[0].mxu0
    %v1802 = vpop.f32.mrb[0].mxu0
    %v1803 = vadd.f32 0.0, %v1802
    %v1804 = vpop.f32.mrb[0].mxu0
    %1805 = vdwg.mxu0
    %v1806 = vlaneseq
    %v1807 = vshrl.u32 %v1806, 7
    %v1808 = vsub.s32 0, %v1807
    %v1809 = vrot.slane %v348, %v1808
    %v1810 = vlaneseq
    %v1811 = vshrl.u32 %v1810, 7
    %v1812 = vsub.s32 0, %v1811
    %v1813 = vrot.slane %v351, %v1812
    %v1814 = vlaneseq
    %v1815 = vshrl.u32 %v1814, 7
    %v1816 = vsub.s32 0, %v1815
    %v1817 = vrot.slane %v356, %v1816
    %v1818 = vlaneseq
    %v1819 = vshrl.u32 %v1818, 7
    %v1820 = vsub.s32 0, %v1819
    %v1821 = vrot.slane %v359, %v1820
    %v1822 = vmul.f32 %v1792, %v1809
    %v1823 = vmul.f32 %v1795, %v1813
    %v1824 = vmul.f32 %v1800, %v1817
    %v1825 = vmul.f32 %v1803, %v1821
    %v1826 = vadd.f32 %v1822, 0.0
    %v1827 = vadd.f32 %v1823, 0.0
    %v1828 = vadd.f32 %v1824, 0.0
    %v1829 = vadd.f32 %v1825, 0.0
    %s1830 = scalar_lea.vmem %s3, 32
    %v1831 = vld [vmem:[%s1830] sm:$0xf]
    %v1832 = vld [vmem:[%s1830 + $0x4] sm:$0xf]
    %v1833 = vld [vmem:[%s1830 + $0x8] sm:$0xf]
    %v1834 = vld [vmem:[%s1830 + $0xc] sm:$0xf]
    %v1835 = vld [vmem:[%s1830 + $0x10] sm:$0xf]
    %v1836 = vld [vmem:[%s1830 + $0x14] sm:$0xf]
    %v1837 = vld [vmem:[%s1830 + $0x18] sm:$0xf]
    %v1838 = vld [vmem:[%s1830 + $0x1c] sm:$0xf]
    %v1847 = vunpack.c.l.b16 %v1831
    %v1848 = vunpack.c.l.b16 %v1832
    %v1849 = vunpack.c.l.b16 %v1833
    %v1850 = vunpack.c.l.b16 %v1834
    %v1851 = vunpack.c.l.b16 %v1835
    %v1852 = vunpack.c.l.b16 %v1836
    %v1853 = vunpack.c.l.b16 %v1837
    %v1854 = vunpack.c.l.b16 %v1838
    %v1855 = vpack.c.b16 %v1848, %v1847
    %v1856 = vpack.c.b16 %v1850, %v1849
    %v1857 = vpack.c.b16 %v1852, %v1851
    %v1858 = vpack.c.b16 %v1854, %v1853
    %1863 = vmatprep.subr.bf16.mxu0 0
    %1864 = vmatpush1.bf16.msra.mxu0 %v1855
    %1865 = vmatprep.subr.bf16.mxu0 0
    %1866 = vmatpush1.bf16.msra.mxu0 %v1856
    %1867 = vmatprep.subr.bf16.mxu0 0
    %1868 = vmatpush1.bf16.msra.mxu0 %v1857
    %1869 = vmatprep.subr.bf16.mxu0 0
    %1870 = vmatpush1.bf16.msra.mxu0 %v1858
    %1871 = vmatprep.subr.bf16.mxu0 0
    %1872 = vmatpush1.bf16.msra.mxu0 0
    %1873 = vmatprep.subr.bf16.mxu0 0
    %1874 = vmatpush1.bf16.msra.mxu0 0
    %1875 = vmatprep.subr.bf16.mxu0 0
    %1876 = vmatpush1.bf16.msra.mxu0 0
    %1877 = vmatprep.subr.bf16.mxu0 0
    %1878 = vmatpush1.bf16.msra.mxu0 0
    %1879 = vmatprep.subr.bf16.mxu0 0
    %1880 = vmatpush1.bf16.msra.mxu0 0
    %1881 = vmatprep.subr.bf16.mxu0 0
    %1882 = vmatpush1.bf16.msra.mxu0 0
    %1883 = vmatprep.subr.bf16.mxu0 0
    %1884 = vmatpush1.bf16.msra.mxu0 0
    %1885 = vmatprep.subr.bf16.mxu0 0
    %1886 = vmatpush1.bf16.msra.mxu0 0
    %1887 = vmatprep.subr.bf16.mxu0 0
    %1888 = vmatpush1.bf16.msra.mxu0 0
    %1889 = vmatprep.subr.bf16.mxu0 0
    %1890 = vmatpush1.bf16.msra.mxu0 0
    %1891 = vmatprep.subr.bf16.mxu0 0
    %1892 = vmatpush1.bf16.msra.mxu0 0
    %1893 = vmatprep.subr.bf16.mxu0 0
    %1894 = vmatpush1.bf16.msra.mxu0 0
    %1895 = vmatprep.mubr.bf16.mxu0 0
    %1896 = vmatmul.mubr.bf16.gmra.mrb[0].mxu0 %v1752
    %v1897 = vpop.f32.mrb[0].mxu0
    %v1898 = vadd.f32 0.0, %v1897
    %v1899 = vpop.f32.mrb[0].mxu0
    %v1900 = vpop.f32.mrb[0].mxu0
    %v1901 = vadd.f32 0.0, %v1900
    %v1902 = vpop.f32.mrb[0].mxu0
    %1903 = vmatprep.mubr.bf16.mxu0 0
    %1904 = vmatmul.mubr.bf16.gmra.mrb[0].mxu0 %v1755
    %v1905 = vpop.f32.mrb[0].mxu0
    %v1906 = vadd.f32 0.0, %v1905
    %v1907 = vpop.f32.mrb[0].mxu0
    %v1908 = vpop.f32.mrb[0].mxu0
    %v1909 = vadd.f32 0.0, %v1908
    %v1910 = vpop.f32.mrb[0].mxu0
    %1911 = vdwg.mxu0
    %v1912 = vlaneseq
    %v1913 = vshrl.u32 %v1912, 7
    %v1914 = vsub.s32 1, %v1913
    %v1915 = vrot.slane %v348, %v1914
    %v1916 = vlaneseq
    %v1917 = vshrl.u32 %v1916, 7
    %v1918 = vsub.s32 1, %v1917
    %v1919 = vrot.slane %v351, %v1918
    %v1920 = vlaneseq
    %v1921 = vshrl.u32 %v1920, 7
    %v1922 = vsub.s32 1, %v1921
    %v1923 = vrot.slane %v356, %v1922
    %v1924 = vlaneseq
    %v1925 = vshrl.u32 %v1924, 7
    %v1926 = vsub.s32 1, %v1925
    %v1927 = vrot.slane %v359, %v1926
    %v1928 = vmul.f32 %v1898, %v1915
    %v1929 = vmul.f32 %v1901, %v1919
    %v1930 = vmul.f32 %v1906, %v1923
    %v1931 = vmul.f32 %v1909, %v1927
    %v1932 = vadd.f32 %v1826, %v1928
    %v1933 = vadd.f32 %v1827, %v1929
    %v1934 = vadd.f32 %v1828, %v1930
    %v1935 = vadd.f32 %v1829, %v1931
    %s1936 = scalar_lea.vmem %s3, 64
    %v1937 = vld [vmem:[%s1936] sm:$0xf]
    %v1938 = vld [vmem:[%s1936 + $0x4] sm:$0xf]
    %v1939 = vld [vmem:[%s1936 + $0x8] sm:$0xf]
    %v1940 = vld [vmem:[%s1936 + $0xc] sm:$0xf]
    %v1941 = vld [vmem:[%s1936 + $0x10] sm:$0xf]
    %v1942 = vld [vmem:[%s1936 + $0x14] sm:$0xf]
    %v1943 = vld [vmem:[%s1936 + $0x18] sm:$0xf]
    %v1944 = vld [vmem:[%s1936 + $0x1c] sm:$0xf]
    %v1953 = vunpack.c.l.b16 %v1937
    %v1954 = vunpack.c.l.b16 %v1938
    %v1955 = vunpack.c.l.b16 %v1939
    %v1956 = vunpack.c.l.b16 %v1940
    %v1957 = vunpack.c.l.b16 %v1941
    %v1958 = vunpack.c.l.b16 %v1942
    %v1959 = vunpack.c.l.b16 %v1943
    %v1960 = vunpack.c.l.b16 %v1944
    %v1961 = vpack.c.b16 %v1954, %v1953
    %v1962 = vpack.c.b16 %v1956, %v1955
    %v1963 = vpack.c.b16 %v1958, %v1957
    %v1964 = vpack.c.b16 %v1960, %v1959
    %1969 = vmatprep.subr.bf16.mxu0 0
    %1970 = vmatpush1.bf16.msra.mxu0 %v1961
    %1971 = vmatprep.subr.bf16.mxu0 0
    %1972 = vmatpush1.bf16.msra.mxu0 %v1962
    %1973 = vmatprep.subr.bf16.mxu0 0
    %1974 = vmatpush1.bf16.msra.mxu0 %v1963
    %1975 = vmatprep.subr.bf16.mxu0 0
    %1976 = vmatpush1.bf16.msra.mxu0 %v1964
    %1977 = vmatprep.subr.bf16.mxu0 0
    %1978 = vmatpush1.bf16.msra.mxu0 0
    %1979 = vmatprep.subr.bf16.mxu0 0
    %1980 = vmatpush1.bf16.msra.mxu0 0
    %1981 = vmatprep.subr.bf16.mxu0 0
    %1982 = vmatpush1.bf16.msra.mxu0 0
    %1983 = vmatprep.subr.bf16.mxu0 0
    %1984 = vmatpush1.bf16.msra.mxu0 0
    %1985 = vmatprep.subr.bf16.mxu0 0
    %1986 = vmatpush1.bf16.msra.mxu0 0
    %1987 = vmatprep.subr.bf16.mxu0 0
    %1988 = vmatpush1.bf16.msra.mxu0 0
    %1989 = vmatprep.subr.bf16.mxu0 0
    %1990 = vmatpush1.bf16.msra.mxu0 0
    %1991 = vmatprep.subr.bf16.mxu0 0
    %1992 = vmatpush1.bf16.msra.mxu0 0
    %1993 = vmatprep.subr.bf16.mxu0 0
    %1994 = vmatpush1.bf16.msra.mxu0 0
    %1995 = vmatprep.subr.bf16.mxu0 0
    %1996 = vmatpush1.bf16.msra.mxu0 0
    %1997 = vmatprep.subr.bf16.mxu0 0
    %1998 = vmatpush1.bf16.msra.mxu0 0
    %1999 = vmatprep.subr.bf16.mxu0 0
    %2000 = vmatpush1.bf16.msra.mxu0 0
    %2001 = vmatprep.mubr.bf16.mxu0 0
    %2002 = vmatmul.mubr.bf16.gmra.mrb[0].mxu0 %v1752
    %v2003 = vpop.f32.mrb[0].mxu0
    %v2004 = vadd.f32 0.0, %v2003
    %v2005 = vpop.f32.mrb[0].mxu0
    %v2006 = vpop.f32.mrb[0].mxu0
    %v2007 = vadd.f32 0.0, %v2006
    %v2008 = vpop.f32.mrb[0].mxu0
    %2009 = vmatprep.mubr.bf16.mxu0 0
    %2010 = vmatmul.mubr.bf16.gmra.mrb[0].mxu0 %v1755
    %v2011 = vpop.f32.mrb[0].mxu0
    %v2012 = vadd.f32 0.0, %v2011
    %v2013 = vpop.f32.mrb[0].mxu0
    %v2014 = vpop.f32.mrb[0].mxu0
    %v2015 = vadd.f32 0.0, %v2014
    %v2016 = vpop.f32.mrb[0].mxu0
    %2017 = vdwg.mxu0
    %v2018 = vlaneseq
    %v2019 = vshrl.u32 %v2018, 7
    %v2020 = vsub.s32 2, %v2019
    %v2021 = vrot.slane %v348, %v2020
    %v2022 = vlaneseq
    %v2023 = vshrl.u32 %v2022, 7
    %v2024 = vsub.s32 2, %v2023
    %v2025 = vrot.slane %v351, %v2024
    %v2026 = vlaneseq
    %v2027 = vshrl.u32 %v2026, 7
    %v2028 = vsub.s32 2, %v2027
    %v2029 = vrot.slane %v356, %v2028
    %v2030 = vlaneseq
    %v2031 = vshrl.u32 %v2030, 7
    %v2032 = vsub.s32 2, %v2031
    %v2033 = vrot.slane %v359, %v2032
    %v2034 = vmul.f32 %v2004, %v2021
    %v2035 = vmul.f32 %v2007, %v2025
    %v2036 = vmul.f32 %v2012, %v2029
    %v2037 = vmul.f32 %v2015, %v2033
    %v2038 = vadd.f32 %v1932, %v2034
    %v2039 = vadd.f32 %v1933, %v2035
    %v2040 = vadd.f32 %v1934, %v2036
    %v2041 = vadd.f32 %v1935, %v2037
    %s2042 = scalar_lea.vmem %s3, 96
    %v2043 = vld [vmem:[%s2042] sm:$0xf]
    %v2044 = vld [vmem:[%s2042 + $0x4] sm:$0xf]
    %v2045 = vld [vmem:[%s2042 + $0x8] sm:$0xf]
    %v2046 = vld [vmem:[%s2042 + $0xc] sm:$0xf]
    %v2047 = vld [vmem:[%s2042 + $0x10] sm:$0xf]
    %v2048 = vld [vmem:[%s2042 + $0x14] sm:$0xf]
    %v2049 = vld [vmem:[%s2042 + $0x18] sm:$0xf]
    %v2050 = vld [vmem:[%s2042 + $0x1c] sm:$0xf]
    %v2059 = vunpack.c.l.b16 %v2043
    %v2060 = vunpack.c.l.b16 %v2044
    %v2061 = vunpack.c.l.b16 %v2045
    %v2062 = vunpack.c.l.b16 %v2046
    %v2063 = vunpack.c.l.b16 %v2047
    %v2064 = vunpack.c.l.b16 %v2048
    %v2065 = vunpack.c.l.b16 %v2049
    %v2066 = vunpack.c.l.b16 %v2050
    %v2067 = vpack.c.b16 %v2060, %v2059
    %v2068 = vpack.c.b16 %v2062, %v2061
    %v2069 = vpack.c.b16 %v2064, %v2063
    %v2070 = vpack.c.b16 %v2066, %v2065
    %2075 = vmatprep.subr.bf16.mxu0 0
    %2076 = vmatpush1.bf16.msra.mxu0 %v2067
    %2077 = vmatprep.subr.bf16.mxu0 0
    %2078 = vmatpush1.bf16.msra.mxu0 %v2068
    %2079 = vmatprep.subr.bf16.mxu0 0
    %2080 = vmatpush1.bf16.msra.mxu0 %v2069
    %2081 = vmatprep.subr.bf16.mxu0 0
    %2082 = vmatpush1.bf16.msra.mxu0 %v2070
    %2083 = vmatprep.subr.bf16.mxu0 0
    %2084 = vmatpush1.bf16.msra.mxu0 0
    %2085 = vmatprep.subr.bf16.mxu0 0
    %2086 = vmatpush1.bf16.msra.mxu0 0
    %2087 = vmatprep.subr.bf16.mxu0 0
    %2088 = vmatpush1.bf16.msra.mxu0 0
    %2089 = vmatprep.subr.bf16.mxu0 0
    %2090 = vmatpush1.bf16.msra.mxu0 0
    %2091 = vmatprep.subr.bf16.mxu0 0
    %2092 = vmatpush1.bf16.msra.mxu0 0
    %2093 = vmatprep.subr.bf16.mxu0 0
    %2094 = vmatpush1.bf16.msra.mxu0 0
    %2095 = vmatprep.subr.bf16.mxu0 0
    %2096 = vmatpush1.bf16.msra.mxu0 0
    %2097 = vmatprep.subr.bf16.mxu0 0
    %2098 = vmatpush1.bf16.msra.mxu0 0
    %2099 = vmatprep.subr.bf16.mxu0 0
    %2100 = vmatpush1.bf16.msra.mxu0 0
    %2101 = vmatprep.subr.bf16.mxu0 0
    %2102 = vmatpush1.bf16.msra.mxu0 0
    %2103 = vmatprep.subr.bf16.mxu0 0
    %2104 = vmatpush1.bf16.msra.mxu0 0
    %2105 = vmatprep.subr.bf16.mxu0 0
    %2106 = vmatpush1.bf16.msra.mxu0 0
    %2107 = vmatprep.mubr.bf16.mxu0 0
    %2108 = vmatmul.mubr.bf16.gmra.mrb[0].mxu0 %v1752
    %v2109 = vpop.f32.mrb[0].mxu0
    %v2110 = vadd.f32 0.0, %v2109
    %v2111 = vpop.f32.mrb[0].mxu0
    %v2112 = vpop.f32.mrb[0].mxu0
    %v2113 = vadd.f32 0.0, %v2112
    %v2114 = vpop.f32.mrb[0].mxu0
    %2115 = vmatprep.mubr.bf16.mxu0 0
    %2116 = vmatmul.mubr.bf16.gmra.mrb[0].mxu0 %v1755
    %v2117 = vpop.f32.mrb[0].mxu0
    %v2118 = vadd.f32 0.0, %v2117
    %v2119 = vpop.f32.mrb[0].mxu0
    %v2120 = vpop.f32.mrb[0].mxu0
    %v2121 = vadd.f32 0.0, %v2120
    %v2122 = vpop.f32.mrb[0].mxu0
    %2123 = vdwg.mxu0
    %v2124 = vlaneseq
    %v2125 = vshrl.u32 %v2124, 7
    %v2126 = vsub.s32 3, %v2125
    %v2127 = vrot.slane %v348, %v2126
    %v2128 = vlaneseq
    %v2129 = vshrl.u32 %v2128, 7
    %v2130 = vsub.s32 3, %v2129
    %v2131 = vrot.slane %v351, %v2130
    %v2132 = vlaneseq
    %v2133 = vshrl.u32 %v2132, 7
    %v2134 = vsub.s32 3, %v2133
    %v2135 = vrot.slane %v356, %v2134
    %v2136 = vlaneseq
    %v2137 = vshrl.u32 %v2136, 7
    %v2138 = vsub.s32 3, %v2137
    %v2139 = vrot.slane %v359, %v2138
    %v2140 = vmul.f32 %v2110, %v2127
    %v2141 = vmul.f32 %v2113, %v2131
    %v2142 = vmul.f32 %v2118, %v2135
    %v2143 = vmul.f32 %v2121, %v2139
    %v2144 = vadd.f32 %v2038, %v2140
    %v2145 = vadd.f32 %v2039, %v2141
    %v2146 = vadd.f32 %v2040, %v2142
    %v2147 = vadd.f32 %v2041, %v2143
    %s2148 = scalar_lea.vmem %s3, 128
    %v2149 = vld [vmem:[%s2148] sm:$0xf]
    %v2150 = vld [vmem:[%s2148 + $0x4] sm:$0xf]
    %v2151 = vld [vmem:[%s2148 + $0x8] sm:$0xf]
    %v2152 = vld [vmem:[%s2148 + $0xc] sm:$0xf]
    %v2153 = vld [vmem:[%s2148 + $0x10] sm:$0xf]
    %v2154 = vld [vmem:[%s2148 + $0x14] sm:$0xf]
    %v2155 = vld [vmem:[%s2148 + $0x18] sm:$0xf]
    %v2156 = vld [vmem:[%s2148 + $0x1c] sm:$0xf]
    %v2165 = vunpack.c.l.b16 %v2149
    %v2166 = vunpack.c.l.b16 %v2150
    %v2167 = vunpack.c.l.b16 %v2151
    %v2168 = vunpack.c.l.b16 %v2152
    %v2169 = vunpack.c.l.b16 %v2153
    %v2170 = vunpack.c.l.b16 %v2154
    %v2171 = vunpack.c.l.b16 %v2155
    %v2172 = vunpack.c.l.b16 %v2156
    %v2173 = vpack.c.b16 %v2166, %v2165
    %v2174 = vpack.c.b16 %v2168, %v2167
    %v2175 = vpack.c.b16 %v2170, %v2169
    %v2176 = vpack.c.b16 %v2172, %v2171
    %2181 = vmatprep.subr.bf16.mxu0 0
    %2182 = vmatpush1.bf16.msra.mxu0 %v2173
    %2183 = vmatprep.subr.bf16.mxu0 0
    %2184 = vmatpush1.bf16.msra.mxu0 %v2174
    %2185 = vmatprep.subr.bf16.mxu0 0
    %2186 = vmatpush1.bf16.msra.mxu0 %v2175
    %2187 = vmatprep.subr.bf16.mxu0 0
    %2188 = vmatpush1.bf16.msra.mxu0 %v2176
    %2189 = vmatprep.subr.bf16.mxu0 0
    %2190 = vmatpush1.bf16.msra.mxu0 0
    %2191 = vmatprep.subr.bf16.mxu0 0
    %2192 = vmatpush1.bf16.msra.mxu0 0
    %2193 = vmatprep.subr.bf16.mxu0 0
    %2194 = vmatpush1.bf16.msra.mxu0 0
    %2195 = vmatprep.subr.bf16.mxu0 0
    %2196 = vmatpush1.bf16.msra.mxu0 0
    %2197 = vmatprep.subr.bf16.mxu0 0
    %2198 = vmatpush1.bf16.msra.mxu0 0
    %2199 = vmatprep.subr.bf16.mxu0 0
    %2200 = vmatpush1.bf16.msra.mxu0 0
    %2201 = vmatprep.subr.bf16.mxu0 0
    %2202 = vmatpush1.bf16.msra.mxu0 0
    %2203 = vmatprep.subr.bf16.mxu0 0
    %2204 = vmatpush1.bf16.msra.mxu0 0
    %2205 = vmatprep.subr.bf16.mxu0 0
    %2206 = vmatpush1.bf16.msra.mxu0 0
    %2207 = vmatprep.subr.bf16.mxu0 0
    %2208 = vmatpush1.bf16.msra.mxu0 0
    %2209 = vmatprep.subr.bf16.mxu0 0
    %2210 = vmatpush1.bf16.msra.mxu0 0
    %2211 = vmatprep.subr.bf16.mxu0 0
    %2212 = vmatpush1.bf16.msra.mxu0 0
    %2213 = vmatprep.mubr.bf16.mxu0 0
    %2214 = vmatmul.mubr.bf16.gmra.mrb[0].mxu0 %v1752
    %v2215 = vpop.f32.mrb[0].mxu0
    %v2216 = vadd.f32 0.0, %v2215
    %v2217 = vpop.f32.mrb[0].mxu0
    %v2218 = vpop.f32.mrb[0].mxu0
    %v2219 = vadd.f32 0.0, %v2218
    %v2220 = vpop.f32.mrb[0].mxu0
    %2221 = vmatprep.mubr.bf16.mxu0 0
    %2222 = vmatmul.mubr.bf16.gmra.mrb[0].mxu0 %v1755
    %v2223 = vpop.f32.mrb[0].mxu0
    %v2224 = vadd.f32 0.0, %v2223
    %v2225 = vpop.f32.mrb[0].mxu0
    %v2226 = vpop.f32.mrb[0].mxu0
    %v2227 = vadd.f32 0.0, %v2226
    %v2228 = vpop.f32.mrb[0].mxu0
    %2229 = vdwg.mxu0
    %v2230 = vlaneseq
    %v2231 = vshrl.u32 %v2230, 7
    %v2232 = vsub.s32 4, %v2231
    %v2233 = vrot.slane %v348, %v2232
    %v2234 = vlaneseq
    %v2235 = vshrl.u32 %v2234, 7
    %v2236 = vsub.s32 4, %v2235
    %v2237 = vrot.slane %v351, %v2236
    %v2238 = vlaneseq
    %v2239 = vshrl.u32 %v2238, 7
    %v2240 = vsub.s32 4, %v2239
    %v2241 = vrot.slane %v356, %v2240
    %v2242 = vlaneseq
    %v2243 = vshrl.u32 %v2242, 7
    %v2244 = vsub.s32 4, %v2243
    %v2245 = vrot.slane %v359, %v2244
    %v2246 = vmul.f32 %v2216, %v2233
    %v2247 = vmul.f32 %v2219, %v2237
    %v2248 = vmul.f32 %v2224, %v2241
    %v2249 = vmul.f32 %v2227, %v2245
    %v2250 = vadd.f32 %v2144, %v2246
    %v2251 = vadd.f32 %v2145, %v2247
    %v2252 = vadd.f32 %v2146, %v2248
    %v2253 = vadd.f32 %v2147, %v2249
    %s2254 = scalar_lea.vmem %s3, 160
    %v2255 = vld [vmem:[%s2254] sm:$0xf]
    %v2256 = vld [vmem:[%s2254 + $0x4] sm:$0xf]
    %v2257 = vld [vmem:[%s2254 + $0x8] sm:$0xf]
    %v2258 = vld [vmem:[%s2254 + $0xc] sm:$0xf]
    %v2259 = vld [vmem:[%s2254 + $0x10] sm:$0xf]
    %v2260 = vld [vmem:[%s2254 + $0x14] sm:$0xf]
    %v2261 = vld [vmem:[%s2254 + $0x18] sm:$0xf]
    %v2262 = vld [vmem:[%s2254 + $0x1c] sm:$0xf]
    %v2271 = vunpack.c.l.b16 %v2255
    %v2272 = vunpack.c.l.b16 %v2256
    %v2273 = vunpack.c.l.b16 %v2257
    %v2274 = vunpack.c.l.b16 %v2258
    %v2275 = vunpack.c.l.b16 %v2259
    %v2276 = vunpack.c.l.b16 %v2260
    %v2277 = vunpack.c.l.b16 %v2261
    %v2278 = vunpack.c.l.b16 %v2262
    %v2279 = vpack.c.b16 %v2272, %v2271
    %v2280 = vpack.c.b16 %v2274, %v2273
    %v2281 = vpack.c.b16 %v2276, %v2275
    %v2282 = vpack.c.b16 %v2278, %v2277
    %2287 = vmatprep.subr.bf16.mxu0 0
    %2288 = vmatpush1.bf16.msra.mxu0 %v2279
    %2289 = vmatprep.subr.bf16.mxu0 0
    %2290 = vmatpush1.bf16.msra.mxu0 %v2280
    %2291 = vmatprep.subr.bf16.mxu0 0
    %2292 = vmatpush1.bf16.msra.mxu0 %v2281
    %2293 = vmatprep.subr.bf16.mxu0 0
    %2294 = vmatpush1.bf16.msra.mxu0 %v2282
    %2295 = vmatprep.subr.bf16.mxu0 0
    %2296 = vmatpush1.bf16.msra.mxu0 0
    %2297 = vmatprep.subr.bf16.mxu0 0
    %2298 = vmatpush1.bf16.msra.mxu0 0
    %2299 = vmatprep.subr.bf16.mxu0 0
    %2300 = vmatpush1.bf16.msra.mxu0 0
    %2301 = vmatprep.subr.bf16.mxu0 0
    %2302 = vmatpush1.bf16.msra.mxu0 0
    %2303 = vmatprep.subr.bf16.mxu0 0
    %2304 = vmatpush1.bf16.msra.mxu0 0
    %2305 = vmatprep.subr.bf16.mxu0 0
    %2306 = vmatpush1.bf16.msra.mxu0 0
    %2307 = vmatprep.subr.bf16.mxu0 0
    %2308 = vmatpush1.bf16.msra.mxu0 0
    %2309 = vmatprep.subr.bf16.mxu0 0
    %2310 = vmatpush1.bf16.msra.mxu0 0
    %2311 = vmatprep.subr.bf16.mxu0 0
    %2312 = vmatpush1.bf16.msra.mxu0 0
    %2313 = vmatprep.subr.bf16.mxu0 0
    %2314 = vmatpush1.bf16.msra.mxu0 0
    %2315 = vmatprep.subr.bf16.mxu0 0
    %2316 = vmatpush1.bf16.msra.mxu0 0
    %2317 = vmatprep.subr.bf16.mxu0 0
    %2318 = vmatpush1.bf16.msra.mxu0 0
    %2319 = vmatprep.mubr.bf16.mxu0 0
    %2320 = vmatmul.mubr.bf16.gmra.mrb[0].mxu0 %v1752
    %v2321 = vpop.f32.mrb[0].mxu0
    %v2322 = vadd.f32 0.0, %v2321
    %v2323 = vpop.f32.mrb[0].mxu0
    %v2324 = vpop.f32.mrb[0].mxu0
    %v2325 = vadd.f32 0.0, %v2324
    %v2326 = vpop.f32.mrb[0].mxu0
    %2327 = vmatprep.mubr.bf16.mxu0 0
    %2328 = vmatmul.mubr.bf16.gmra.mrb[0].mxu0 %v1755
    %v2329 = vpop.f32.mrb[0].mxu0
    %v2330 = vadd.f32 0.0, %v2329
    %v2331 = vpop.f32.mrb[0].mxu0
    %v2332 = vpop.f32.mrb[0].mxu0
    %v2333 = vadd.f32 0.0, %v2332
    %v2334 = vpop.f32.mrb[0].mxu0
    %2335 = vdwg.mxu0
    %v2336 = vlaneseq
    %v2337 = vshrl.u32 %v2336, 7
    %v2338 = vsub.s32 5, %v2337
    %v2339 = vrot.slane %v348, %v2338
    %v2340 = vlaneseq
    %v2341 = vshrl.u32 %v2340, 7
    %v2342 = vsub.s32 5, %v2341
    %v2343 = vrot.slane %v351, %v2342
    %v2344 = vlaneseq
    %v2345 = vshrl.u32 %v2344, 7
    %v2346 = vsub.s32 5, %v2345
    %v2347 = vrot.slane %v356, %v2346
    %v2348 = vlaneseq
    %v2349 = vshrl.u32 %v2348, 7
    %v2350 = vsub.s32 5, %v2349
    %v2351 = vrot.slane %v359, %v2350
    %v2352 = vmul.f32 %v2322, %v2339
    %v2353 = vmul.f32 %v2325, %v2343
    %v2354 = vmul.f32 %v2330, %v2347
    %v2355 = vmul.f32 %v2333, %v2351
    %v2356 = vadd.f32 %v2250, %v2352
    %v2357 = vadd.f32 %v2251, %v2353
    %v2358 = vadd.f32 %v2252, %v2354
    %v2359 = vadd.f32 %v2253, %v2355
    %s2360 = scalar_lea.vmem %s3, 192
    %v2361 = vld [vmem:[%s2360] sm:$0xf]
    %v2362 = vld [vmem:[%s2360 + $0x4] sm:$0xf]
    %v2363 = vld [vmem:[%s2360 + $0x8] sm:$0xf]
    %v2364 = vld [vmem:[%s2360 + $0xc] sm:$0xf]
    %v2365 = vld [vmem:[%s2360 + $0x10] sm:$0xf]
    %v2366 = vld [vmem:[%s2360 + $0x14] sm:$0xf]
    %v2367 = vld [vmem:[%s2360 + $0x18] sm:$0xf]
    %v2368 = vld [vmem:[%s2360 + $0x1c] sm:$0xf]
    %v2377 = vunpack.c.l.b16 %v2361
    %v2378 = vunpack.c.l.b16 %v2362
    %v2379 = vunpack.c.l.b16 %v2363
    %v2380 = vunpack.c.l.b16 %v2364
    %v2381 = vunpack.c.l.b16 %v2365
    %v2382 = vunpack.c.l.b16 %v2366
    %v2383 = vunpack.c.l.b16 %v2367
    %v2384 = vunpack.c.l.b16 %v2368
    %v2385 = vpack.c.b16 %v2378, %v2377
    %v2386 = vpack.c.b16 %v2380, %v2379
    %v2387 = vpack.c.b16 %v2382, %v2381
    %v2388 = vpack.c.b16 %v2384, %v2383
    %2393 = vmatprep.subr.bf16.mxu0 0
    %2394 = vmatpush1.bf16.msra.mxu0 %v2385
    %2395 = vmatprep.subr.bf16.mxu0 0
    %2396 = vmatpush1.bf16.msra.mxu0 %v2386
    %2397 = vmatprep.subr.bf16.mxu0 0
    %2398 = vmatpush1.bf16.msra.mxu0 %v2387
    %2399 = vmatprep.subr.bf16.mxu0 0
    %2400 = vmatpush1.bf16.msra.mxu0 %v2388
    %2401 = vmatprep.subr.bf16.mxu0 0
    %2402 = vmatpush1.bf16.msra.mxu0 0
    %2403 = vmatprep.subr.bf16.mxu0 0
    %2404 = vmatpush1.bf16.msra.mxu0 0
    %2405 = vmatprep.subr.bf16.mxu0 0
    %2406 = vmatpush1.bf16.msra.mxu0 0
    %2407 = vmatprep.subr.bf16.mxu0 0
    %2408 = vmatpush1.bf16.msra.mxu0 0
    %2409 = vmatprep.subr.bf16.mxu0 0
    %2410 = vmatpush1.bf16.msra.mxu0 0
    %2411 = vmatprep.subr.bf16.mxu0 0
    %2412 = vmatpush1.bf16.msra.mxu0 0
    %2413 = vmatprep.subr.bf16.mxu0 0
    %2414 = vmatpush1.bf16.msra.mxu0 0
    %2415 = vmatprep.subr.bf16.mxu0 0
    %2416 = vmatpush1.bf16.msra.mxu0 0
    %2417 = vmatprep.subr.bf16.mxu0 0
    %2418 = vmatpush1.bf16.msra.mxu0 0
    %2419 = vmatprep.subr.bf16.mxu0 0
    %2420 = vmatpush1.bf16.msra.mxu0 0
    %2421 = vmatprep.subr.bf16.mxu0 0
    %2422 = vmatpush1.bf16.msra.mxu0 0
    %2423 = vmatprep.subr.bf16.mxu0 0
    %2424 = vmatpush1.bf16.msra.mxu0 0
    %2425 = vmatprep.mubr.bf16.mxu0 0
    %2426 = vmatmul.mubr.bf16.gmra.mrb[0].mxu0 %v1752
    %v2427 = vpop.f32.mrb[0].mxu0
    %v2428 = vadd.f32 0.0, %v2427
    %v2429 = vpop.f32.mrb[0].mxu0
    %v2430 = vpop.f32.mrb[0].mxu0
    %v2431 = vadd.f32 0.0, %v2430
    %v2432 = vpop.f32.mrb[0].mxu0
    %2433 = vmatprep.mubr.bf16.mxu0 0
    %2434 = vmatmul.mubr.bf16.gmra.mrb[0].mxu0 %v1755
    %v2435 = vpop.f32.mrb[0].mxu0
    %v2436 = vadd.f32 0.0, %v2435
    %v2437 = vpop.f32.mrb[0].mxu0
    %v2438 = vpop.f32.mrb[0].mxu0
    %v2439 = vadd.f32 0.0, %v2438
    %v2440 = vpop.f32.mrb[0].mxu0
    %2441 = vdwg.mxu0
    %v2442 = vlaneseq
    %v2443 = vshrl.u32 %v2442, 7
    %v2444 = vsub.s32 6, %v2443
    %v2445 = vrot.slane %v348, %v2444
    %v2446 = vlaneseq
    %v2447 = vshrl.u32 %v2446, 7
    %v2448 = vsub.s32 6, %v2447
    %v2449 = vrot.slane %v351, %v2448
    %v2450 = vlaneseq
    %v2451 = vshrl.u32 %v2450, 7
    %v2452 = vsub.s32 6, %v2451
    %v2453 = vrot.slane %v356, %v2452
    %v2454 = vlaneseq
    %v2455 = vshrl.u32 %v2454, 7
    %v2456 = vsub.s32 6, %v2455
    %v2457 = vrot.slane %v359, %v2456
    %v2458 = vmul.f32 %v2428, %v2445
    %v2459 = vmul.f32 %v2431, %v2449
    %v2460 = vmul.f32 %v2436, %v2453
    %v2461 = vmul.f32 %v2439, %v2457
    %v2462 = vadd.f32 %v2356, %v2458
    %v2463 = vadd.f32 %v2357, %v2459
    %v2464 = vadd.f32 %v2358, %v2460
    %v2465 = vadd.f32 %v2359, %v2461
    %s2466 = scalar_lea.vmem %s3, 224
    %v2467 = vld [vmem:[%s2466] sm:$0xf]
    %v2468 = vld [vmem:[%s2466 + $0x4] sm:$0xf]
    %v2469 = vld [vmem:[%s2466 + $0x8] sm:$0xf]
    %v2470 = vld [vmem:[%s2466 + $0xc] sm:$0xf]
    %v2471 = vld [vmem:[%s2466 + $0x10] sm:$0xf]
    %v2472 = vld [vmem:[%s2466 + $0x14] sm:$0xf]
    %v2473 = vld [vmem:[%s2466 + $0x18] sm:$0xf]
    %v2474 = vld [vmem:[%s2466 + $0x1c] sm:$0xf]
    %v2483 = vunpack.c.l.b16 %v2467
    %v2484 = vunpack.c.l.b16 %v2468
    %v2485 = vunpack.c.l.b16 %v2469
    %v2486 = vunpack.c.l.b16 %v2470
    %v2487 = vunpack.c.l.b16 %v2471
    %v2488 = vunpack.c.l.b16 %v2472
    %v2489 = vunpack.c.l.b16 %v2473
    %v2490 = vunpack.c.l.b16 %v2474
    %v2491 = vpack.c.b16 %v2484, %v2483
    %v2492 = vpack.c.b16 %v2486, %v2485
    %v2493 = vpack.c.b16 %v2488, %v2487
    %v2494 = vpack.c.b16 %v2490, %v2489
    %2499 = vmatprep.subr.bf16.mxu0 0
    %2500 = vmatpush1.bf16.msra.mxu0 %v2491
    %2501 = vmatprep.subr.bf16.mxu0 0
    %2502 = vmatpush1.bf16.msra.mxu0 %v2492
    %2503 = vmatprep.subr.bf16.mxu0 0
    %2504 = vmatpush1.bf16.msra.mxu0 %v2493
    %2505 = vmatprep.subr.bf16.mxu0 0
    %2506 = vmatpush1.bf16.msra.mxu0 %v2494
    %2507 = vmatprep.subr.bf16.mxu0 0
    %2508 = vmatpush1.bf16.msra.mxu0 0
    %2509 = vmatprep.subr.bf16.mxu0 0
    %2510 = vmatpush1.bf16.msra.mxu0 0
    %2511 = vmatprep.subr.bf16.mxu0 0
    %2512 = vmatpush1.bf16.msra.mxu0 0
    %2513 = vmatprep.subr.bf16.mxu0 0
    %2514 = vmatpush1.bf16.msra.mxu0 0
    %2515 = vmatprep.subr.bf16.mxu0 0
    %2516 = vmatpush1.bf16.msra.mxu0 0
    %2517 = vmatprep.subr.bf16.mxu0 0
    %2518 = vmatpush1.bf16.msra.mxu0 0
    %2519 = vmatprep.subr.bf16.mxu0 0
    %2520 = vmatpush1.bf16.msra.mxu0 0
    %2521 = vmatprep.subr.bf16.mxu0 0
    %2522 = vmatpush1.bf16.msra.mxu0 0
    %2523 = vmatprep.subr.bf16.mxu0 0
    %2524 = vmatpush1.bf16.msra.mxu0 0
    %2525 = vmatprep.subr.bf16.mxu0 0
    %2526 = vmatpush1.bf16.msra.mxu0 0
    %2527 = vmatprep.subr.bf16.mxu0 0
    %2528 = vmatpush1.bf16.msra.mxu0 0
    %2529 = vmatprep.subr.bf16.mxu0 0
    %2530 = vmatpush1.bf16.msra.mxu0 0
    %2531 = vmatprep.mubr.bf16.mxu0 0
    %2532 = vmatmul.mubr.bf16.gmra.mrb[0].mxu0 %v1752
    %v2533 = vpop.f32.mrb[0].mxu0
    %v2534 = vadd.f32 0.0, %v2533
    %v2535 = vpop.f32.mrb[0].mxu0
    %v2536 = vpop.f32.mrb[0].mxu0
    %v2537 = vadd.f32 0.0, %v2536
    %v2538 = vpop.f32.mrb[0].mxu0
    %2539 = vmatprep.mubr.bf16.mxu0 0
    %2540 = vmatmul.mubr.bf16.gmra.mrb[0].mxu0 %v1755
    %v2541 = vpop.f32.mrb[0].mxu0
    %v2542 = vadd.f32 0.0, %v2541
    %v2543 = vpop.f32.mrb[0].mxu0
    %v2544 = vpop.f32.mrb[0].mxu0
    %v2545 = vadd.f32 0.0, %v2544
    %v2546 = vpop.f32.mrb[0].mxu0
    %2547 = vdwg.mxu0
    %v2548 = vlaneseq
    %v2549 = vshrl.u32 %v2548, 7
    %v2550 = vsub.s32 7, %v2549
    %v2551 = vrot.slane %v348, %v2550
    %v2552 = vlaneseq
    %v2553 = vshrl.u32 %v2552, 7
    %v2554 = vsub.s32 7, %v2553
    %v2555 = vrot.slane %v351, %v2554
    %v2556 = vlaneseq
    %v2557 = vshrl.u32 %v2556, 7
    %v2558 = vsub.s32 7, %v2557
    %v2559 = vrot.slane %v356, %v2558
    %v2560 = vlaneseq
    %v2561 = vshrl.u32 %v2560, 7
    %v2562 = vsub.s32 7, %v2561
    %v2563 = vrot.slane %v359, %v2562
    %v2564 = vmul.f32 %v2534, %v2551
    %v2565 = vmul.f32 %v2537, %v2555
    %v2566 = vmul.f32 %v2542, %v2559
    %v2567 = vmul.f32 %v2545, %v2563
    %v2568 = vadd.f32 %v2462, %v2564
    %v2569 = vadd.f32 %v2463, %v2565
    %v2570 = vadd.f32 %v2464, %v2566
    %v2571 = vadd.f32 %v2465, %v2567
    %v2572 = vpack.c.bf16 %v2569, %v2568
    %v2573 = vpack.c.bf16 %v2571, %v2570
    %s2574 = smul.u32 %s67, 16
    %s2575 = smul.addr %s2574, 4
    %s2576 = scalar_lea.vmem %s7, %s2575
    %v2577 = vld [vmem:[%s2576] sm:$0xf]
    %v2578 = vld [vmem:[%s2576 + $0x4] sm:$0xf]
    %v2579 = vld [vmem:[%s2576 + $0x8] sm:$0xf]
    %v2580 = vld [vmem:[%s2576 + $0xc] sm:$0xf]
    %v2581 = vld [vmem:[%s2576 + $0x10] sm:$0xf]
    %v2582 = vld [vmem:[%s2576 + $0x14] sm:$0xf]
    %v2583 = vld [vmem:[%s2576 + $0x18] sm:$0xf]
    %v2584 = vld [vmem:[%s2576 + $0x1c] sm:$0xf]
    %v2585 = vld [vmem:[%s2576 + $0x20] sm:$0xf]
    %v2586 = vld [vmem:[%s2576 + $0x24] sm:$0xf]
    %v2587 = vld [vmem:[%s2576 + $0x28] sm:$0xf]
    %v2588 = vld [vmem:[%s2576 + $0x2c] sm:$0xf]
    %v2589 = vld [vmem:[%s2576 + $0x30] sm:$0xf]
    %v2590 = vld [vmem:[%s2576 + $0x34] sm:$0xf]
    %v2591 = vld [vmem:[%s2576 + $0x38] sm:$0xf]
    %v2592 = vld [vmem:[%s2576 + $0x3c] sm:$0xf]
    %s2593 = scalar_lea.vmem %s8, %s67
    %v2594 = vld [vmem:[%s2593] sm:$0x1]
    %v2596 = vlaneseq
    %v2597 = vshrl.u32 %v2596, 7
    %v2598 = vsub.s32 0, %v2597
    %v2599 = vrot.slane %v2594, %v2598
    %v2617 = vunpack.c.l.b16 %v2577
    %v2618 = vunpack.c.l.b16 %v2578
    %v2619 = vunpack.c.l.b16 %v2579
    %v2620 = vunpack.c.l.b16 %v2580
    %v2621 = vunpack.c.l.b16 %v2581
    %v2622 = vunpack.c.l.b16 %v2582
    %v2623 = vunpack.c.l.b16 %v2583
    %v2624 = vunpack.c.l.b16 %v2584
    %v2625 = vunpack.c.l.b16 %v2585
    %v2626 = vunpack.c.l.b16 %v2586
    %v2627 = vunpack.c.l.b16 %v2587
    %v2628 = vunpack.c.l.b16 %v2588
    %v2629 = vunpack.c.l.b16 %v2589
    %v2630 = vunpack.c.l.b16 %v2590
    %v2631 = vunpack.c.l.b16 %v2591
    %v2632 = vunpack.c.l.b16 %v2592
    %v2633 = vpack.c.b16 %v2618, %v2617
    %v2634 = vpack.c.b16 %v2620, %v2619
    %v2635 = vpack.c.b16 %v2622, %v2621
    %v2636 = vpack.c.b16 %v2624, %v2623
    %v2637 = vpack.c.b16 %v2626, %v2625
    %v2638 = vpack.c.b16 %v2628, %v2627
    %v2639 = vpack.c.b16 %v2630, %v2629
    %v2640 = vpack.c.b16 %v2632, %v2631
    %2649 = vmatprep.subr.bf16.mxu0 0
    %2650 = vmatpush1.bf16.msra.mxu0 %v2633
    %2651 = vmatprep.subr.bf16.mxu0 0
    %2652 = vmatpush1.bf16.msra.mxu0 %v2634
    %2653 = vmatprep.subr.bf16.mxu0 0
    %2654 = vmatpush1.bf16.msra.mxu0 %v2635
    %2655 = vmatprep.subr.bf16.mxu0 0
    %2656 = vmatpush1.bf16.msra.mxu0 %v2636
    %2657 = vmatprep.subr.bf16.mxu0 0
    %2658 = vmatpush1.bf16.msra.mxu0 %v2637
    %2659 = vmatprep.subr.bf16.mxu0 0
    %2660 = vmatpush1.bf16.msra.mxu0 %v2638
    %2661 = vmatprep.subr.bf16.mxu0 0
    %2662 = vmatpush1.bf16.msra.mxu0 %v2639
    %2663 = vmatprep.subr.bf16.mxu0 0
    %2664 = vmatpush1.bf16.msra.mxu0 %v2640
    %2665 = vmatprep.subr.bf16.mxu0 0
    %2666 = vmatpush1.bf16.msra.mxu0 0
    %2667 = vmatprep.subr.bf16.mxu0 0
    %2668 = vmatpush1.bf16.msra.mxu0 0
    %2669 = vmatprep.subr.bf16.mxu0 0
    %2670 = vmatpush1.bf16.msra.mxu0 0
    %2671 = vmatprep.subr.bf16.mxu0 0
    %2672 = vmatpush1.bf16.msra.mxu0 0
    %2673 = vmatprep.subr.bf16.mxu0 0
    %2674 = vmatpush1.bf16.msra.mxu0 0
    %2675 = vmatprep.subr.bf16.mxu0 0
    %2676 = vmatpush1.bf16.msra.mxu0 0
    %2677 = vmatprep.subr.bf16.mxu0 0
    %2678 = vmatpush1.bf16.msra.mxu0 0
    %2679 = vmatprep.subr.bf16.mxu0 0
    %2680 = vmatpush1.bf16.msra.mxu0 0
    %2681 = vmatprep.mubr.bf16.mxu0 0
    %2682 = vmatmul.mubr.bf16.gmra.mrb[0].mxu0 %v2572
    %v2683 = vpop.f32.mrb[0].mxu0
    %v2684 = vadd.f32 %v2599, %v2683
    %v2685 = vpop.f32.mrb[0].mxu0
    %v2686 = vpop.f32.mrb[0].mxu0
    %v2687 = vadd.f32 %v2599, %v2686
    %v2688 = vpop.f32.mrb[0].mxu0
    %2689 = vmatprep.mubr.bf16.mxu0 0
    %2690 = vmatmul.mubr.bf16.gmra.mrb[0].mxu0 %v2573
    %v2691 = vpop.f32.mrb[0].mxu0
    %v2692 = vadd.f32 %v2599, %v2691
    %v2693 = vpop.f32.mrb[0].mxu0
    %v2694 = vpop.f32.mrb[0].mxu0
    %v2695 = vadd.f32 %v2599, %v2694
    %v2696 = vpop.f32.mrb[0].mxu0
    %2697 = vdwg.mxu0
    %v2698 = vadd.f32 %v72, %v2684
    %v2699 = vadd.f32 %v73, %v2687
    %v2700 = vadd.f32 %v74, %v2692
    %v2701 = vadd.f32 %v75, %v2695
    %s2702 = scalar_lea.vmem %s9, %s67
    %v2703 = vld [vmem:[%s2702] sm:$0x1]
    %s2704 = scalar_lea.vmem %s10, %s67
    %v2705 = vld [vmem:[%s2704] sm:$0x1]
    %2706 = vadd.xlane.f32.xlu0 %v2698
    %v2707 = vpop.xlane.xlu0 %2706
    %2708 = vadd.xlane.f32.xlu0 %v2699
    %v2709 = vpop.xlane.xlu0 %2708
    %2710 = vadd.xlane.f32.xlu0 %v2700
    %v2711 = vpop.xlane.xlu0 %2710
    %2712 = vadd.xlane.f32.xlu0 %v2701
    %v2713 = vpop.xlane.xlu0 %2712
    %v2714 = vrcp.pop 128.0
    %v2715 = vmul.f32 %v2707, %v2714
    %v2716 = vmul.f32 %v2709, %v2714
    %v2717 = vmul.f32 %v2711, %v2714
    %v2718 = vmul.f32 %v2713, %v2714
    %v2719 = vsub.f32 %v2698, %v2715
    %v2720 = vsub.f32 %v2699, %v2716
    %v2721 = vsub.f32 %v2700, %v2717
    %v2722 = vsub.f32 %v2701, %v2718
    %v2723 = vmul.f32 %v2719, %v2719
    %v2724 = vmul.f32 %v2720, %v2720
    %v2725 = vmul.f32 %v2721, %v2721
    %v2726 = vmul.f32 %v2722, %v2722
    %2727 = vadd.xlane.f32.xlu0 %v2723
    %v2728 = vpop.xlane.xlu0 %2727
    %2729 = vadd.xlane.f32.xlu0 %v2724
    %v2730 = vpop.xlane.xlu0 %2729
    %2731 = vadd.xlane.f32.xlu0 %v2725
    %v2732 = vpop.xlane.xlu0 %2731
    %2733 = vadd.xlane.f32.xlu0 %v2726
    %v2734 = vpop.xlane.xlu0 %2733
    %v2735 = vmul.f32 %v2728, %v2714
    %v2736 = vmul.f32 %v2730, %v2714
    %v2737 = vmul.f32 %v2732, %v2714
    %v2738 = vmul.f32 %v2734, %v2714
    %v2739 = vadd.f32 %v2735, 1e-05
    %v2740 = vadd.f32 %v2736, 1e-05
    %v2741 = vadd.f32 %v2737, 1e-05
    %v2742 = vadd.f32 %v2738, 1e-05
    %v2743 = vrsqrt.pop %v2739
    %v2744 = vrsqrt.pop %v2740
    %v2745 = vrsqrt.pop %v2741
    %v2746 = vrsqrt.pop %v2742
    %v2747 = vmul.f32 %v2719, %v2743
    %v2748 = vmul.f32 %v2720, %v2744
    %v2749 = vmul.f32 %v2721, %v2745
    %v2750 = vmul.f32 %v2722, %v2746
    %v2752 = vlaneseq
    %v2753 = vshrl.u32 %v2752, 7
    %v2754 = vsub.s32 0, %v2753
    %v2755 = vrot.slane %v2703, %v2754
    %v2757 = vmul.f32 %v2747, %v2755
    %v2758 = vmul.f32 %v2748, %v2755
    %v2759 = vmul.f32 %v2749, %v2755
    %v2760 = vmul.f32 %v2750, %v2755
    %v2762 = vlaneseq
    %v2763 = vshrl.u32 %v2762, 7
    %v2764 = vsub.s32 0, %v2763
    %v2765 = vrot.slane %v2705, %v2764
    %v2767 = vadd.f32 %v2757, %v2765
    %v2768 = vadd.f32 %v2758, %v2765
    %v2769 = vadd.f32 %v2759, %v2765
    %v2770 = vadd.f32 %v2760, %v2765
    %v2771 = vpack.c.bf16 %v2768, %v2767
    %v2772 = vpack.c.bf16 %v2770, %v2769
    %s2773 = smul.u32 %s67, 128
    %s2774 = smul.addr %s2773, 4
    %s2775 = scalar_lea.vmem %s11, %s2774
    %v2776 = vld [vmem:[%s2775] sm:$0xff]
    %v2777 = vld [vmem:[%s2775 + $0x8] sm:$0xff]
    %v2778 = vld [vmem:[%s2775 + $0x10] sm:$0xff]
    %v2779 = vld [vmem:[%s2775 + $0x18] sm:$0xff]
    %v2780 = vld [vmem:[%s2775 + $0x20] sm:$0xff]
    %v2781 = vld [vmem:[%s2775 + $0x28] sm:$0xff]
    %v2782 = vld [vmem:[%s2775 + $0x30] sm:$0xff]
    %v2783 = vld [vmem:[%s2775 + $0x38] sm:$0xff]
    %v2784 = vld [vmem:[%s2775 + $0x40] sm:$0xff]
    %v2785 = vld [vmem:[%s2775 + $0x48] sm:$0xff]
    %v2786 = vld [vmem:[%s2775 + $0x50] sm:$0xff]
    %v2787 = vld [vmem:[%s2775 + $0x58] sm:$0xff]
    %v2788 = vld [vmem:[%s2775 + $0x60] sm:$0xff]
    %v2789 = vld [vmem:[%s2775 + $0x68] sm:$0xff]
    %v2790 = vld [vmem:[%s2775 + $0x70] sm:$0xff]
    %v2791 = vld [vmem:[%s2775 + $0x78] sm:$0xff]
    %v2792 = vld [vmem:[%s2775 + $0x80] sm:$0xff]
    %v2793 = vld [vmem:[%s2775 + $0x88] sm:$0xff]
    %v2794 = vld [vmem:[%s2775 + $0x90] sm:$0xff]
    %v2795 = vld [vmem:[%s2775 + $0x98] sm:$0xff]
    %v2796 = vld [vmem:[%s2775 + $0xa0] sm:$0xff]
    %v2797 = vld [vmem:[%s2775 + $0xa8] sm:$0xff]
    %v2798 = vld [vmem:[%s2775 + $0xb0] sm:$0xff]
    %v2799 = vld [vmem:[%s2775 + $0xb8] sm:$0xff]
    %v2800 = vld [vmem:[%s2775 + $0xc0] sm:$0xff]
    %v2801 = vld [vmem:[%s2775 + $0xc8] sm:$0xff]
    %v2802 = vld [vmem:[%s2775 + $0xd0] sm:$0xff]
    %v2803 = vld [vmem:[%s2775 + $0xd8] sm:$0xff]
    %v2804 = vld [vmem:[%s2775 + $0xe0] sm:$0xff]
    %v2805 = vld [vmem:[%s2775 + $0xe8] sm:$0xff]
    %v2806 = vld [vmem:[%s2775 + $0xf0] sm:$0xff]
    %v2807 = vld [vmem:[%s2775 + $0xf8] sm:$0xff]
    %v2808 = vld [vmem:[%s2775 + $0x100] sm:$0xff]
    %v2809 = vld [vmem:[%s2775 + $0x108] sm:$0xff]
    %v2810 = vld [vmem:[%s2775 + $0x110] sm:$0xff]
    %v2811 = vld [vmem:[%s2775 + $0x118] sm:$0xff]
    %v2812 = vld [vmem:[%s2775 + $0x120] sm:$0xff]
    %v2813 = vld [vmem:[%s2775 + $0x128] sm:$0xff]
    %v2814 = vld [vmem:[%s2775 + $0x130] sm:$0xff]
    %v2815 = vld [vmem:[%s2775 + $0x138] sm:$0xff]
    %v2816 = vld [vmem:[%s2775 + $0x140] sm:$0xff]
    %v2817 = vld [vmem:[%s2775 + $0x148] sm:$0xff]
    %v2818 = vld [vmem:[%s2775 + $0x150] sm:$0xff]
    %v2819 = vld [vmem:[%s2775 + $0x158] sm:$0xff]
    %v2820 = vld [vmem:[%s2775 + $0x160] sm:$0xff]
    %v2821 = vld [vmem:[%s2775 + $0x168] sm:$0xff]
    %v2822 = vld [vmem:[%s2775 + $0x170] sm:$0xff]
    %v2823 = vld [vmem:[%s2775 + $0x178] sm:$0xff]
    %v2824 = vld [vmem:[%s2775 + $0x180] sm:$0xff]
    %v2825 = vld [vmem:[%s2775 + $0x188] sm:$0xff]
    %v2826 = vld [vmem:[%s2775 + $0x190] sm:$0xff]
    %v2827 = vld [vmem:[%s2775 + $0x198] sm:$0xff]
    %v2828 = vld [vmem:[%s2775 + $0x1a0] sm:$0xff]
    %v2829 = vld [vmem:[%s2775 + $0x1a8] sm:$0xff]
    %v2830 = vld [vmem:[%s2775 + $0x1b0] sm:$0xff]
    %v2831 = vld [vmem:[%s2775 + $0x1b8] sm:$0xff]
    %v2832 = vld [vmem:[%s2775 + $0x1c0] sm:$0xff]
    %v2833 = vld [vmem:[%s2775 + $0x1c8] sm:$0xff]
    %v2834 = vld [vmem:[%s2775 + $0x1d0] sm:$0xff]
    %v2835 = vld [vmem:[%s2775 + $0x1d8] sm:$0xff]
    %v2836 = vld [vmem:[%s2775 + $0x1e0] sm:$0xff]
    %v2837 = vld [vmem:[%s2775 + $0x1e8] sm:$0xff]
    %v2838 = vld [vmem:[%s2775 + $0x1f0] sm:$0xff]
    %v2839 = vld [vmem:[%s2775 + $0x1f8] sm:$0xff]
    %s2840 = smul.u32 %s67, 8
    %s2841 = scalar_lea.vmem %s12, %s2840
    %v2842 = vld [vmem:[%s2841] sm:$0xff]
    %v2844 = vlaneseq
    %v2845 = vshrl.u32 %v2844, 7
    %v2846 = vsub.s32 0, %v2845
    %v2847 = vrot.slane %v2842, %v2846
    %v2848 = vlaneseq
    %v2849 = vshrl.u32 %v2848, 7
    %v2850 = vsub.s32 1, %v2849
    %v2851 = vrot.slane %v2842, %v2850
    %v2852 = vlaneseq
    %v2853 = vshrl.u32 %v2852, 7
    %v2854 = vsub.s32 2, %v2853
    %v2855 = vrot.slane %v2842, %v2854
    %v2856 = vlaneseq
    %v2857 = vshrl.u32 %v2856, 7
    %v2858 = vsub.s32 3, %v2857
    %v2859 = vrot.slane %v2842, %v2858
    %v2860 = vlaneseq
    %v2861 = vshrl.u32 %v2860, 7
    %v2862 = vsub.s32 4, %v2861
    %v2863 = vrot.slane %v2842, %v2862
    %v2864 = vlaneseq
    %v2865 = vshrl.u32 %v2864, 7
    %v2866 = vsub.s32 5, %v2865
    %v2867 = vrot.slane %v2842, %v2866
    %v2868 = vlaneseq
    %v2869 = vshrl.u32 %v2868, 7
    %v2870 = vsub.s32 6, %v2869
    %v2871 = vrot.slane %v2842, %v2870
    %v2872 = vlaneseq
    %v2873 = vshrl.u32 %v2872, 7
    %v2874 = vsub.s32 7, %v2873
    %v2875 = vrot.slane %v2842, %v2874
    %v2948 = vunpack.c.l.b16 %v2776
    %v2949 = vunpack.c.h.b16 %v2776
    %v2950 = vunpack.c.l.b16 %v2777
    %v2951 = vunpack.c.h.b16 %v2777
    %v2952 = vunpack.c.l.b16 %v2778
    %v2953 = vunpack.c.h.b16 %v2778
    %v2954 = vunpack.c.l.b16 %v2779
    %v2955 = vunpack.c.h.b16 %v2779
    %v2956 = vunpack.c.l.b16 %v2780
    %v2957 = vunpack.c.h.b16 %v2780
    %v2958 = vunpack.c.l.b16 %v2781
    %v2959 = vunpack.c.h.b16 %v2781
    %v2960 = vunpack.c.l.b16 %v2782
    %v2961 = vunpack.c.h.b16 %v2782
    %v2962 = vunpack.c.l.b16 %v2783
    %v2963 = vunpack.c.h.b16 %v2783
    %v2964 = vunpack.c.l.b16 %v2784
    %v2965 = vunpack.c.h.b16 %v2784
    %v2966 = vunpack.c.l.b16 %v2785
    %v2967 = vunpack.c.h.b16 %v2785
    %v2968 = vunpack.c.l.b16 %v2786
    %v2969 = vunpack.c.h.b16 %v2786
    %v2970 = vunpack.c.l.b16 %v2787
    %v2971 = vunpack.c.h.b16 %v2787
    %v2972 = vunpack.c.l.b16 %v2788
    %v2973 = vunpack.c.h.b16 %v2788
    %v2974 = vunpack.c.l.b16 %v2789
    %v2975 = vunpack.c.h.b16 %v2789
    %v2976 = vunpack.c.l.b16 %v2790
    %v2977 = vunpack.c.h.b16 %v2790
    %v2978 = vunpack.c.l.b16 %v2791
    %v2979 = vunpack.c.h.b16 %v2791
    %v2980 = vunpack.c.l.b16 %v2792
    %v2981 = vunpack.c.h.b16 %v2792
    %v2982 = vunpack.c.l.b16 %v2793
    %v2983 = vunpack.c.h.b16 %v2793
    %v2984 = vunpack.c.l.b16 %v2794
    %v2985 = vunpack.c.h.b16 %v2794
    %v2986 = vunpack.c.l.b16 %v2795
    %v2987 = vunpack.c.h.b16 %v2795
    %v2988 = vunpack.c.l.b16 %v2796
    %v2989 = vunpack.c.h.b16 %v2796
    %v2990 = vunpack.c.l.b16 %v2797
    %v2991 = vunpack.c.h.b16 %v2797
    %v2992 = vunpack.c.l.b16 %v2798
    %v2993 = vunpack.c.h.b16 %v2798
    %v2994 = vunpack.c.l.b16 %v2799
    %v2995 = vunpack.c.h.b16 %v2799
    %v2996 = vunpack.c.l.b16 %v2800
    %v2997 = vunpack.c.h.b16 %v2800
    %v2998 = vunpack.c.l.b16 %v2801
    %v2999 = vunpack.c.h.b16 %v2801
    %v3000 = vunpack.c.l.b16 %v2802
    %v3001 = vunpack.c.h.b16 %v2802
    %v3002 = vunpack.c.l.b16 %v2803
    %v3003 = vunpack.c.h.b16 %v2803
    %v3004 = vunpack.c.l.b16 %v2804
    %v3005 = vunpack.c.h.b16 %v2804
    %v3006 = vunpack.c.l.b16 %v2805
    %v3007 = vunpack.c.h.b16 %v2805
    %v3008 = vunpack.c.l.b16 %v2806
    %v3009 = vunpack.c.h.b16 %v2806
    %v3010 = vunpack.c.l.b16 %v2807
    %v3011 = vunpack.c.h.b16 %v2807
    %v3012 = vunpack.c.l.b16 %v2808
    %v3013 = vunpack.c.h.b16 %v2808
    %v3014 = vunpack.c.l.b16 %v2809
    %v3015 = vunpack.c.h.b16 %v2809
    %v3016 = vunpack.c.l.b16 %v2810
    %v3017 = vunpack.c.h.b16 %v2810
    %v3018 = vunpack.c.l.b16 %v2811
    %v3019 = vunpack.c.h.b16 %v2811
    %v3020 = vunpack.c.l.b16 %v2812
    %v3021 = vunpack.c.h.b16 %v2812
    %v3022 = vunpack.c.l.b16 %v2813
    %v3023 = vunpack.c.h.b16 %v2813
    %v3024 = vunpack.c.l.b16 %v2814
    %v3025 = vunpack.c.h.b16 %v2814
    %v3026 = vunpack.c.l.b16 %v2815
    %v3027 = vunpack.c.h.b16 %v2815
    %v3028 = vunpack.c.l.b16 %v2816
    %v3029 = vunpack.c.h.b16 %v2816
    %v3030 = vunpack.c.l.b16 %v2817
    %v3031 = vunpack.c.h.b16 %v2817
    %v3032 = vunpack.c.l.b16 %v2818
    %v3033 = vunpack.c.h.b16 %v2818
    %v3034 = vunpack.c.l.b16 %v2819
    %v3035 = vunpack.c.h.b16 %v2819
    %v3036 = vunpack.c.l.b16 %v2820
    %v3037 = vunpack.c.h.b16 %v2820
    %v3038 = vunpack.c.l.b16 %v2821
    %v3039 = vunpack.c.h.b16 %v2821
    %v3040 = vunpack.c.l.b16 %v2822
    %v3041 = vunpack.c.h.b16 %v2822
    %v3042 = vunpack.c.l.b16 %v2823
    %v3043 = vunpack.c.h.b16 %v2823
    %v3044 = vunpack.c.l.b16 %v2824
    %v3045 = vunpack.c.h.b16 %v2824
    %v3046 = vunpack.c.l.b16 %v2825
    %v3047 = vunpack.c.h.b16 %v2825
    %v3048 = vunpack.c.l.b16 %v2826
    %v3049 = vunpack.c.h.b16 %v2826
    %v3050 = vunpack.c.l.b16 %v2827
    %v3051 = vunpack.c.h.b16 %v2827
    %v3052 = vunpack.c.l.b16 %v2828
    %v3053 = vunpack.c.h.b16 %v2828
    %v3054 = vunpack.c.l.b16 %v2829
    %v3055 = vunpack.c.h.b16 %v2829
    %v3056 = vunpack.c.l.b16 %v2830
    %v3057 = vunpack.c.h.b16 %v2830
    %v3058 = vunpack.c.l.b16 %v2831
    %v3059 = vunpack.c.h.b16 %v2831
    %v3060 = vunpack.c.l.b16 %v2832
    %v3061 = vunpack.c.h.b16 %v2832
    %v3062 = vunpack.c.l.b16 %v2833
    %v3063 = vunpack.c.h.b16 %v2833
    %v3064 = vunpack.c.l.b16 %v2834
    %v3065 = vunpack.c.h.b16 %v2834
    %v3066 = vunpack.c.l.b16 %v2835
    %v3067 = vunpack.c.h.b16 %v2835
    %v3068 = vunpack.c.l.b16 %v2836
    %v3069 = vunpack.c.h.b16 %v2836
    %v3070 = vunpack.c.l.b16 %v2837
    %v3071 = vunpack.c.h.b16 %v2837
    %v3072 = vunpack.c.l.b16 %v2838
    %v3073 = vunpack.c.h.b16 %v2838
    %v3074 = vunpack.c.l.b16 %v2839
    %v3075 = vunpack.c.h.b16 %v2839
    %v3076 = vpack.c.b16 %v2956, %v2948
    %v3077 = vpack.c.b16 %v2957, %v2949
    %v3078 = vpack.c.b16 %v2958, %v2950
    %v3079 = vpack.c.b16 %v2959, %v2951
    %v3080 = vpack.c.b16 %v2960, %v2952
    %v3081 = vpack.c.b16 %v2961, %v2953
    %v3082 = vpack.c.b16 %v2962, %v2954
    %v3083 = vpack.c.b16 %v2963, %v2955
    %v3084 = vpack.c.b16 %v2972, %v2964
    %v3085 = vpack.c.b16 %v2973, %v2965
    %v3086 = vpack.c.b16 %v2974, %v2966
    %v3087 = vpack.c.b16 %v2975, %v2967
    %v3088 = vpack.c.b16 %v2976, %v2968
    %v3089 = vpack.c.b16 %v2977, %v2969
    %v3090 = vpack.c.b16 %v2978, %v2970
    %v3091 = vpack.c.b16 %v2979, %v2971
    %v3092 = vpack.c.b16 %v2988, %v2980
    %v3093 = vpack.c.b16 %v2989, %v2981
    %v3094 = vpack.c.b16 %v2990, %v2982
    %v3095 = vpack.c.b16 %v2991, %v2983
    %v3096 = vpack.c.b16 %v2992, %v2984
    %v3097 = vpack.c.b16 %v2993, %v2985
    %v3098 = vpack.c.b16 %v2994, %v2986
    %v3099 = vpack.c.b16 %v2995, %v2987
    %v3100 = vpack.c.b16 %v3004, %v2996
    %v3101 = vpack.c.b16 %v3005, %v2997
    %v3102 = vpack.c.b16 %v3006, %v2998
    %v3103 = vpack.c.b16 %v3007, %v2999
    %v3104 = vpack.c.b16 %v3008, %v3000
    %v3105 = vpack.c.b16 %v3009, %v3001
    %v3106 = vpack.c.b16 %v3010, %v3002
    %v3107 = vpack.c.b16 %v3011, %v3003
    %v3108 = vpack.c.b16 %v3020, %v3012
    %v3109 = vpack.c.b16 %v3021, %v3013
    %v3110 = vpack.c.b16 %v3022, %v3014
    %v3111 = vpack.c.b16 %v3023, %v3015
    %v3112 = vpack.c.b16 %v3024, %v3016
    %v3113 = vpack.c.b16 %v3025, %v3017
    %v3114 = vpack.c.b16 %v3026, %v3018
    %v3115 = vpack.c.b16 %v3027, %v3019
    %v3116 = vpack.c.b16 %v3036, %v3028
    %v3117 = vpack.c.b16 %v3037, %v3029
    %v3118 = vpack.c.b16 %v3038, %v3030
    %v3119 = vpack.c.b16 %v3039, %v3031
    %v3120 = vpack.c.b16 %v3040, %v3032
    %v3121 = vpack.c.b16 %v3041, %v3033
    %v3122 = vpack.c.b16 %v3042, %v3034
    %v3123 = vpack.c.b16 %v3043, %v3035
    %v3124 = vpack.c.b16 %v3052, %v3044
    %v3125 = vpack.c.b16 %v3053, %v3045
    %v3126 = vpack.c.b16 %v3054, %v3046
    %v3127 = vpack.c.b16 %v3055, %v3047
    %v3128 = vpack.c.b16 %v3056, %v3048
    %v3129 = vpack.c.b16 %v3057, %v3049
    %v3130 = vpack.c.b16 %v3058, %v3050
    %v3131 = vpack.c.b16 %v3059, %v3051
    %v3132 = vpack.c.b16 %v3068, %v3060
    %v3133 = vpack.c.b16 %v3069, %v3061
    %v3134 = vpack.c.b16 %v3070, %v3062
    %v3135 = vpack.c.b16 %v3071, %v3063
    %v3136 = vpack.c.b16 %v3072, %v3064
    %v3137 = vpack.c.b16 %v3073, %v3065
    %v3138 = vpack.c.b16 %v3074, %v3066
    %v3139 = vpack.c.b16 %v3075, %v3067
    %3204 = vmatprep.subr.bf16.mxu0 %v3077
    %3205 = vmatpush1.bf16.msra.mxu0 %v3076
    %3206 = vmatprep.subr.bf16.mxu0 %v3085
    %3207 = vmatpush1.bf16.msra.mxu0 %v3084
    %3208 = vmatprep.subr.bf16.mxu0 %v3093
    %3209 = vmatpush1.bf16.msra.mxu0 %v3092
    %3210 = vmatprep.subr.bf16.mxu0 %v3101
    %3211 = vmatpush1.bf16.msra.mxu0 %v3100
    %3212 = vmatprep.subr.bf16.mxu0 %v3109
    %3213 = vmatpush1.bf16.msra.mxu0 %v3108
    %3214 = vmatprep.subr.bf16.mxu0 %v3117
    %3215 = vmatpush1.bf16.msra.mxu0 %v3116
    %3216 = vmatprep.subr.bf16.mxu0 %v3125
    %3217 = vmatpush1.bf16.msra.mxu0 %v3124
    %3218 = vmatprep.subr.bf16.mxu0 %v3133
    %3219 = vmatpush1.bf16.msra.mxu0 %v3132
    %3220 = vmatprep.subr.bf16.mxu0 0
    %3221 = vmatpush1.bf16.msra.mxu0 0
    %3222 = vmatprep.subr.bf16.mxu0 0
    %3223 = vmatpush1.bf16.msra.mxu0 0
    %3224 = vmatprep.subr.bf16.mxu0 0
    %3225 = vmatpush1.bf16.msra.mxu0 0
    %3226 = vmatprep.subr.bf16.mxu0 0
    %3227 = vmatpush1.bf16.msra.mxu0 0
    %3228 = vmatprep.subr.bf16.mxu0 0
    %3229 = vmatpush1.bf16.msra.mxu0 0
    %3230 = vmatprep.subr.bf16.mxu0 0
    %3231 = vmatpush1.bf16.msra.mxu0 0
    %3232 = vmatprep.subr.bf16.mxu0 0
    %3233 = vmatpush1.bf16.msra.mxu0 0
    %3234 = vmatprep.subr.bf16.mxu0 0
    %3235 = vmatpush1.bf16.msra.mxu0 0
    %3236 = vmatprep.mubr.bf16.mxu0 0
    %3237 = vmatmul.mubr.bf16.gmra.mrb[0].mxu0 %v2771
    %v3238 = vpop.f32.mrb[0].mxu0
    %v3239 = vadd.f32 %v2847, %v3238
    %v3240 = vpop.f32.mrb[0].mxu0
    %v3241 = vadd.f32 %v2851, %v3240
    %v3242 = vpop.f32.mrb[0].mxu0
    %v3243 = vadd.f32 %v2847, %v3242
    %v3244 = vpop.f32.mrb[0].mxu0
    %v3245 = vadd.f32 %v2851, %v3244
    %3246 = vmatprep.mubr.bf16.mxu0 0
    %3247 = vmatmul.mubr.bf16.gmra.mrb[0].mxu0 %v2772
    %v3248 = vpop.f32.mrb[0].mxu0
    %v3249 = vadd.f32 %v2847, %v3248
    %v3250 = vpop.f32.mrb[0].mxu0
    %v3251 = vadd.f32 %v2851, %v3250
    %v3252 = vpop.f32.mrb[0].mxu0
    %v3253 = vadd.f32 %v2847, %v3252
    %v3254 = vpop.f32.mrb[0].mxu0
    %v3255 = vadd.f32 %v2851, %v3254
    %3256 = vdwg.mxu0
    %3257 = vmatprep.subr.bf16.mxu0 %v3079
    %3258 = vmatpush1.bf16.msra.mxu0 %v3078
    %3259 = vmatprep.subr.bf16.mxu0 %v3087
    %3260 = vmatpush1.bf16.msra.mxu0 %v3086
    %3261 = vmatprep.subr.bf16.mxu0 %v3095
    %3262 = vmatpush1.bf16.msra.mxu0 %v3094
    %3263 = vmatprep.subr.bf16.mxu0 %v3103
    %3264 = vmatpush1.bf16.msra.mxu0 %v3102
    %3265 = vmatprep.subr.bf16.mxu0 %v3111
    %3266 = vmatpush1.bf16.msra.mxu0 %v3110
    %3267 = vmatprep.subr.bf16.mxu0 %v3119
    %3268 = vmatpush1.bf16.msra.mxu0 %v3118
    %3269 = vmatprep.subr.bf16.mxu0 %v3127
    %3270 = vmatpush1.bf16.msra.mxu0 %v3126
    %3271 = vmatprep.subr.bf16.mxu0 %v3135
    %3272 = vmatpush1.bf16.msra.mxu0 %v3134
    %3273 = vmatprep.subr.bf16.mxu0 0
    %3274 = vmatpush1.bf16.msra.mxu0 0
    %3275 = vmatprep.subr.bf16.mxu0 0
    %3276 = vmatpush1.bf16.msra.mxu0 0
    %3277 = vmatprep.subr.bf16.mxu0 0
    %3278 = vmatpush1.bf16.msra.mxu0 0
    %3279 = vmatprep.subr.bf16.mxu0 0
    %3280 = vmatpush1.bf16.msra.mxu0 0
    %3281 = vmatprep.subr.bf16.mxu0 0
    %3282 = vmatpush1.bf16.msra.mxu0 0
    %3283 = vmatprep.subr.bf16.mxu0 0
    %3284 = vmatpush1.bf16.msra.mxu0 0
    %3285 = vmatprep.subr.bf16.mxu0 0
    %3286 = vmatpush1.bf16.msra.mxu0 0
    %3287 = vmatprep.subr.bf16.mxu0 0
    %3288 = vmatpush1.bf16.msra.mxu0 0
    %3289 = vmatprep.mubr.bf16.mxu0 0
    %3290 = vmatmul.mubr.bf16.gmra.mrb[0].mxu0 %v2771
    %v3291 = vpop.f32.mrb[0].mxu0
    %v3292 = vadd.f32 %v2855, %v3291
    %v3293 = vpop.f32.mrb[0].mxu0
    %v3294 = vadd.f32 %v2859, %v3293
    %v3295 = vpop.f32.mrb[0].mxu0
    %v3296 = vadd.f32 %v2855, %v3295
    %v3297 = vpop.f32.mrb[0].mxu0
    %v3298 = vadd.f32 %v2859, %v3297
    %3299 = vmatprep.mubr.bf16.mxu0 0
    %3300 = vmatmul.mubr.bf16.gmra.mrb[0].mxu0 %v2772
    %v3301 = vpop.f32.mrb[0].mxu0
    %v3302 = vadd.f32 %v2855, %v3301
    %v3303 = vpop.f32.mrb[0].mxu0
    %v3304 = vadd.f32 %v2859, %v3303
    %v3305 = vpop.f32.mrb[0].mxu0
    %v3306 = vadd.f32 %v2855, %v3305
    %v3307 = vpop.f32.mrb[0].mxu0
    %v3308 = vadd.f32 %v2859, %v3307
    %3309 = vdwg.mxu0
    %3310 = vmatprep.subr.bf16.mxu0 %v3081
    %3311 = vmatpush1.bf16.msra.mxu0 %v3080
    %3312 = vmatprep.subr.bf16.mxu0 %v3089
    %3313 = vmatpush1.bf16.msra.mxu0 %v3088
    %3314 = vmatprep.subr.bf16.mxu0 %v3097
    %3315 = vmatpush1.bf16.msra.mxu0 %v3096
    %3316 = vmatprep.subr.bf16.mxu0 %v3105
    %3317 = vmatpush1.bf16.msra.mxu0 %v3104
    %3318 = vmatprep.subr.bf16.mxu0 %v3113
    %3319 = vmatpush1.bf16.msra.mxu0 %v3112
    %3320 = vmatprep.subr.bf16.mxu0 %v3121
    %3321 = vmatpush1.bf16.msra.mxu0 %v3120
    %3322 = vmatprep.subr.bf16.mxu0 %v3129
    %3323 = vmatpush1.bf16.msra.mxu0 %v3128
    %3324 = vmatprep.subr.bf16.mxu0 %v3137
    %3325 = vmatpush1.bf16.msra.mxu0 %v3136
    %3326 = vmatprep.subr.bf16.mxu0 0
    %3327 = vmatpush1.bf16.msra.mxu0 0
    %3328 = vmatprep.subr.bf16.mxu0 0
    %3329 = vmatpush1.bf16.msra.mxu0 0
    %3330 = vmatprep.subr.bf16.mxu0 0
    %3331 = vmatpush1.bf16.msra.mxu0 0
    %3332 = vmatprep.subr.bf16.mxu0 0
    %3333 = vmatpush1.bf16.msra.mxu0 0
    %3334 = vmatprep.subr.bf16.mxu0 0
    %3335 = vmatpush1.bf16.msra.mxu0 0
    %3336 = vmatprep.subr.bf16.mxu0 0
    %3337 = vmatpush1.bf16.msra.mxu0 0
    %3338 = vmatprep.subr.bf16.mxu0 0
    %3339 = vmatpush1.bf16.msra.mxu0 0
    %3340 = vmatprep.subr.bf16.mxu0 0
    %3341 = vmatpush1.bf16.msra.mxu0 0
    %3342 = vmatprep.mubr.bf16.mxu0 0
    %3343 = vmatmul.mubr.bf16.gmra.mrb[0].mxu0 %v2771
    %v3344 = vpop.f32.mrb[0].mxu0
    %v3345 = vadd.f32 %v2863, %v3344
    %v3346 = vpop.f32.mrb[0].mxu0
    %v3347 = vadd.f32 %v2867, %v3346
    %v3348 = vpop.f32.mrb[0].mxu0
    %v3349 = vadd.f32 %v2863, %v3348
    %v3350 = vpop.f32.mrb[0].mxu0
    %v3351 = vadd.f32 %v2867, %v3350
    %3352 = vmatprep.mubr.bf16.mxu0 0
    %3353 = vmatmul.mubr.bf16.gmra.mrb[0].mxu0 %v2772
    %v3354 = vpop.f32.mrb[0].mxu0
    %v3355 = vadd.f32 %v2863, %v3354
    %v3356 = vpop.f32.mrb[0].mxu0
    %v3357 = vadd.f32 %v2867, %v3356
    %v3358 = vpop.f32.mrb[0].mxu0
    %v3359 = vadd.f32 %v2863, %v3358
    %v3360 = vpop.f32.mrb[0].mxu0
    %v3361 = vadd.f32 %v2867, %v3360
    %3362 = vdwg.mxu0
    %3363 = vmatprep.subr.bf16.mxu0 %v3083
    %3364 = vmatpush1.bf16.msra.mxu0 %v3082
    %3365 = vmatprep.subr.bf16.mxu0 %v3091
    %3366 = vmatpush1.bf16.msra.mxu0 %v3090
    %3367 = vmatprep.subr.bf16.mxu0 %v3099
    %3368 = vmatpush1.bf16.msra.mxu0 %v3098
    %3369 = vmatprep.subr.bf16.mxu0 %v3107
    %3370 = vmatpush1.bf16.msra.mxu0 %v3106
    %3371 = vmatprep.subr.bf16.mxu0 %v3115
    %3372 = vmatpush1.bf16.msra.mxu0 %v3114
    %3373 = vmatprep.subr.bf16.mxu0 %v3123
    %3374 = vmatpush1.bf16.msra.mxu0 %v3122
    %3375 = vmatprep.subr.bf16.mxu0 %v3131
    %3376 = vmatpush1.bf16.msra.mxu0 %v3130
    %3377 = vmatprep.subr.bf16.mxu0 %v3139
    %3378 = vmatpush1.bf16.msra.mxu0 %v3138
    %3379 = vmatprep.subr.bf16.mxu0 0
    %3380 = vmatpush1.bf16.msra.mxu0 0
    %3381 = vmatprep.subr.bf16.mxu0 0
    %3382 = vmatpush1.bf16.msra.mxu0 0
    %3383 = vmatprep.subr.bf16.mxu0 0
    %3384 = vmatpush1.bf16.msra.mxu0 0
    %3385 = vmatprep.subr.bf16.mxu0 0
    %3386 = vmatpush1.bf16.msra.mxu0 0
    %3387 = vmatprep.subr.bf16.mxu0 0
    %3388 = vmatpush1.bf16.msra.mxu0 0
    %3389 = vmatprep.subr.bf16.mxu0 0
    %3390 = vmatpush1.bf16.msra.mxu0 0
    %3391 = vmatprep.subr.bf16.mxu0 0
    %3392 = vmatpush1.bf16.msra.mxu0 0
    %3393 = vmatprep.subr.bf16.mxu0 0
    %3394 = vmatpush1.bf16.msra.mxu0 0
    %3395 = vmatprep.mubr.bf16.mxu0 0
    %3396 = vmatmul.mubr.bf16.gmra.mrb[0].mxu0 %v2771
    %v3397 = vpop.f32.mrb[0].mxu0
    %v3398 = vadd.f32 %v2871, %v3397
    %v3399 = vpop.f32.mrb[0].mxu0
    %v3400 = vadd.f32 %v2875, %v3399
    %v3401 = vpop.f32.mrb[0].mxu0
    %v3402 = vadd.f32 %v2871, %v3401
    %v3403 = vpop.f32.mrb[0].mxu0
    %v3404 = vadd.f32 %v2875, %v3403
    %3405 = vmatprep.mubr.bf16.mxu0 0
    %3406 = vmatmul.mubr.bf16.gmra.mrb[0].mxu0 %v2772
    %v3407 = vpop.f32.mrb[0].mxu0
    %v3408 = vadd.f32 %v2871, %v3407
    %v3409 = vpop.f32.mrb[0].mxu0
    %v3410 = vadd.f32 %v2875, %v3409
    %v3411 = vpop.f32.mrb[0].mxu0
    %v3412 = vadd.f32 %v2871, %v3411
    %v3413 = vpop.f32.mrb[0].mxu0
    %v3414 = vadd.f32 %v2875, %v3413
    %3415 = vdwg.mxu0
    %v3416 = vmax.f32 %v3239, 0.0
    %v3417 = vmax.f32 %v3241, 0.0
    %v3418 = vmax.f32 %v3292, 0.0
    %v3419 = vmax.f32 %v3294, 0.0
    %v3420 = vmax.f32 %v3345, 0.0
    %v3421 = vmax.f32 %v3347, 0.0
    %v3422 = vmax.f32 %v3398, 0.0
    %v3423 = vmax.f32 %v3400, 0.0
    %v3424 = vmax.f32 %v3243, 0.0
    %v3425 = vmax.f32 %v3245, 0.0
    %v3426 = vmax.f32 %v3296, 0.0
    %v3427 = vmax.f32 %v3298, 0.0
    %v3428 = vmax.f32 %v3349, 0.0
    %v3429 = vmax.f32 %v3351, 0.0
    %v3430 = vmax.f32 %v3402, 0.0
    %v3431 = vmax.f32 %v3404, 0.0
    %v3432 = vmax.f32 %v3249, 0.0
    %v3433 = vmax.f32 %v3251, 0.0
    %v3434 = vmax.f32 %v3302, 0.0
    %v3435 = vmax.f32 %v3304, 0.0
    %v3436 = vmax.f32 %v3355, 0.0
    %v3437 = vmax.f32 %v3357, 0.0
    %v3438 = vmax.f32 %v3408, 0.0
    %v3439 = vmax.f32 %v3410, 0.0
    %v3440 = vmax.f32 %v3253, 0.0
    %v3441 = vmax.f32 %v3255, 0.0
    %v3442 = vmax.f32 %v3306, 0.0
    %v3443 = vmax.f32 %v3308, 0.0
    %v3444 = vmax.f32 %v3359, 0.0
    %v3445 = vmax.f32 %v3361, 0.0
    %v3446 = vmax.f32 %v3412, 0.0
    %v3447 = vmax.f32 %v3414, 0.0
    %v3448 = vpack.c.bf16 %v3424, %v3416
    %v3449 = vpack.c.bf16 %v3425, %v3417
    %v3450 = vpack.c.bf16 %v3426, %v3418
    %v3451 = vpack.c.bf16 %v3427, %v3419
    %v3452 = vpack.c.bf16 %v3428, %v3420
    %v3453 = vpack.c.bf16 %v3429, %v3421
    %v3454 = vpack.c.bf16 %v3430, %v3422
    %v3455 = vpack.c.bf16 %v3431, %v3423
    %v3456 = vpack.c.bf16 %v3440, %v3432
    %v3457 = vpack.c.bf16 %v3441, %v3433
    %v3458 = vpack.c.bf16 %v3442, %v3434
    %v3459 = vpack.c.bf16 %v3443, %v3435
    %v3460 = vpack.c.bf16 %v3444, %v3436
    %v3461 = vpack.c.bf16 %v3445, %v3437
    %v3462 = vpack.c.bf16 %v3446, %v3438
    %v3463 = vpack.c.bf16 %v3447, %v3439
    %s3464 = smul.addr %s2773, 4
    %s3465 = scalar_lea.vmem %s13, %s3464
    %v3466 = vld [vmem:[%s3465] sm:$0xf]
    %v3467 = vld [vmem:[%s3465 + $0x4] sm:$0xf]
    %v3468 = vld [vmem:[%s3465 + $0x8] sm:$0xf]
    %v3469 = vld [vmem:[%s3465 + $0xc] sm:$0xf]
    %v3470 = vld [vmem:[%s3465 + $0x10] sm:$0xf]
    %v3471 = vld [vmem:[%s3465 + $0x14] sm:$0xf]
    %v3472 = vld [vmem:[%s3465 + $0x18] sm:$0xf]
    %v3473 = vld [vmem:[%s3465 + $0x1c] sm:$0xf]
    %v3474 = vld [vmem:[%s3465 + $0x20] sm:$0xf]
    %v3475 = vld [vmem:[%s3465 + $0x24] sm:$0xf]
    %v3476 = vld [vmem:[%s3465 + $0x28] sm:$0xf]
    %v3477 = vld [vmem:[%s3465 + $0x2c] sm:$0xf]
    %v3478 = vld [vmem:[%s3465 + $0x30] sm:$0xf]
    %v3479 = vld [vmem:[%s3465 + $0x34] sm:$0xf]
    %v3480 = vld [vmem:[%s3465 + $0x38] sm:$0xf]
    %v3481 = vld [vmem:[%s3465 + $0x3c] sm:$0xf]
    %v3482 = vld [vmem:[%s3465 + $0x40] sm:$0xf]
    %v3483 = vld [vmem:[%s3465 + $0x44] sm:$0xf]
    %v3484 = vld [vmem:[%s3465 + $0x48] sm:$0xf]
    %v3485 = vld [vmem:[%s3465 + $0x4c] sm:$0xf]
    %v3486 = vld [vmem:[%s3465 + $0x50] sm:$0xf]
    %v3487 = vld [vmem:[%s3465 + $0x54] sm:$0xf]
    %v3488 = vld [vmem:[%s3465 + $0x58] sm:$0xf]
    %v3489 = vld [vmem:[%s3465 + $0x5c] sm:$0xf]
    %v3490 = vld [vmem:[%s3465 + $0x60] sm:$0xf]
    %v3491 = vld [vmem:[%s3465 + $0x64] sm:$0xf]
    %v3492 = vld [vmem:[%s3465 + $0x68] sm:$0xf]
    %v3493 = vld [vmem:[%s3465 + $0x6c] sm:$0xf]
    %v3494 = vld [vmem:[%s3465 + $0x70] sm:$0xf]
    %v3495 = vld [vmem:[%s3465 + $0x74] sm:$0xf]
    %v3496 = vld [vmem:[%s3465 + $0x78] sm:$0xf]
    %v3497 = vld [vmem:[%s3465 + $0x7c] sm:$0xf]
    %v3498 = vld [vmem:[%s3465 + $0x80] sm:$0xf]
    %v3499 = vld [vmem:[%s3465 + $0x84] sm:$0xf]
    %v3500 = vld [vmem:[%s3465 + $0x88] sm:$0xf]
    %v3501 = vld [vmem:[%s3465 + $0x8c] sm:$0xf]
    %v3502 = vld [vmem:[%s3465 + $0x90] sm:$0xf]
    %v3503 = vld [vmem:[%s3465 + $0x94] sm:$0xf]
    %v3504 = vld [vmem:[%s3465 + $0x98] sm:$0xf]
    %v3505 = vld [vmem:[%s3465 + $0x9c] sm:$0xf]
    %v3506 = vld [vmem:[%s3465 + $0xa0] sm:$0xf]
    %v3507 = vld [vmem:[%s3465 + $0xa4] sm:$0xf]
    %v3508 = vld [vmem:[%s3465 + $0xa8] sm:$0xf]
    %v3509 = vld [vmem:[%s3465 + $0xac] sm:$0xf]
    %v3510 = vld [vmem:[%s3465 + $0xb0] sm:$0xf]
    %v3511 = vld [vmem:[%s3465 + $0xb4] sm:$0xf]
    %v3512 = vld [vmem:[%s3465 + $0xb8] sm:$0xf]
    %v3513 = vld [vmem:[%s3465 + $0xbc] sm:$0xf]
    %v3514 = vld [vmem:[%s3465 + $0xc0] sm:$0xf]
    %v3515 = vld [vmem:[%s3465 + $0xc4] sm:$0xf]
    %v3516 = vld [vmem:[%s3465 + $0xc8] sm:$0xf]
    %v3517 = vld [vmem:[%s3465 + $0xcc] sm:$0xf]
    %v3518 = vld [vmem:[%s3465 + $0xd0] sm:$0xf]
    %v3519 = vld [vmem:[%s3465 + $0xd4] sm:$0xf]
    %v3520 = vld [vmem:[%s3465 + $0xd8] sm:$0xf]
    %v3521 = vld [vmem:[%s3465 + $0xdc] sm:$0xf]
    %v3522 = vld [vmem:[%s3465 + $0xe0] sm:$0xf]
    %v3523 = vld [vmem:[%s3465 + $0xe4] sm:$0xf]
    %v3524 = vld [vmem:[%s3465 + $0xe8] sm:$0xf]
    %v3525 = vld [vmem:[%s3465 + $0xec] sm:$0xf]
    %v3526 = vld [vmem:[%s3465 + $0xf0] sm:$0xf]
    %v3527 = vld [vmem:[%s3465 + $0xf4] sm:$0xf]
    %v3528 = vld [vmem:[%s3465 + $0xf8] sm:$0xf]
    %v3529 = vld [vmem:[%s3465 + $0xfc] sm:$0xf]
    %v3530 = vld [vmem:[%s3465 + $0x100] sm:$0xf]
    %v3531 = vld [vmem:[%s3465 + $0x104] sm:$0xf]
    %v3532 = vld [vmem:[%s3465 + $0x108] sm:$0xf]
    %v3533 = vld [vmem:[%s3465 + $0x10c] sm:$0xf]
    %v3534 = vld [vmem:[%s3465 + $0x110] sm:$0xf]
    %v3535 = vld [vmem:[%s3465 + $0x114] sm:$0xf]
    %v3536 = vld [vmem:[%s3465 + $0x118] sm:$0xf]
    %v3537 = vld [vmem:[%s3465 + $0x11c] sm:$0xf]
    %v3538 = vld [vmem:[%s3465 + $0x120] sm:$0xf]
    %v3539 = vld [vmem:[%s3465 + $0x124] sm:$0xf]
    %v3540 = vld [vmem:[%s3465 + $0x128] sm:$0xf]
    %v3541 = vld [vmem:[%s3465 + $0x12c] sm:$0xf]
    %v3542 = vld [vmem:[%s3465 + $0x130] sm:$0xf]
    %v3543 = vld [vmem:[%s3465 + $0x134] sm:$0xf]
    %v3544 = vld [vmem:[%s3465 + $0x138] sm:$0xf]
    %v3545 = vld [vmem:[%s3465 + $0x13c] sm:$0xf]
    %v3546 = vld [vmem:[%s3465 + $0x140] sm:$0xf]
    %v3547 = vld [vmem:[%s3465 + $0x144] sm:$0xf]
    %v3548 = vld [vmem:[%s3465 + $0x148] sm:$0xf]
    %v3549 = vld [vmem:[%s3465 + $0x14c] sm:$0xf]
    %v3550 = vld [vmem:[%s3465 + $0x150] sm:$0xf]
    %v3551 = vld [vmem:[%s3465 + $0x154] sm:$0xf]
    %v3552 = vld [vmem:[%s3465 + $0x158] sm:$0xf]
    %v3553 = vld [vmem:[%s3465 + $0x15c] sm:$0xf]
    %v3554 = vld [vmem:[%s3465 + $0x160] sm:$0xf]
    %v3555 = vld [vmem:[%s3465 + $0x164] sm:$0xf]
    %v3556 = vld [vmem:[%s3465 + $0x168] sm:$0xf]
    %v3557 = vld [vmem:[%s3465 + $0x16c] sm:$0xf]
    %v3558 = vld [vmem:[%s3465 + $0x170] sm:$0xf]
    %v3559 = vld [vmem:[%s3465 + $0x174] sm:$0xf]
    %v3560 = vld [vmem:[%s3465 + $0x178] sm:$0xf]
    %v3561 = vld [vmem:[%s3465 + $0x17c] sm:$0xf]
    %v3562 = vld [vmem:[%s3465 + $0x180] sm:$0xf]
    %v3563 = vld [vmem:[%s3465 + $0x184] sm:$0xf]
    %v3564 = vld [vmem:[%s3465 + $0x188] sm:$0xf]
    %v3565 = vld [vmem:[%s3465 + $0x18c] sm:$0xf]
    %v3566 = vld [vmem:[%s3465 + $0x190] sm:$0xf]
    %v3567 = vld [vmem:[%s3465 + $0x194] sm:$0xf]
    %v3568 = vld [vmem:[%s3465 + $0x198] sm:$0xf]
    %v3569 = vld [vmem:[%s3465 + $0x19c] sm:$0xf]
    %v3570 = vld [vmem:[%s3465 + $0x1a0] sm:$0xf]
    %v3571 = vld [vmem:[%s3465 + $0x1a4] sm:$0xf]
    %v3572 = vld [vmem:[%s3465 + $0x1a8] sm:$0xf]
    %v3573 = vld [vmem:[%s3465 + $0x1ac] sm:$0xf]
    %v3574 = vld [vmem:[%s3465 + $0x1b0] sm:$0xf]
    %v3575 = vld [vmem:[%s3465 + $0x1b4] sm:$0xf]
    %v3576 = vld [vmem:[%s3465 + $0x1b8] sm:$0xf]
    %v3577 = vld [vmem:[%s3465 + $0x1bc] sm:$0xf]
    %v3578 = vld [vmem:[%s3465 + $0x1c0] sm:$0xf]
    %v3579 = vld [vmem:[%s3465 + $0x1c4] sm:$0xf]
    %v3580 = vld [vmem:[%s3465 + $0x1c8] sm:$0xf]
    %v3581 = vld [vmem:[%s3465 + $0x1cc] sm:$0xf]
    %v3582 = vld [vmem:[%s3465 + $0x1d0] sm:$0xf]
    %v3583 = vld [vmem:[%s3465 + $0x1d4] sm:$0xf]
    %v3584 = vld [vmem:[%s3465 + $0x1d8] sm:$0xf]
    %v3585 = vld [vmem:[%s3465 + $0x1dc] sm:$0xf]
    %v3586 = vld [vmem:[%s3465 + $0x1e0] sm:$0xf]
    %v3587 = vld [vmem:[%s3465 + $0x1e4] sm:$0xf]
    %v3588 = vld [vmem:[%s3465 + $0x1e8] sm:$0xf]
    %v3589 = vld [vmem:[%s3465 + $0x1ec] sm:$0xf]
    %v3590 = vld [vmem:[%s3465 + $0x1f0] sm:$0xf]
    %v3591 = vld [vmem:[%s3465 + $0x1f4] sm:$0xf]
    %v3592 = vld [vmem:[%s3465 + $0x1f8] sm:$0xf]
    %v3593 = vld [vmem:[%s3465 + $0x1fc] sm:$0xf]
    %s3594 = scalar_lea.vmem %s14, %s67
    %v3595 = vld [vmem:[%s3594] sm:$0x1]
    %v3597 = vlaneseq
    %v3598 = vshrl.u32 %v3597, 7
    %v3599 = vsub.s32 0, %v3598
    %v3600 = vrot.slane %v3595, %v3599
    %v3730 = vunpack.c.l.b16 %v3466
    %v3731 = vunpack.c.l.b16 %v3467
    %v3732 = vunpack.c.l.b16 %v3468
    %v3733 = vunpack.c.l.b16 %v3469
    %v3734 = vunpack.c.l.b16 %v3470
    %v3735 = vunpack.c.l.b16 %v3471
    %v3736 = vunpack.c.l.b16 %v3472
    %v3737 = vunpack.c.l.b16 %v3473
    %v3738 = vunpack.c.l.b16 %v3474
    %v3739 = vunpack.c.l.b16 %v3475
    %v3740 = vunpack.c.l.b16 %v3476
    %v3741 = vunpack.c.l.b16 %v3477
    %v3742 = vunpack.c.l.b16 %v3478
    %v3743 = vunpack.c.l.b16 %v3479
    %v3744 = vunpack.c.l.b16 %v3480
    %v3745 = vunpack.c.l.b16 %v3481
    %v3746 = vunpack.c.l.b16 %v3482
    %v3747 = vunpack.c.l.b16 %v3483
    %v3748 = vunpack.c.l.b16 %v3484
    %v3749 = vunpack.c.l.b16 %v3485
    %v3750 = vunpack.c.l.b16 %v3486
    %v3751 = vunpack.c.l.b16 %v3487
    %v3752 = vunpack.c.l.b16 %v3488
    %v3753 = vunpack.c.l.b16 %v3489
    %v3754 = vunpack.c.l.b16 %v3490
    %v3755 = vunpack.c.l.b16 %v3491
    %v3756 = vunpack.c.l.b16 %v3492
    %v3757 = vunpack.c.l.b16 %v3493
    %v3758 = vunpack.c.l.b16 %v3494
    %v3759 = vunpack.c.l.b16 %v3495
    %v3760 = vunpack.c.l.b16 %v3496
    %v3761 = vunpack.c.l.b16 %v3497
    %v3762 = vunpack.c.l.b16 %v3498
    %v3763 = vunpack.c.l.b16 %v3499
    %v3764 = vunpack.c.l.b16 %v3500
    %v3765 = vunpack.c.l.b16 %v3501
    %v3766 = vunpack.c.l.b16 %v3502
    %v3767 = vunpack.c.l.b16 %v3503
    %v3768 = vunpack.c.l.b16 %v3504
    %v3769 = vunpack.c.l.b16 %v3505
    %v3770 = vunpack.c.l.b16 %v3506
    %v3771 = vunpack.c.l.b16 %v3507
    %v3772 = vunpack.c.l.b16 %v3508
    %v3773 = vunpack.c.l.b16 %v3509
    %v3774 = vunpack.c.l.b16 %v3510
    %v3775 = vunpack.c.l.b16 %v3511
    %v3776 = vunpack.c.l.b16 %v3512
    %v3777 = vunpack.c.l.b16 %v3513
    %v3778 = vunpack.c.l.b16 %v3514
    %v3779 = vunpack.c.l.b16 %v3515
    %v3780 = vunpack.c.l.b16 %v3516
    %v3781 = vunpack.c.l.b16 %v3517
    %v3782 = vunpack.c.l.b16 %v3518
    %v3783 = vunpack.c.l.b16 %v3519
    %v3784 = vunpack.c.l.b16 %v3520
    %v3785 = vunpack.c.l.b16 %v3521
    %v3786 = vunpack.c.l.b16 %v3522
    %v3787 = vunpack.c.l.b16 %v3523
    %v3788 = vunpack.c.l.b16 %v3524
    %v3789 = vunpack.c.l.b16 %v3525
    %v3790 = vunpack.c.l.b16 %v3526
    %v3791 = vunpack.c.l.b16 %v3527
    %v3792 = vunpack.c.l.b16 %v3528
    %v3793 = vunpack.c.l.b16 %v3529
    %v3794 = vunpack.c.l.b16 %v3530
    %v3795 = vunpack.c.l.b16 %v3531
    %v3796 = vunpack.c.l.b16 %v3532
    %v3797 = vunpack.c.l.b16 %v3533
    %v3798 = vunpack.c.l.b16 %v3534
    %v3799 = vunpack.c.l.b16 %v3535
    %v3800 = vunpack.c.l.b16 %v3536
    %v3801 = vunpack.c.l.b16 %v3537
    %v3802 = vunpack.c.l.b16 %v3538
    %v3803 = vunpack.c.l.b16 %v3539
    %v3804 = vunpack.c.l.b16 %v3540
    %v3805 = vunpack.c.l.b16 %v3541
    %v3806 = vunpack.c.l.b16 %v3542
    %v3807 = vunpack.c.l.b16 %v3543
    %v3808 = vunpack.c.l.b16 %v3544
    %v3809 = vunpack.c.l.b16 %v3545
    %v3810 = vunpack.c.l.b16 %v3546
    %v3811 = vunpack.c.l.b16 %v3547
    %v3812 = vunpack.c.l.b16 %v3548
    %v3813 = vunpack.c.l.b16 %v3549
    %v3814 = vunpack.c.l.b16 %v3550
    %v3815 = vunpack.c.l.b16 %v3551
    %v3816 = vunpack.c.l.b16 %v3552
    %v3817 = vunpack.c.l.b16 %v3553
    %v3818 = vunpack.c.l.b16 %v3554
    %v3819 = vunpack.c.l.b16 %v3555
    %v3820 = vunpack.c.l.b16 %v3556
    %v3821 = vunpack.c.l.b16 %v3557
    %v3822 = vunpack.c.l.b16 %v3558
    %v3823 = vunpack.c.l.b16 %v3559
    %v3824 = vunpack.c.l.b16 %v3560
    %v3825 = vunpack.c.l.b16 %v3561
    %v3826 = vunpack.c.l.b16 %v3562
    %v3827 = vunpack.c.l.b16 %v3563
    %v3828 = vunpack.c.l.b16 %v3564
    %v3829 = vunpack.c.l.b16 %v3565
    %v3830 = vunpack.c.l.b16 %v3566
    %v3831 = vunpack.c.l.b16 %v3567
    %v3832 = vunpack.c.l.b16 %v3568
    %v3833 = vunpack.c.l.b16 %v3569
    %v3834 = vunpack.c.l.b16 %v3570
    %v3835 = vunpack.c.l.b16 %v3571
    %v3836 = vunpack.c.l.b16 %v3572
    %v3837 = vunpack.c.l.b16 %v3573
    %v3838 = vunpack.c.l.b16 %v3574
    %v3839 = vunpack.c.l.b16 %v3575
    %v3840 = vunpack.c.l.b16 %v3576
    %v3841 = vunpack.c.l.b16 %v3577
    %v3842 = vunpack.c.l.b16 %v3578
    %v3843 = vunpack.c.l.b16 %v3579
    %v3844 = vunpack.c.l.b16 %v3580
    %v3845 = vunpack.c.l.b16 %v3581
    %v3846 = vunpack.c.l.b16 %v3582
    %v3847 = vunpack.c.l.b16 %v3583
    %v3848 = vunpack.c.l.b16 %v3584
    %v3849 = vunpack.c.l.b16 %v3585
    %v3850 = vunpack.c.l.b16 %v3586
    %v3851 = vunpack.c.l.b16 %v3587
    %v3852 = vunpack.c.l.b16 %v3588
    %v3853 = vunpack.c.l.b16 %v3589
    %v3854 = vunpack.c.l.b16 %v3590
    %v3855 = vunpack.c.l.b16 %v3591
    %v3856 = vunpack.c.l.b16 %v3592
    %v3857 = vunpack.c.l.b16 %v3593
    %v3858 = vpack.c.b16 %v3731, %v3730
    %v3859 = vpack.c.b16 %v3733, %v3732
    %v3860 = vpack.c.b16 %v3735, %v3734
    %v3861 = vpack.c.b16 %v3737, %v3736
    %v3862 = vpack.c.b16 %v3739, %v3738
    %v3863 = vpack.c.b16 %v3741, %v3740
    %v3864 = vpack.c.b16 %v3743, %v3742
    %v3865 = vpack.c.b16 %v3745, %v3744
    %v3866 = vpack.c.b16 %v3747, %v3746
    %v3867 = vpack.c.b16 %v3749, %v3748
    %v3868 = vpack.c.b16 %v3751, %v3750
    %v3869 = vpack.c.b16 %v3753, %v3752
    %v3870 = vpack.c.b16 %v3755, %v3754
    %v3871 = vpack.c.b16 %v3757, %v3756
    %v3872 = vpack.c.b16 %v3759, %v3758
    %v3873 = vpack.c.b16 %v3761, %v3760
    %v3874 = vpack.c.b16 %v3763, %v3762
    %v3875 = vpack.c.b16 %v3765, %v3764
    %v3876 = vpack.c.b16 %v3767, %v3766
    %v3877 = vpack.c.b16 %v3769, %v3768
    %v3878 = vpack.c.b16 %v3771, %v3770
    %v3879 = vpack.c.b16 %v3773, %v3772
    %v3880 = vpack.c.b16 %v3775, %v3774
    %v3881 = vpack.c.b16 %v3777, %v3776
    %v3882 = vpack.c.b16 %v3779, %v3778
    %v3883 = vpack.c.b16 %v3781, %v3780
    %v3884 = vpack.c.b16 %v3783, %v3782
    %v3885 = vpack.c.b16 %v3785, %v3784
    %v3886 = vpack.c.b16 %v3787, %v3786
    %v3887 = vpack.c.b16 %v3789, %v3788
    %v3888 = vpack.c.b16 %v3791, %v3790
    %v3889 = vpack.c.b16 %v3793, %v3792
    %v3890 = vpack.c.b16 %v3795, %v3794
    %v3891 = vpack.c.b16 %v3797, %v3796
    %v3892 = vpack.c.b16 %v3799, %v3798
    %v3893 = vpack.c.b16 %v3801, %v3800
    %v3894 = vpack.c.b16 %v3803, %v3802
    %v3895 = vpack.c.b16 %v3805, %v3804
    %v3896 = vpack.c.b16 %v3807, %v3806
    %v3897 = vpack.c.b16 %v3809, %v3808
    %v3898 = vpack.c.b16 %v3811, %v3810
    %v3899 = vpack.c.b16 %v3813, %v3812
    %v3900 = vpack.c.b16 %v3815, %v3814
    %v3901 = vpack.c.b16 %v3817, %v3816
    %v3902 = vpack.c.b16 %v3819, %v3818
    %v3903 = vpack.c.b16 %v3821, %v3820
    %v3904 = vpack.c.b16 %v3823, %v3822
    %v3905 = vpack.c.b16 %v3825, %v3824
    %v3906 = vpack.c.b16 %v3827, %v3826
    %v3907 = vpack.c.b16 %v3829, %v3828
    %v3908 = vpack.c.b16 %v3831, %v3830
    %v3909 = vpack.c.b16 %v3833, %v3832
    %v3910 = vpack.c.b16 %v3835, %v3834
    %v3911 = vpack.c.b16 %v3837, %v3836
    %v3912 = vpack.c.b16 %v3839, %v3838
    %v3913 = vpack.c.b16 %v3841, %v3840
    %v3914 = vpack.c.b16 %v3843, %v3842
    %v3915 = vpack.c.b16 %v3845, %v3844
    %v3916 = vpack.c.b16 %v3847, %v3846
    %v3917 = vpack.c.b16 %v3849, %v3848
    %v3918 = vpack.c.b16 %v3851, %v3850
    %v3919 = vpack.c.b16 %v3853, %v3852
    %v3920 = vpack.c.b16 %v3855, %v3854
    %v3921 = vpack.c.b16 %v3857, %v3856
    %3986 = vmatprep.subr.bf16.mxu0 0
    %3987 = vmatpush1.bf16.msra.mxu0 %v3858
    %3988 = vmatprep.subr.bf16.mxu0 0
    %3989 = vmatpush1.bf16.msra.mxu0 %v3859
    %3990 = vmatprep.subr.bf16.mxu0 0
    %3991 = vmatpush1.bf16.msra.mxu0 %v3860
    %3992 = vmatprep.subr.bf16.mxu0 0
    %3993 = vmatpush1.bf16.msra.mxu0 %v3861
    %3994 = vmatprep.subr.bf16.mxu0 0
    %3995 = vmatpush1.bf16.msra.mxu0 %v3862
    %3996 = vmatprep.subr.bf16.mxu0 0
    %3997 = vmatpush1.bf16.msra.mxu0 %v3863
    %3998 = vmatprep.subr.bf16.mxu0 0
    %3999 = vmatpush1.bf16.msra.mxu0 %v3864
    %4000 = vmatprep.subr.bf16.mxu0 0
    %4001 = vmatpush1.bf16.msra.mxu0 %v3865
    %4002 = vmatprep.subr.bf16.mxu0 0
    %4003 = vmatpush1.bf16.msra.mxu0 %v3866
    %4004 = vmatprep.subr.bf16.mxu0 0
    %4005 = vmatpush1.bf16.msra.mxu0 %v3867
    %4006 = vmatprep.subr.bf16.mxu0 0
    %4007 = vmatpush1.bf16.msra.mxu0 %v3868
    %4008 = vmatprep.subr.bf16.mxu0 0
    %4009 = vmatpush1.bf16.msra.mxu0 %v3869
    %4010 = vmatprep.subr.bf16.mxu0 0
    %4011 = vmatpush1.bf16.msra.mxu0 %v3870
    %4012 = vmatprep.subr.bf16.mxu0 0
    %4013 = vmatpush1.bf16.msra.mxu0 %v3871
    %4014 = vmatprep.subr.bf16.mxu0 0
    %4015 = vmatpush1.bf16.msra.mxu0 %v3872
    %4016 = vmatprep.subr.bf16.mxu0 0
    %4017 = vmatpush1.bf16.msra.mxu0 %v3873
    %4018 = vmatprep.mubr.bf16.mxu0 %v3449
    %4019 = vmatmul.mubr.bf16.gmra.mrb[0].mxu0 %v3448
    %v4020 = vpop.f32.mrb[0].mxu0
    %v4021 = vadd.f32 %v3600, %v4020
    %v4022 = vpop.f32.mrb[0].mxu0
    %v4023 = vpop.f32.mrb[0].mxu0
    %v4024 = vadd.f32 %v3600, %v4023
    %v4025 = vpop.f32.mrb[0].mxu0
    %4026 = vmatprep.mubr.bf16.mxu0 %v3457
    %4027 = vmatmul.mubr.bf16.gmra.mrb[0].mxu0 %v3456
    %v4028 = vpop.f32.mrb[0].mxu0
    %v4029 = vadd.f32 %v3600, %v4028
    %v4030 = vpop.f32.mrb[0].mxu0
    %v4031 = vpop.f32.mrb[0].mxu0
    %v4032 = vadd.f32 %v3600, %v4031
    %v4033 = vpop.f32.mrb[0].mxu0
    %4034 = vdwg.mxu0
    %4035 = vmatprep.subr.bf16.mxu0 0
    %4036 = vmatpush1.bf16.msra.mxu0 %v3874
    %4037 = vmatprep.subr.bf16.mxu0 0
    %4038 = vmatpush1.bf16.msra.mxu0 %v3875
    %4039 = vmatprep.subr.bf16.mxu0 0
    %4040 = vmatpush1.bf16.msra.mxu0 %v3876
    %4041 = vmatprep.subr.bf16.mxu0 0
    %4042 = vmatpush1.bf16.msra.mxu0 %v3877
    %4043 = vmatprep.subr.bf16.mxu0 0
    %4044 = vmatpush1.bf16.msra.mxu0 %v3878
    %4045 = vmatprep.subr.bf16.mxu0 0
    %4046 = vmatpush1.bf16.msra.mxu0 %v3879
    %4047 = vmatprep.subr.bf16.mxu0 0
    %4048 = vmatpush1.bf16.msra.mxu0 %v3880
    %4049 = vmatprep.subr.bf16.mxu0 0
    %4050 = vmatpush1.bf16.msra.mxu0 %v3881
    %4051 = vmatprep.subr.bf16.mxu0 0
    %4052 = vmatpush1.bf16.msra.mxu0 %v3882
    %4053 = vmatprep.subr.bf16.mxu0 0
    %4054 = vmatpush1.bf16.msra.mxu0 %v3883
    %4055 = vmatprep.subr.bf16.mxu0 0
    %4056 = vmatpush1.bf16.msra.mxu0 %v3884
    %4057 = vmatprep.subr.bf16.mxu0 0
    %4058 = vmatpush1.bf16.msra.mxu0 %v3885
    %4059 = vmatprep.subr.bf16.mxu0 0
    %4060 = vmatpush1.bf16.msra.mxu0 %v3886
    %4061 = vmatprep.subr.bf16.mxu0 0
    %4062 = vmatpush1.bf16.msra.mxu0 %v3887
    %4063 = vmatprep.subr.bf16.mxu0 0
    %4064 = vmatpush1.bf16.msra.mxu0 %v3888
    %4065 = vmatprep.subr.bf16.mxu0 0
    %4066 = vmatpush1.bf16.msra.mxu0 %v3889
    %4067 = vmatprep.mubr.bf16.mxu0 %v3451
    %4068 = vmatmul.mubr.bf16.gmra.mrb[0].mxu0 %v3450
    %v4069 = vpop.f32.mrb[0].mxu0
    %v4070 = vadd.f32 %v4021, %v4069
    %v4071 = vpop.f32.mrb[0].mxu0
    %v4072 = vpop.f32.mrb[0].mxu0
    %v4073 = vadd.f32 %v4024, %v4072
    %v4074 = vpop.f32.mrb[0].mxu0
    %4075 = vmatprep.mubr.bf16.mxu0 %v3459
    %4076 = vmatmul.mubr.bf16.gmra.mrb[0].mxu0 %v3458
    %v4077 = vpop.f32.mrb[0].mxu0
    %v4078 = vadd.f32 %v4029, %v4077
    %v4079 = vpop.f32.mrb[0].mxu0
    %v4080 = vpop.f32.mrb[0].mxu0
    %v4081 = vadd.f32 %v4032, %v4080
    %v4082 = vpop.f32.mrb[0].mxu0
    %4083 = vdwg.mxu0
    %4084 = vmatprep.subr.bf16.mxu0 0
    %4085 = vmatpush1.bf16.msra.mxu0 %v3890
    %4086 = vmatprep.subr.bf16.mxu0 0
    %4087 = vmatpush1.bf16.msra.mxu0 %v3891
    %4088 = vmatprep.subr.bf16.mxu0 0
    %4089 = vmatpush1.bf16.msra.mxu0 %v3892
    %4090 = vmatprep.subr.bf16.mxu0 0
    %4091 = vmatpush1.bf16.msra.mxu0 %v3893
    %4092 = vmatprep.subr.bf16.mxu0 0
    %4093 = vmatpush1.bf16.msra.mxu0 %v3894
    %4094 = vmatprep.subr.bf16.mxu0 0
    %4095 = vmatpush1.bf16.msra.mxu0 %v3895
    %4096 = vmatprep.subr.bf16.mxu0 0
    %4097 = vmatpush1.bf16.msra.mxu0 %v3896
    %4098 = vmatprep.subr.bf16.mxu0 0
    %4099 = vmatpush1.bf16.msra.mxu0 %v3897
    %4100 = vmatprep.subr.bf16.mxu0 0
    %4101 = vmatpush1.bf16.msra.mxu0 %v3898
    %4102 = vmatprep.subr.bf16.mxu0 0
    %4103 = vmatpush1.bf16.msra.mxu0 %v3899
    %4104 = vmatprep.subr.bf16.mxu0 0
    %4105 = vmatpush1.bf16.msra.mxu0 %v3900
    %4106 = vmatprep.subr.bf16.mxu0 0
    %4107 = vmatpush1.bf16.msra.mxu0 %v3901
    %4108 = vmatprep.subr.bf16.mxu0 0
    %4109 = vmatpush1.bf16.msra.mxu0 %v3902
    %4110 = vmatprep.subr.bf16.mxu0 0
    %4111 = vmatpush1.bf16.msra.mxu0 %v3903
    %4112 = vmatprep.subr.bf16.mxu0 0
    %4113 = vmatpush1.bf16.msra.mxu0 %v3904
    %4114 = vmatprep.subr.bf16.mxu0 0
    %4115 = vmatpush1.bf16.msra.mxu0 %v3905
    %4116 = vmatprep.mubr.bf16.mxu0 %v3453
    %4117 = vmatmul.mubr.bf16.gmra.mrb[0].mxu0 %v3452
    %v4118 = vpop.f32.mrb[0].mxu0
    %v4119 = vadd.f32 %v4070, %v4118
    %v4120 = vpop.f32.mrb[0].mxu0
    %v4121 = vpop.f32.mrb[0].mxu0
    %v4122 = vadd.f32 %v4073, %v4121
    %v4123 = vpop.f32.mrb[0].mxu0
    %4124 = vmatprep.mubr.bf16.mxu0 %v3461
    %4125 = vmatmul.mubr.bf16.gmra.mrb[0].mxu0 %v3460
    %v4126 = vpop.f32.mrb[0].mxu0
    %v4127 = vadd.f32 %v4078, %v4126
    %v4128 = vpop.f32.mrb[0].mxu0
    %v4129 = vpop.f32.mrb[0].mxu0
    %v4130 = vadd.f32 %v4081, %v4129
    %v4131 = vpop.f32.mrb[0].mxu0
    %4132 = vdwg.mxu0
    %4133 = vmatprep.subr.bf16.mxu0 0
    %4134 = vmatpush1.bf16.msra.mxu0 %v3906
    %4135 = vmatprep.subr.bf16.mxu0 0
    %4136 = vmatpush1.bf16.msra.mxu0 %v3907
    %4137 = vmatprep.subr.bf16.mxu0 0
    %4138 = vmatpush1.bf16.msra.mxu0 %v3908
    %4139 = vmatprep.subr.bf16.mxu0 0
    %4140 = vmatpush1.bf16.msra.mxu0 %v3909
    %4141 = vmatprep.subr.bf16.mxu0 0
    %4142 = vmatpush1.bf16.msra.mxu0 %v3910
    %4143 = vmatprep.subr.bf16.mxu0 0
    %4144 = vmatpush1.bf16.msra.mxu0 %v3911
    %4145 = vmatprep.subr.bf16.mxu0 0
    %4146 = vmatpush1.bf16.msra.mxu0 %v3912
    %4147 = vmatprep.subr.bf16.mxu0 0
    %4148 = vmatpush1.bf16.msra.mxu0 %v3913
    %4149 = vmatprep.subr.bf16.mxu0 0
    %4150 = vmatpush1.bf16.msra.mxu0 %v3914
    %4151 = vmatprep.subr.bf16.mxu0 0
    %4152 = vmatpush1.bf16.msra.mxu0 %v3915
    %4153 = vmatprep.subr.bf16.mxu0 0
    %4154 = vmatpush1.bf16.msra.mxu0 %v3916
    %4155 = vmatprep.subr.bf16.mxu0 0
    %4156 = vmatpush1.bf16.msra.mxu0 %v3917
    %4157 = vmatprep.subr.bf16.mxu0 0
    %4158 = vmatpush1.bf16.msra.mxu0 %v3918
    %4159 = vmatprep.subr.bf16.mxu0 0
    %4160 = vmatpush1.bf16.msra.mxu0 %v3919
    %4161 = vmatprep.subr.bf16.mxu0 0
    %4162 = vmatpush1.bf16.msra.mxu0 %v3920
    %4163 = vmatprep.subr.bf16.mxu0 0
    %4164 = vmatpush1.bf16.msra.mxu0 %v3921
    %4165 = vmatprep.mubr.bf16.mxu0 %v3455
    %4166 = vmatmul.mubr.bf16.gmra.mrb[0].mxu0 %v3454
    %v4167 = vpop.f32.mrb[0].mxu0
    %v4168 = vadd.f32 %v4119, %v4167
    %v4169 = vpop.f32.mrb[0].mxu0
    %v4170 = vpop.f32.mrb[0].mxu0
    %v4171 = vadd.f32 %v4122, %v4170
    %v4172 = vpop.f32.mrb[0].mxu0
    %4173 = vmatprep.mubr.bf16.mxu0 %v3463
    %4174 = vmatmul.mubr.bf16.gmra.mrb[0].mxu0 %v3462
    %v4175 = vpop.f32.mrb[0].mxu0
    %v4176 = vadd.f32 %v4127, %v4175
    %v4177 = vpop.f32.mrb[0].mxu0
    %v4178 = vpop.f32.mrb[0].mxu0
    %v4179 = vadd.f32 %v4130, %v4178
    %v4180 = vpop.f32.mrb[0].mxu0
    %4181 = vdwg.mxu0
    %v4182 = vadd.f32 %v2767, %v4168
    %v4183 = vadd.f32 %v2768, %v4171
    %v4184 = vadd.f32 %v2769, %v4176
    %v4185 = vadd.f32 %v2770, %v4179
    %s4186 = scalar_lea.vmem %s15, %s67
    %v4187 = vld [vmem:[%s4186] sm:$0x1]
    %s4188 = scalar_lea.vmem %s16, %s67
    %v4189 = vld [vmem:[%s4188] sm:$0x1]
    %4190 = vadd.xlane.f32.xlu0 %v4182
    %v4191 = vpop.xlane.xlu0 %4190
    %4192 = vadd.xlane.f32.xlu0 %v4183
    %v4193 = vpop.xlane.xlu0 %4192
    %4194 = vadd.xlane.f32.xlu0 %v4184
    %v4195 = vpop.xlane.xlu0 %4194
    %4196 = vadd.xlane.f32.xlu0 %v4185
    %v4197 = vpop.xlane.xlu0 %4196
    %v4198 = vmul.f32 %v4191, %v2714
    %v4199 = vmul.f32 %v4193, %v2714
    %v4200 = vmul.f32 %v4195, %v2714
    %v4201 = vmul.f32 %v4197, %v2714
    %v4202 = vsub.f32 %v4182, %v4198
    %v4203 = vsub.f32 %v4183, %v4199
    %v4204 = vsub.f32 %v4184, %v4200
    %v4205 = vsub.f32 %v4185, %v4201
    %v4206 = vmul.f32 %v4202, %v4202
    %v4207 = vmul.f32 %v4203, %v4203
    %v4208 = vmul.f32 %v4204, %v4204
    %v4209 = vmul.f32 %v4205, %v4205
    %4210 = vadd.xlane.f32.xlu0 %v4206
    %v4211 = vpop.xlane.xlu0 %4210
    %4212 = vadd.xlane.f32.xlu0 %v4207
    %v4213 = vpop.xlane.xlu0 %4212
    %4214 = vadd.xlane.f32.xlu0 %v4208
    %v4215 = vpop.xlane.xlu0 %4214
    %4216 = vadd.xlane.f32.xlu0 %v4209
    %v4217 = vpop.xlane.xlu0 %4216
    %v4218 = vmul.f32 %v4211, %v2714
    %v4219 = vmul.f32 %v4213, %v2714
    %v4220 = vmul.f32 %v4215, %v2714
    %v4221 = vmul.f32 %v4217, %v2714
    %v4222 = vadd.f32 %v4218, 1e-05
    %v4223 = vadd.f32 %v4219, 1e-05
    %v4224 = vadd.f32 %v4220, 1e-05
    %v4225 = vadd.f32 %v4221, 1e-05
    %v4226 = vrsqrt.pop %v4222
    %v4227 = vrsqrt.pop %v4223
    %v4228 = vrsqrt.pop %v4224
    %v4229 = vrsqrt.pop %v4225
    %v4230 = vmul.f32 %v4202, %v4226
    %v4231 = vmul.f32 %v4203, %v4227
    %v4232 = vmul.f32 %v4204, %v4228
    %v4233 = vmul.f32 %v4205, %v4229
    %v4235 = vlaneseq
    %v4236 = vshrl.u32 %v4235, 7
    %v4237 = vsub.s32 0, %v4236
    %v4238 = vrot.slane %v4187, %v4237
    %v4240 = vmul.f32 %v4230, %v4238
    %v4241 = vmul.f32 %v4231, %v4238
    %v4242 = vmul.f32 %v4232, %v4238
    %v4243 = vmul.f32 %v4233, %v4238
    %v4245 = vlaneseq
    %v4246 = vshrl.u32 %v4245, 7
    %v4247 = vsub.s32 0, %v4246
    %v4248 = vrot.slane %v4189, %v4247
    %v4250 = vadd.f32 %v4240, %v4248
    %v4251 = vadd.f32 %v4241, %v4248
    %v4252 = vadd.f32 %v4242, %v4248
    %v4253 = vadd.f32 %v4243, %v4248
  $region74: #{_lambda_.1} parent=0 // loop_footer
    %s71 = sadd.s32 1, %s67
  $region75: #{_lambda_.1} parent=0 // loop_footer_branch
    %66 = sbr.rel target = $region71
  $region76: #{_lambda_.1} parent=0 // loop_exit
    _
  %4254 = vst [vmem:[%s17] sm:$0xff] %v72
  %4255 = vst [vmem:[%s17 + $0x8] sm:$0xff] %v73
  %4256 = vst [vmem:[%s17 + $0x10] sm:$0xff] %v74
  %4257 = vst [vmem:[%s17 + $0x18] sm:$0xff] %v75
  // Predicated region
  $region77: #{_lambda_.1} parent=0 // pred_check
    _
  $region78: #{_lambda_.1} parent=0 // pred_check_branch
    %4259 = sbr.rel (0) target = $region80
  $region79: #{_lambda_.1} parent=0 // pred_region
    _
  $region80: #{_lambda_.1} parent=0 // pred_fallthru
    _
  // Predicated region
  $region81: #{_lambda_.1} parent=0 // pred_check
    _
  $region82: #{_lambda_.1} parent=0 // pred_check_branch
    %4261 = sbr.rel (0) target = $region84
  $region83: #{_lambda_.1} parent=0 // pred_region
    _
  $region84: #{_lambda_.1} parent=0 // pred_fallthru
    _

</llo_original>
